<compile_context>
chip_gen: v7x
topology: tpu7x:2x2x1
jax: 0.10.0
libtpu: 0.0.40
codegen_flags: <defaults>
</compile_context>

<pallas_src>
import jax
import jax.numpy as jnp
from jax.experimental import pallas as pl
from jax.experimental.pallas import tpu as pltpu


D_IN, D_H1, D_H2, D_H3, D_OUT = 2000, 400, 400, 25, 1


def _round_up(n, m):
    return ((n + m - 1) // m) * m


def mlp_kernel(x_ref, w1_ref, b1_ref, w2_ref, b2_ref, w3_ref, b3_ref,
               w4_ref, b4_ref, o_ref):
    # Cast the f32 x tile to bf16 in-kernel (VPU work, hidden under the MXU).
    x = x_ref[...].astype(jnp.bfloat16)

    # Layer 1: (TB, 2000) @ (2000, 400), bf16 MXU, f32 accumulate, bias+ReLU f32.
    h = jnp.dot(x, w1_ref[...], preferred_element_type=jnp.float32)
    h = jnp.maximum(h + b1_ref[...], 0.0)

    # Layer 2: (TB, 400) @ (400, 400)
    h = jnp.dot(h.astype(jnp.bfloat16), w2_ref[...],
                preferred_element_type=jnp.float32)
    h = jnp.maximum(h + b2_ref[...], 0.0)

    # Layer 3: (TB, 400) @ (400, 25)
    h = jnp.dot(h.astype(jnp.bfloat16), w3_ref[...],
                preferred_element_type=jnp.float32)
    h = jnp.maximum(h + b3_ref[...], 0.0)

    # Layer 4: K=25, N=1 -> VPU/XLU reduction (avoid a near-empty MXU pass).
    # w4_ref is a (1, 25) f32 row; produce a lane-dense (1, TB) row for the store.
    o = jnp.sum(h * w4_ref[...], axis=-1)            # (TB,)
    o_ref[...] = o.reshape(1, o.shape[0]) + b4_ref[...]   # (1, TB) + (1, 1)


def net_forward(x, kparams, *, tb=1024):
    """x: (B, 2000) float32. kparams: output of prepare_params().
    Returns (B, 1) float32."""
    B = x.shape[0]
    tb = max(128, (tb // 128) * 128)            # keep TB a multiple of 128

    # >=2 grid steps for big batches (dual-TC v7x), >=128 rows for tiny batches.
    TB = max(128, min(tb, _round_up(pl.cdiv(B, 2), 128)))
    B_pad = _round_up(B, TB)
    if B_pad != B:
        # Pad so there are no partial / out-of-bounds tiles; padded rows are
        # computed and discarded (rows are independent). Prefer B % 128 == 0
        # callers to avoid this extra copy.
        x = jnp.pad(x, ((0, B_pad - B), (0, 0)))
    num_tiles = B_pad // TB
    grid = (num_tiles,)

    w1, w2, w3 = kparams["w1"], kparams["w2"], kparams["w3"]   # bf16
    w4 = kparams["w4"]                                          # (1, 25) f32
    b1, b2, b3, b4 = kparams["b1"], kparams["b2"], kparams["b3"], kparams["b4"]

    def const_spec(a):
        # Full-array block, constant index -> DMA'd once, resident in VMEM.
        return pl.BlockSpec(a.shape, lambda i: (0, 0))

    flops = 2 * B_pad * (D_IN * D_H1 + D_H1 * D_H2 + D_H2 * D_H3 + D_H3 * D_OUT)
    bytes_accessed = (
        B_pad * D_IN * 4                                   # x, f32
        + (w1.size + w2.size + w3.size) * 2                # bf16 weights
        + (w4.size + b1.size + b2.size + b3.size + b4.size) * 4
        + B_pad * 4                                        # output
    )

    out = pl.pallas_call(
        mlp_kernel,
        out_shape=jax.ShapeDtypeStruct((1, B_pad), jnp.float32),
        grid=grid,
        in_specs=[
            pl.BlockSpec((TB, D_IN), lambda i: (i, 0)),    # x: batch-tiled
            const_spec(w1), const_spec(b1),
            const_spec(w2), const_spec(b2),
            const_spec(w3), const_spec(b3),
            const_spec(w4), const_spec(b4),
        ],
        # Lane-dense output: one (1, TB) row per grid step -> unmasked stores.
        out_specs=pl.BlockSpec((1, TB), lambda i: (0, i)),
        compiler_params=pltpu.CompilerParams(
            dimension_semantics=("parallel",),
            vmem_limit_bytes=48 * 1024 * 1024),
        cost_estimate=pl.CostEstimate(
            flops=flops, transcendentals=0, bytes_accessed=bytes_accessed),
    )(x, w1, b1, w2, b2, w3, b3, w4, b4)

    return out.reshape(B_pad, 1)[:B]


def init_params(key):
    """PyTorch nn.Linear-like init: uniform(+-1/sqrt(fan_in)) for weight & bias.
    Weights stored as (in, out) f32, biases as (1, out) f32."""
    dims = [(D_IN, D_H1), (D_H1, D_H2), (D_H2, D_H3), (D_H3, D_OUT)]
    params = {}
    for i, (fan_in, fan_out) in enumerate(dims, start=1):
        key, kw, kb = jax.random.split(key, 3)
        bound = 1.0 / (fan_in ** 0.5)
        params[f"w{i}"] = jax.random.uniform(
            kw, (fan_in, fan_out), jnp.float32, minval=-bound, maxval=bound)
        params[f"b{i}"] = jax.random.uniform(
            kb, (1, fan_out), jnp.float32, minval=-bound, maxval=bound)
    return params


def prepare_params(params):
    """One-time, B-independent conversion to the kernel's resident layout:
    w1..w3 in bf16, w4 as an f32 (1, 25) row for the VPU reduction."""
    return {
        "w1": params["w1"].astype(jnp.bfloat16),
        "w2": params["w2"].astype(jnp.bfloat16),
        "w3": params["w3"].astype(jnp.bfloat16),
        "w4": params["w4"].reshape(1, D_H3).astype(jnp.float32),
        "b1": params["b1"], "b2": params["b2"],
        "b3": params["b3"], "b4": params["b4"],
    }


def reference_forward(x, p):
    """Full-f32 reference matching the PyTorch module's math."""
    hi = jax.lax.Precision.HIGHEST
    h = jnp.maximum(jnp.dot(x, p["w1"], precision=hi) + p["b1"], 0.0)
    h = jnp.maximum(jnp.dot(h, p["w2"], precision=hi) + p["b2"], 0.0)
    h = jnp.maximum(jnp.dot(h, p["w3"], precision=hi) + p["b3"], 0.0)
    return jnp.dot(h, p["w4"], precision=hi) + p["b4"]


if __name__ == "__main__":
    key = jax.random.PRNGKey(0)
    key, kx = jax.random.split(key)
    params = init_params(key)
    kparams = jax.tree_util.tree_map(jax.block_until_ready,
                                     prepare_params(params))  # hoisted, one-time

    batch = 2
    x = jax.random.normal(kx, (batch, D_IN), dtype=jnp.float32)

    out = jax.block_until_ready(net_forward(x, kparams))

    ref = reference_forward(x, params)
    assert out.shape == (batch, D_OUT), out.shape
    # Kernel uses bf16 matmul inputs with f32 accumulation (K up to 2000), so
    # ~1e-2 relative error vs. the f32 reference is expected and documented.
    assert jnp.allclose(out, ref, atol=5e-2, rtol=5e-2), (out, ref)

    print("KERNEL_OK")
</pallas_src>

<mosaic_0001>
module attributes {stable_mosaic.version = 11 : i64} {
  func.func @mlp_kernel(%arg0: i32, %arg1: memref<128x2000xf32, #tpu.memory_space<vmem>>, %arg2: memref<2000x400xbf16, #tpu.memory_space<vmem>>, %arg3: memref<1x400xf32, #tpu.memory_space<vmem>>, %arg4: memref<400x400xbf16, #tpu.memory_space<vmem>>, %arg5: memref<1x400xf32, #tpu.memory_space<vmem>>, %arg6: memref<400x25xbf16, #tpu.memory_space<vmem>>, %arg7: memref<1x25xf32, #tpu.memory_space<vmem>>, %arg8: memref<1x25xf32, #tpu.memory_space<vmem>>, %arg9: memref<1x1xf32, #tpu.memory_space<vmem>>, %arg10: memref<1x128xf32, #tpu.memory_space<vmem>>) attributes {dimension_semantics = [#tpu.dimension_semantics<parallel>], iteration_bounds = array<i64: 1>, scalar_prefetch = 0 : i64, scratch_operands = 0 : i64, tpu.core_type = #tpu.core_type<tc>, window_params = [{transform_indices = @transform_0, window_bounds = array<i64: 128, 2000>}, {pipeline_mode = #tpu.pipeline_mode<synchronous>, transform_indices = @transform_1, window_bounds = array<i64: 2000, 400>}, {pipeline_mode = #tpu.pipeline_mode<synchronous>, transform_indices = @transform_2, window_bounds = array<i64: 1, 400>}, {pipeline_mode = #tpu.pipeline_mode<synchronous>, transform_indices = @transform_3, window_bounds = array<i64: 400, 400>}, {pipeline_mode = #tpu.pipeline_mode<synchronous>, transform_indices = @transform_4, window_bounds = array<i64: 1, 400>}, {pipeline_mode = #tpu.pipeline_mode<synchronous>, transform_indices = @transform_5, window_bounds = array<i64: 400, 25>}, {pipeline_mode = #tpu.pipeline_mode<synchronous>, transform_indices = @transform_6, window_bounds = array<i64: 1, 25>}, {pipeline_mode = #tpu.pipeline_mode<synchronous>, transform_indices = @transform_7, window_bounds = array<i64: 1, 25>}, {pipeline_mode = #tpu.pipeline_mode<synchronous>, transform_indices = @transform_8, window_bounds = array<i64: 1, 1>}, {transform_indices = @transform_9, window_bounds = array<i64: 1, 128>}]} {
    %c0 = arith.constant 0 : index
    %c0_0 = arith.constant 0 : index
    %0 = vector.load %arg1[%c0, %c0_0] : memref<128x2000xf32, #tpu.memory_space<vmem>>, vector<128x2000xf32>
    %1 = arith.truncf %0 : vector<128x2000xf32> to vector<128x2000xbf16>
    %c0_1 = arith.constant 0 : index
    %c0_2 = arith.constant 0 : index
    %2 = vector.load %arg2[%c0_1, %c0_2] : memref<2000x400xbf16, #tpu.memory_space<vmem>>, vector<2000x400xbf16>
    %cst = arith.constant dense<0.000000e+00> : vector<128x400xf32>
    %3 = tpu.matmul %1, %2, %cst {dimension_numbers = #tpu.dot_dimension_numbers<[1], [0], [0], [1], [0, 0, 1, 1], [], []>} : vector<128x2000xbf16>, vector<2000x400xbf16>, vector<128x400xf32> -> vector<128x400xf32>
    %c0_3 = arith.constant 0 : index
    %c0_4 = arith.constant 0 : index
    %4 = vector.load %arg3[%c0_3, %c0_4] : memref<1x400xf32, #tpu.memory_space<vmem>>, vector<1x400xf32>
    %5 = vector.broadcast %4 : vector<1x400xf32> to vector<128x400xf32>
    %6 = arith.addf %3, %5 : vector<128x400xf32>
    %cst_5 = arith.constant 0.000000e+00 : f32
    %7 = vector.broadcast %cst_5 : f32 to vector<128x400xf32>
    %8 = arith.maximumf %6, %7 : vector<128x400xf32>
    %9 = arith.truncf %8 : vector<128x400xf32> to vector<128x400xbf16>
    %c0_6 = arith.constant 0 : index
    %c0_7 = arith.constant 0 : index
    %10 = vector.load %arg4[%c0_6, %c0_7] : memref<400x400xbf16, #tpu.memory_space<vmem>>, vector<400x400xbf16>
    %cst_8 = arith.constant dense<0.000000e+00> : vector<128x400xf32>
    %11 = tpu.matmul %9, %10, %cst_8 {dimension_numbers = #tpu.dot_dimension_numbers<[1], [0], [0], [1], [0, 0, 1, 1], [], []>} : vector<128x400xbf16>, vector<400x400xbf16>, vector<128x400xf32> -> vector<128x400xf32>
    %c0_9 = arith.constant 0 : index
    %c0_10 = arith.constant 0 : index
    %12 = vector.load %arg5[%c0_9, %c0_10] : memref<1x400xf32, #tpu.memory_space<vmem>>, vector<1x400xf32>
    %13 = vector.broadcast %12 : vector<1x400xf32> to vector<128x400xf32>
    %14 = arith.addf %11, %13 : vector<128x400xf32>
    %cst_11 = arith.constant 0.000000e+00 : f32
    %15 = vector.broadcast %cst_11 : f32 to vector<128x400xf32>
    %16 = arith.maximumf %14, %15 : vector<128x400xf32>
    %17 = arith.truncf %16 : vector<128x400xf32> to vector<128x400xbf16>
    %c0_12 = arith.constant 0 : index
    %c0_13 = arith.constant 0 : index
    %18 = vector.load %arg6[%c0_12, %c0_13] : memref<400x25xbf16, #tpu.memory_space<vmem>>, vector<400x25xbf16>
    %cst_14 = arith.constant dense<0.000000e+00> : vector<128x25xf32>
    %19 = tpu.matmul %17, %18, %cst_14 {dimension_numbers = #tpu.dot_dimension_numbers<[1], [0], [0], [1], [0, 0, 1, 1], [], []>} : vector<128x400xbf16>, vector<400x25xbf16>, vector<128x25xf32> -> vector<128x25xf32>
    %c0_15 = arith.constant 0 : index
    %c0_16 = arith.constant 0 : index
    %20 = vector.load %arg7[%c0_15, %c0_16] : memref<1x25xf32, #tpu.memory_space<vmem>>, vector<1x25xf32>
    %21 = vector.broadcast %20 : vector<1x25xf32> to vector<128x25xf32>
    %22 = arith.addf %19, %21 : vector<128x25xf32>
    %cst_17 = arith.constant 0.000000e+00 : f32
    %23 = vector.broadcast %cst_17 : f32 to vector<128x25xf32>
    %24 = arith.maximumf %22, %23 : vector<128x25xf32>
    %c0_18 = arith.constant 0 : index
    %c0_19 = arith.constant 0 : index
    %25 = vector.load %arg8[%c0_18, %c0_19] : memref<1x25xf32, #tpu.memory_space<vmem>>, vector<1x25xf32>
    %26 = vector.broadcast %25 : vector<1x25xf32> to vector<128x25xf32>
    %27 = arith.mulf %24, %26 : vector<128x25xf32>
    %cst_20 = arith.constant dense<0.000000e+00> : vector<128xf32>
    %28 = vector.multi_reduction <add>, %27, %cst_20 [1] : vector<128x25xf32> to vector<128xf32>
    %29 = vector.shape_cast %28 : vector<128xf32> to vector<1x128xf32>
    %c0_21 = arith.constant 0 : index
    %c0_22 = arith.constant 0 : index
    %30 = vector.load %arg9[%c0_21, %c0_22] : memref<1x1xf32, #tpu.memory_space<vmem>>, vector<1x1xf32>
    %31 = vector.broadcast %30 : vector<1x1xf32> to vector<1x128xf32>
    %32 = arith.addf %29, %31 : vector<1x128xf32>
    %c0_23 = arith.constant 0 : index
    %c0_24 = arith.constant 0 : index
    %33 = vector.load %arg10[%c0_23, %c0_24] : memref<1x128xf32, #tpu.memory_space<vmem>>, vector<1x128xf32>
    tpu.vector_store %arg10[%c0_23, %c0_24], %32 {strides = array<i32>} : memref<1x128xf32, #tpu.memory_space<vmem>>, vector<1x128xf32>,
    return
  }
  func.func @transform_0(%arg0: i32) -> (i32, i32) {
    %c0_i32 = arith.constant 0 : i32
    %c0_i32_0 = arith.constant 0 : i32
    return %arg0, %c0_i32 : i32, i32
  }
  func.func @transform_1(%arg0: i32) -> (i32, i32) {
    %c0_i32 = arith.constant 0 : i32
    %c0_i32_0 = arith.constant 0 : i32
    %c0_i32_1 = arith.constant 0 : i32
    return %c0_i32, %c0_i32_0 : i32, i32
  }
  func.func @transform_2(%arg0: i32) -> (i32, i32) {
    %c0_i32 = arith.constant 0 : i32
    %c0_i32_0 = arith.constant 0 : i32
    %c0_i32_1 = arith.constant 0 : i32
    return %c0_i32, %c0_i32_0 : i32, i32
  }
  func.func @transform_3(%arg0: i32) -> (i32, i32) {
    %c0_i32 = arith.constant 0 : i32
    %c0_i32_0 = arith.constant 0 : i32
    %c0_i32_1 = arith.constant 0 : i32
    return %c0_i32, %c0_i32_0 : i32, i32
  }
  func.func @transform_4(%arg0: i32) -> (i32, i32) {
    %c0_i32 = arith.constant 0 : i32
    %c0_i32_0 = arith.constant 0 : i32
    %c0_i32_1 = arith.constant 0 : i32
    return %c0_i32, %c0_i32_0 : i32, i32
  }
  func.func @transform_5(%arg0: i32) -> (i32, i32) {
    %c0_i32 = arith.constant 0 : i32
    %c0_i32_0 = arith.constant 0 : i32
    %c0_i32_1 = arith.constant 0 : i32
    return %c0_i32, %c0_i32_0 : i32, i32
  }
  func.func @transform_6(%arg0: i32) -> (i32, i32) {
    %c0_i32 = arith.constant 0 : i32
    %c0_i32_0 = arith.constant 0 : i32
    %c0_i32_1 = arith.constant 0 : i32
    return %c0_i32, %c0_i32_0 : i32, i32
  }
  func.func @transform_7(%arg0: i32) -> (i32, i32) {
    %c0_i32 = arith.constant 0 : i32
    %c0_i32_0 = arith.constant 0 : i32
    %c0_i32_1 = arith.constant 0 : i32
    return %c0_i32, %c0_i32_0 : i32, i32
  }
  func.func @transform_8(%arg0: i32) -> (i32, i32) {
    %c0_i32 = arith.constant 0 : i32
    %c0_i32_0 = arith.constant 0 : i32
    %c0_i32_1 = arith.constant 0 : i32
    return %c0_i32, %c0_i32_0 : i32, i32
  }
  func.func @transform_9(%arg0: i32) -> (i32, i32) {
    %c0_i32 = arith.constant 0 : i32
    %c0_i32_0 = arith.constant 0 : i32
    return %c0_i32, %arg0 : i32, i32
  }
}

</mosaic_0001>

<llo_original>
// kernel: tpu_custom_call.1
$region0: #{tpu_custom_call.1}
  #allocation0 [shape = 'u32[]', space=smem, size = 0x4, offset = 0x4, fixed_abs, tag = 'smem constant byte address 0x4 - core index']
  #allocation1 [shape = 'u32[144,128]{1,0:T(1,128)}', space=vmem, size = 0x12000, scoped, tag = 'internal scratch']
  #allocation2 [shape = 'f32[1,1]{1,0:T(1,128)S(1)}', space=vmem, size = 0x200, scoped, tag = 'scoped memory for tpu_custom_call.1']
  %s0 = inlined_call_operand.vmem [shape: f32[128,2000], index: 0, kind: input, shape index: {}]
  %s1 = inlined_call_operand.vmem [shape: bf16[2000,400], index: 1, kind: input, shape index: {}]
  %s2 = inlined_call_operand.vmem [shape: f32[1,400], index: 2, kind: input, shape index: {}]
  %s3 = inlined_call_operand.vmem [shape: bf16[400,400], index: 3, kind: input, shape index: {}]
  %s4 = inlined_call_operand.vmem [shape: f32[1,400], index: 4, kind: input, shape index: {}]
  %s5 = inlined_call_operand.vmem [shape: bf16[400,25], index: 5, kind: input, shape index: {}]
  %s6 = inlined_call_operand.vmem [shape: f32[1,25], index: 6, kind: input, shape index: {}]
  %s7 = inlined_call_operand.vmem [shape: f32[1,25], index: 7, kind: input, shape index: {}]
  %s8 = inlined_call_operand.<no memory space> [shape: f32[1,1], index: 8, kind: input, shape index: {}]
  %s9 = inlined_call_operand.hbm [shape: f32[1,128], index: 9, kind: output, shape index: {}]
  %s10 = sld [smem:[#allocation0]]
  $region46: #{tpu_custom_call.1} parent=0
    _
  %s12 = ssub.s32 1, %s10
  %s13 = scalar_select 0, %s12, %s10
  %v14 = vstv %s8
  %15 = vst [vmem:[#allocation2] sm:$0x1] %v14
  $region1: #{tpu_custom_call.1} parent=0
    #allocation3 [shape = 'u8[512]{0}', space=vmem, size = 0x400, scoped, tag = 'output window, operand 0, single buffered']
    #allocation4 [shape = 's32[1]{0}', space=sflag, size = 0x4, scoped, tag = 'scoped memory for tpu_custom_call.1']
    %16 = vsyncpa [#allocation4], 0
    // Predicated region
    $region2: #{tpu_custom_call.1} parent=1 // pred_check
      _
    $region3: #{tpu_custom_call.1} parent=1 // pred_check_branch
      %18 = sbr.rel (0) target = $region5
    $region4: #{tpu_custom_call.1} parent=1 // pred_region
      _
    $region5: #{tpu_custom_call.1} parent=1 // pred_fallthru
      _
    // Predicated region
    $region6: #{tpu_custom_call.1} parent=1 // pred_check
      _
    $region7: #{tpu_custom_call.1} parent=1 // pred_check_branch
      %20 = sbr.rel (0) target = $region9
    $region8: #{tpu_custom_call.1} parent=1 // pred_region
      _
    $region9: #{tpu_custom_call.1} parent=1 // pred_fallthru
      _
    // Predicated region
    $region10: #{tpu_custom_call.1} parent=1 // pred_check
      _
    $region11: #{tpu_custom_call.1} parent=1 // pred_check_branch
      %22 = sbr.rel (0) target = $region13
    $region12: #{tpu_custom_call.1} parent=1 // pred_region
      _
    $region13: #{tpu_custom_call.1} parent=1 // pred_fallthru
      _
    // Predicated region
    $region14: #{tpu_custom_call.1} parent=1 // pred_check
      _
    $region15: #{tpu_custom_call.1} parent=1 // pred_check_branch
      %24 = sbr.rel (0) target = $region17
    $region16: #{tpu_custom_call.1} parent=1 // pred_region
      _
    $region17: #{tpu_custom_call.1} parent=1 // pred_fallthru
      _
    // Predicated region
    $region18: #{tpu_custom_call.1} parent=1 // pred_check
      _
    $region19: #{tpu_custom_call.1} parent=1 // pred_check_branch
      %26 = sbr.rel (0) target = $region21
    $region20: #{tpu_custom_call.1} parent=1 // pred_region
      _
    $region21: #{tpu_custom_call.1} parent=1 // pred_fallthru
      _
    // Predicated region
    $region22: #{tpu_custom_call.1} parent=1 // pred_check
      _
    $region23: #{tpu_custom_call.1} parent=1 // pred_check_branch
      %28 = sbr.rel (0) target = $region25
    $region24: #{tpu_custom_call.1} parent=1 // pred_region
      _
    $region25: #{tpu_custom_call.1} parent=1 // pred_fallthru
      _
    // Predicated region
    $region26: #{tpu_custom_call.1} parent=1 // pred_check
      _
    $region27: #{tpu_custom_call.1} parent=1 // pred_check_branch
      %30 = sbr.rel (0) target = $region29
    $region28: #{tpu_custom_call.1} parent=1 // pred_region
      _
    $region29: #{tpu_custom_call.1} parent=1 // pred_fallthru
      _
    // Predicated region
    $region30: #{tpu_custom_call.1} parent=1 // pred_check
      _
    $region31: #{tpu_custom_call.1} parent=1 // pred_check_branch
      %32 = sbr.rel (0) target = $region33
    $region32: #{tpu_custom_call.1} parent=1 // pred_region
      _
    $region33: #{tpu_custom_call.1} parent=1 // pred_fallthru
      _
    // Predicated region
    $region34: #{tpu_custom_call.1} parent=1 // pred_check
      _
    $region35: #{tpu_custom_call.1} parent=1 // pred_check_branch
      %34 = sbr.rel (0) target = $region37
    $region36: #{tpu_custom_call.1} parent=1 // pred_region
      _
    $region37: #{tpu_custom_call.1} parent=1 // pred_fallthru
      _
    %v36 = vld [vmem:[%s0] sm:$0xff]
    %v37 = vld [vmem:[%s0 + $0x8] sm:$0xff]
    %v38 = vld [vmem:[%s0 + $0x10] sm:$0xff]
    %v39 = vld [vmem:[%s0 + $0x18] sm:$0xff]
    %v40 = vld [vmem:[%s0 + $0x20] sm:$0xff]
    %v41 = vld [vmem:[%s0 + $0x28] sm:$0xff]
    %v42 = vld [vmem:[%s0 + $0x30] sm:$0xff]
    %v43 = vld [vmem:[%s0 + $0x38] sm:$0xff]
    %v44 = vld [vmem:[%s0 + $0x40] sm:$0xff]
    %v45 = vld [vmem:[%s0 + $0x48] sm:$0xff]
    %v46 = vld [vmem:[%s0 + $0x50] sm:$0xff]
    %v47 = vld [vmem:[%s0 + $0x58] sm:$0xff]
    %v48 = vld [vmem:[%s0 + $0x60] sm:$0xff]
    %v49 = vld [vmem:[%s0 + $0x68] sm:$0xff]
    %v50 = vld [vmem:[%s0 + $0x70] sm:$0xff]
    %v51 = vld [vmem:[%s0 + $0x78] sm:$0xff]
    %v52 = vld [vmem:[%s0 + $0x80] sm:$0xff]
    %v53 = vld [vmem:[%s0 + $0x88] sm:$0xff]
    %v54 = vld [vmem:[%s0 + $0x90] sm:$0xff]
    %v55 = vld [vmem:[%s0 + $0x98] sm:$0xff]
    %v56 = vld [vmem:[%s0 + $0xa0] sm:$0xff]
    %v57 = vld [vmem:[%s0 + $0xa8] sm:$0xff]
    %v58 = vld [vmem:[%s0 + $0xb0] sm:$0xff]
    %v59 = vld [vmem:[%s0 + $0xb8] sm:$0xff]
    %v60 = vld [vmem:[%s0 + $0xc0] sm:$0xff]
    %v61 = vld [vmem:[%s0 + $0xc8] sm:$0xff]
    %v62 = vld [vmem:[%s0 + $0xd0] sm:$0xff]
    %v63 = vld [vmem:[%s0 + $0xd8] sm:$0xff]
    %v64 = vld [vmem:[%s0 + $0xe0] sm:$0xff]
    %v65 = vld [vmem:[%s0 + $0xe8] sm:$0xff]
    %v66 = vld [vmem:[%s0 + $0xf0] sm:$0xff]
    %v67 = vld [vmem:[%s0 + $0xf8] sm:$0xff]
    %v68 = vld [vmem:[%s0 + $0x100] sm:$0xff]
    %v69 = vld [vmem:[%s0 + $0x108] sm:$0xff]
    %v70 = vld [vmem:[%s0 + $0x110] sm:$0xff]
    %v71 = vld [vmem:[%s0 + $0x118] sm:$0xff]
    %v72 = vld [vmem:[%s0 + $0x120] sm:$0xff]
    %v73 = vld [vmem:[%s0 + $0x128] sm:$0xff]
    %v74 = vld [vmem:[%s0 + $0x130] sm:$0xff]
    %v75 = vld [vmem:[%s0 + $0x138] sm:$0xff]
    %v76 = vld [vmem:[%s0 + $0x140] sm:$0xff]
    %v77 = vld [vmem:[%s0 + $0x148] sm:$0xff]
    %v78 = vld [vmem:[%s0 + $0x150] sm:$0xff]
    %v79 = vld [vmem:[%s0 + $0x158] sm:$0xff]
    %v80 = vld [vmem:[%s0 + $0x160] sm:$0xff]
    %v81 = vld [vmem:[%s0 + $0x168] sm:$0xff]
    %v82 = vld [vmem:[%s0 + $0x170] sm:$0xff]
    %v83 = vld [vmem:[%s0 + $0x178] sm:$0xff]
    %v84 = vld [vmem:[%s0 + $0x180] sm:$0xff]
    %v85 = vld [vmem:[%s0 + $0x188] sm:$0xff]
    %v86 = vld [vmem:[%s0 + $0x190] sm:$0xff]
    %v87 = vld [vmem:[%s0 + $0x198] sm:$0xff]
    %v88 = vld [vmem:[%s0 + $0x1a0] sm:$0xff]
    %v89 = vld [vmem:[%s0 + $0x1a8] sm:$0xff]
    %v90 = vld [vmem:[%s0 + $0x1b0] sm:$0xff]
    %v91 = vld [vmem:[%s0 + $0x1b8] sm:$0xff]
    %v92 = vld [vmem:[%s0 + $0x1c0] sm:$0xff]
    %v93 = vld [vmem:[%s0 + $0x1c8] sm:$0xff]
    %v94 = vld [vmem:[%s0 + $0x1d0] sm:$0xff]
    %v95 = vld [vmem:[%s0 + $0x1d8] sm:$0xff]
    %v96 = vld [vmem:[%s0 + $0x1e0] sm:$0xff]
    %v97 = vld [vmem:[%s0 + $0x1e8] sm:$0xff]
    %v98 = vld [vmem:[%s0 + $0x1f0] sm:$0xff]
    %v99 = vld [vmem:[%s0 + $0x1f8] sm:$0xff]
    %v100 = vld [vmem:[%s0 + $0x200] sm:$0xff]
    %v101 = vld [vmem:[%s0 + $0x208] sm:$0xff]
    %v102 = vld [vmem:[%s0 + $0x210] sm:$0xff]
    %v103 = vld [vmem:[%s0 + $0x218] sm:$0xff]
    %v104 = vld [vmem:[%s0 + $0x220] sm:$0xff]
    %v105 = vld [vmem:[%s0 + $0x228] sm:$0xff]
    %v106 = vld [vmem:[%s0 + $0x230] sm:$0xff]
    %v107 = vld [vmem:[%s0 + $0x238] sm:$0xff]
    %v108 = vld [vmem:[%s0 + $0x240] sm:$0xff]
    %v109 = vld [vmem:[%s0 + $0x248] sm:$0xff]
    %v110 = vld [vmem:[%s0 + $0x250] sm:$0xff]
    %v111 = vld [vmem:[%s0 + $0x258] sm:$0xff]
    %v112 = vld [vmem:[%s0 + $0x260] sm:$0xff]
    %v113 = vld [vmem:[%s0 + $0x268] sm:$0xff]
    %v114 = vld [vmem:[%s0 + $0x270] sm:$0xff]
    %v115 = vld [vmem:[%s0 + $0x278] sm:$0xff]
    %v116 = vld [vmem:[%s0 + $0x280] sm:$0xff]
    %v117 = vld [vmem:[%s0 + $0x288] sm:$0xff]
    %v118 = vld [vmem:[%s0 + $0x290] sm:$0xff]
    %v119 = vld [vmem:[%s0 + $0x298] sm:$0xff]
    %v120 = vld [vmem:[%s0 + $0x2a0] sm:$0xff]
    %v121 = vld [vmem:[%s0 + $0x2a8] sm:$0xff]
    %v122 = vld [vmem:[%s0 + $0x2b0] sm:$0xff]
    %v123 = vld [vmem:[%s0 + $0x2b8] sm:$0xff]
    %v124 = vld [vmem:[%s0 + $0x2c0] sm:$0xff]
    %v125 = vld [vmem:[%s0 + $0x2c8] sm:$0xff]
    %v126 = vld [vmem:[%s0 + $0x2d0] sm:$0xff]
    %v127 = vld [vmem:[%s0 + $0x2d8] sm:$0xff]
    %v128 = vld [vmem:[%s0 + $0x2e0] sm:$0xff]
    %v129 = vld [vmem:[%s0 + $0x2e8] sm:$0xff]
    %v130 = vld [vmem:[%s0 + $0x2f0] sm:$0xff]
    %v131 = vld [vmem:[%s0 + $0x2f8] sm:$0xff]
    %v132 = vld [vmem:[%s0 + $0x300] sm:$0xff]
    %v133 = vld [vmem:[%s0 + $0x308] sm:$0xff]
    %v134 = vld [vmem:[%s0 + $0x310] sm:$0xff]
    %v135 = vld [vmem:[%s0 + $0x318] sm:$0xff]
    %v136 = vld [vmem:[%s0 + $0x320] sm:$0xff]
    %v137 = vld [vmem:[%s0 + $0x328] sm:$0xff]
    %v138 = vld [vmem:[%s0 + $0x330] sm:$0xff]
    %v139 = vld [vmem:[%s0 + $0x338] sm:$0xff]
    %v140 = vld [vmem:[%s0 + $0x340] sm:$0xff]
    %v141 = vld [vmem:[%s0 + $0x348] sm:$0xff]
    %v142 = vld [vmem:[%s0 + $0x350] sm:$0xff]
    %v143 = vld [vmem:[%s0 + $0x358] sm:$0xff]
    %v144 = vld [vmem:[%s0 + $0x360] sm:$0xff]
    %v145 = vld [vmem:[%s0 + $0x368] sm:$0xff]
    %v146 = vld [vmem:[%s0 + $0x370] sm:$0xff]
    %v147 = vld [vmem:[%s0 + $0x378] sm:$0xff]
    %v148 = vld [vmem:[%s0 + $0x380] sm:$0xff]
    %v149 = vld [vmem:[%s0 + $0x388] sm:$0xff]
    %v150 = vld [vmem:[%s0 + $0x390] sm:$0xff]
    %v151 = vld [vmem:[%s0 + $0x398] sm:$0xff]
    %v152 = vld [vmem:[%s0 + $0x3a0] sm:$0xff]
    %v153 = vld [vmem:[%s0 + $0x3a8] sm:$0xff]
    %v154 = vld [vmem:[%s0 + $0x3b0] sm:$0xff]
    %v155 = vld [vmem:[%s0 + $0x3b8] sm:$0xff]
    %v156 = vld [vmem:[%s0 + $0x3c0] sm:$0xff]
    %v157 = vld [vmem:[%s0 + $0x3c8] sm:$0xff]
    %v158 = vld [vmem:[%s0 + $0x3d0] sm:$0xff]
    %v159 = vld [vmem:[%s0 + $0x3d8] sm:$0xff]
    %v160 = vld [vmem:[%s0 + $0x3e0] sm:$0xff]
    %v161 = vld [vmem:[%s0 + $0x3e8] sm:$0xff]
    %v162 = vld [vmem:[%s0 + $0x3f0] sm:$0xff]
    %v163 = vld [vmem:[%s0 + $0x3f8] sm:$0xff]
    %v164 = vld [vmem:[%s0 + $0x400] sm:$0xff]
    %v165 = vld [vmem:[%s0 + $0x408] sm:$0xff]
    %v166 = vld [vmem:[%s0 + $0x410] sm:$0xff]
    %v167 = vld [vmem:[%s0 + $0x418] sm:$0xff]
    %v168 = vld [vmem:[%s0 + $0x420] sm:$0xff]
    %v169 = vld [vmem:[%s0 + $0x428] sm:$0xff]
    %v170 = vld [vmem:[%s0 + $0x430] sm:$0xff]
    %v171 = vld [vmem:[%s0 + $0x438] sm:$0xff]
    %v172 = vld [vmem:[%s0 + $0x440] sm:$0xff]
    %v173 = vld [vmem:[%s0 + $0x448] sm:$0xff]
    %v174 = vld [vmem:[%s0 + $0x450] sm:$0xff]
    %v175 = vld [vmem:[%s0 + $0x458] sm:$0xff]
    %v176 = vld [vmem:[%s0 + $0x460] sm:$0xff]
    %v177 = vld [vmem:[%s0 + $0x468] sm:$0xff]
    %v178 = vld [vmem:[%s0 + $0x470] sm:$0xff]
    %v179 = vld [vmem:[%s0 + $0x478] sm:$0xff]
    %v180 = vld [vmem:[%s0 + $0x480] sm:$0xff]
    %v181 = vld [vmem:[%s0 + $0x488] sm:$0xff]
    %v182 = vld [vmem:[%s0 + $0x490] sm:$0xff]
    %v183 = vld [vmem:[%s0 + $0x498] sm:$0xff]
    %v184 = vld [vmem:[%s0 + $0x4a0] sm:$0xff]
    %v185 = vld [vmem:[%s0 + $0x4a8] sm:$0xff]
    %v186 = vld [vmem:[%s0 + $0x4b0] sm:$0xff]
    %v187 = vld [vmem:[%s0 + $0x4b8] sm:$0xff]
    %v188 = vld [vmem:[%s0 + $0x4c0] sm:$0xff]
    %v189 = vld [vmem:[%s0 + $0x4c8] sm:$0xff]
    %v190 = vld [vmem:[%s0 + $0x4d0] sm:$0xff]
    %v191 = vld [vmem:[%s0 + $0x4d8] sm:$0xff]
    %v192 = vld [vmem:[%s0 + $0x4e0] sm:$0xff]
    %v193 = vld [vmem:[%s0 + $0x4e8] sm:$0xff]
    %v194 = vld [vmem:[%s0 + $0x4f0] sm:$0xff]
    %v195 = vld [vmem:[%s0 + $0x4f8] sm:$0xff]
    %v196 = vld [vmem:[%s0 + $0x500] sm:$0xff]
    %v197 = vld [vmem:[%s0 + $0x508] sm:$0xff]
    %v198 = vld [vmem:[%s0 + $0x510] sm:$0xff]
    %v199 = vld [vmem:[%s0 + $0x518] sm:$0xff]
    %v200 = vld [vmem:[%s0 + $0x520] sm:$0xff]
    %v201 = vld [vmem:[%s0 + $0x528] sm:$0xff]
    %v202 = vld [vmem:[%s0 + $0x530] sm:$0xff]
    %v203 = vld [vmem:[%s0 + $0x538] sm:$0xff]
    %v204 = vld [vmem:[%s0 + $0x540] sm:$0xff]
    %v205 = vld [vmem:[%s0 + $0x548] sm:$0xff]
    %v206 = vld [vmem:[%s0 + $0x550] sm:$0xff]
    %v207 = vld [vmem:[%s0 + $0x558] sm:$0xff]
    %v208 = vld [vmem:[%s0 + $0x560] sm:$0xff]
    %v209 = vld [vmem:[%s0 + $0x568] sm:$0xff]
    %v210 = vld [vmem:[%s0 + $0x570] sm:$0xff]
    %v211 = vld [vmem:[%s0 + $0x578] sm:$0xff]
    %v212 = vld [vmem:[%s0 + $0x580] sm:$0xff]
    %v213 = vld [vmem:[%s0 + $0x588] sm:$0xff]
    %v214 = vld [vmem:[%s0 + $0x590] sm:$0xff]
    %v215 = vld [vmem:[%s0 + $0x598] sm:$0xff]
    %v216 = vld [vmem:[%s0 + $0x5a0] sm:$0xff]
    %v217 = vld [vmem:[%s0 + $0x5a8] sm:$0xff]
    %v218 = vld [vmem:[%s0 + $0x5b0] sm:$0xff]
    %v219 = vld [vmem:[%s0 + $0x5b8] sm:$0xff]
    %v220 = vld [vmem:[%s0 + $0x5c0] sm:$0xff]
    %v221 = vld [vmem:[%s0 + $0x5c8] sm:$0xff]
    %v222 = vld [vmem:[%s0 + $0x5d0] sm:$0xff]
    %v223 = vld [vmem:[%s0 + $0x5d8] sm:$0xff]
    %v224 = vld [vmem:[%s0 + $0x5e0] sm:$0xff]
    %v225 = vld [vmem:[%s0 + $0x5e8] sm:$0xff]
    %v226 = vld [vmem:[%s0 + $0x5f0] sm:$0xff]
    %v227 = vld [vmem:[%s0 + $0x5f8] sm:$0xff]
    %v228 = vld [vmem:[%s0 + $0x600] sm:$0xff]
    %v229 = vld [vmem:[%s0 + $0x608] sm:$0xff]
    %v230 = vld [vmem:[%s0 + $0x610] sm:$0xff]
    %v231 = vld [vmem:[%s0 + $0x618] sm:$0xff]
    %v232 = vld [vmem:[%s0 + $0x620] sm:$0xff]
    %v233 = vld [vmem:[%s0 + $0x628] sm:$0xff]
    %v234 = vld [vmem:[%s0 + $0x630] sm:$0xff]
    %v235 = vld [vmem:[%s0 + $0x638] sm:$0xff]
    %v236 = vld [vmem:[%s0 + $0x640] sm:$0xff]
    %v237 = vld [vmem:[%s0 + $0x648] sm:$0xff]
    %v238 = vld [vmem:[%s0 + $0x650] sm:$0xff]
    %v239 = vld [vmem:[%s0 + $0x658] sm:$0xff]
    %v240 = vld [vmem:[%s0 + $0x660] sm:$0xff]
    %v241 = vld [vmem:[%s0 + $0x668] sm:$0xff]
    %v242 = vld [vmem:[%s0 + $0x670] sm:$0xff]
    %v243 = vld [vmem:[%s0 + $0x678] sm:$0xff]
    %v244 = vld [vmem:[%s0 + $0x680] sm:$0xff]
    %v245 = vld [vmem:[%s0 + $0x688] sm:$0xff]
    %v246 = vld [vmem:[%s0 + $0x690] sm:$0xff]
    %v247 = vld [vmem:[%s0 + $0x698] sm:$0xff]
    %v248 = vld [vmem:[%s0 + $0x6a0] sm:$0xff]
    %v249 = vld [vmem:[%s0 + $0x6a8] sm:$0xff]
    %v250 = vld [vmem:[%s0 + $0x6b0] sm:$0xff]
    %v251 = vld [vmem:[%s0 + $0x6b8] sm:$0xff]
    %v252 = vld [vmem:[%s0 + $0x6c0] sm:$0xff]
    %v253 = vld [vmem:[%s0 + $0x6c8] sm:$0xff]
    %v254 = vld [vmem:[%s0 + $0x6d0] sm:$0xff]
    %v255 = vld [vmem:[%s0 + $0x6d8] sm:$0xff]
    %v256 = vld [vmem:[%s0 + $0x6e0] sm:$0xff]
    %v257 = vld [vmem:[%s0 + $0x6e8] sm:$0xff]
    %v258 = vld [vmem:[%s0 + $0x6f0] sm:$0xff]
    %v259 = vld [vmem:[%s0 + $0x6f8] sm:$0xff]
    %v260 = vld [vmem:[%s0 + $0x700] sm:$0xff]
    %v261 = vld [vmem:[%s0 + $0x708] sm:$0xff]
    %v262 = vld [vmem:[%s0 + $0x710] sm:$0xff]
    %v263 = vld [vmem:[%s0 + $0x718] sm:$0xff]
    %v264 = vld [vmem:[%s0 + $0x720] sm:$0xff]
    %v265 = vld [vmem:[%s0 + $0x728] sm:$0xff]
    %v266 = vld [vmem:[%s0 + $0x730] sm:$0xff]
    %v267 = vld [vmem:[%s0 + $0x738] sm:$0xff]
    %v268 = vld [vmem:[%s0 + $0x740] sm:$0xff]
    %v269 = vld [vmem:[%s0 + $0x748] sm:$0xff]
    %v270 = vld [vmem:[%s0 + $0x750] sm:$0xff]
    %v271 = vld [vmem:[%s0 + $0x758] sm:$0xff]
    %v272 = vld [vmem:[%s0 + $0x760] sm:$0xff]
    %v273 = vld [vmem:[%s0 + $0x768] sm:$0xff]
    %v274 = vld [vmem:[%s0 + $0x770] sm:$0xff]
    %v275 = vld [vmem:[%s0 + $0x778] sm:$0xff]
    %v276 = vld [vmem:[%s0 + $0x780] sm:$0xff]
    %v277 = vld [vmem:[%s0 + $0x788] sm:$0xff]
    %v278 = vld [vmem:[%s0 + $0x790] sm:$0xff]
    %v279 = vld [vmem:[%s0 + $0x798] sm:$0xff]
    %v280 = vld [vmem:[%s0 + $0x7a0] sm:$0xff]
    %v281 = vld [vmem:[%s0 + $0x7a8] sm:$0xff]
    %v282 = vld [vmem:[%s0 + $0x7b0] sm:$0xff]
    %v283 = vld [vmem:[%s0 + $0x7b8] sm:$0xff]
    %v284 = vld [vmem:[%s0 + $0x7c0] sm:$0xff]
    %v285 = vld [vmem:[%s0 + $0x7c8] sm:$0xff]
    %v286 = vld [vmem:[%s0 + $0x7d0] sm:$0xff]
    %v287 = vld [vmem:[%s0 + $0x7d8] sm:$0xff]
    %v288 = vld [vmem:[%s0 + $0x7e0] sm:$0xff]
    %v289 = vld [vmem:[%s0 + $0x7e8] sm:$0xff]
    %v290 = vld [vmem:[%s0 + $0x7f0] sm:$0xff]
    %v291 = vld [vmem:[%s0 + $0x7f8] sm:$0xff]
    %v292 = vpack.c.bf16 %v52, %v36
    %v293 = vpack.c.bf16 %v53, %v37
    %v294 = vpack.c.bf16 %v54, %v38
    %v295 = vpack.c.bf16 %v55, %v39
    %v296 = vpack.c.bf16 %v56, %v40
    %v297 = vpack.c.bf16 %v57, %v41
    %v298 = vpack.c.bf16 %v58, %v42
    %v299 = vpack.c.bf16 %v59, %v43
    %v300 = vpack.c.bf16 %v60, %v44
    %v301 = vpack.c.bf16 %v61, %v45
    %v302 = vpack.c.bf16 %v62, %v46
    %v303 = vpack.c.bf16 %v63, %v47
    %v304 = vpack.c.bf16 %v64, %v48
    %v305 = vpack.c.bf16 %v65, %v49
    %v306 = vpack.c.bf16 %v66, %v50
    %v307 = vpack.c.bf16 %v67, %v51
    %v308 = vpack.c.bf16 %v84, %v68
    %v309 = vpack.c.bf16 %v85, %v69
    %v310 = vpack.c.bf16 %v86, %v70
    %v311 = vpack.c.bf16 %v87, %v71
    %v312 = vpack.c.bf16 %v88, %v72
    %v313 = vpack.c.bf16 %v89, %v73
    %v314 = vpack.c.bf16 %v90, %v74
    %v315 = vpack.c.bf16 %v91, %v75
    %v316 = vpack.c.bf16 %v92, %v76
    %v317 = vpack.c.bf16 %v93, %v77
    %v318 = vpack.c.bf16 %v94, %v78
    %v319 = vpack.c.bf16 %v95, %v79
    %v320 = vpack.c.bf16 %v96, %v80
    %v321 = vpack.c.bf16 %v97, %v81
    %v322 = vpack.c.bf16 %v98, %v82
    %v323 = vpack.c.bf16 %v99, %v83
    %v324 = vpack.c.bf16 %v116, %v100
    %v325 = vpack.c.bf16 %v117, %v101
    %v326 = vpack.c.bf16 %v118, %v102
    %v327 = vpack.c.bf16 %v119, %v103
    %v328 = vpack.c.bf16 %v120, %v104
    %v329 = vpack.c.bf16 %v121, %v105
    %v330 = vpack.c.bf16 %v122, %v106
    %v331 = vpack.c.bf16 %v123, %v107
    %v332 = vpack.c.bf16 %v124, %v108
    %v333 = vpack.c.bf16 %v125, %v109
    %v334 = vpack.c.bf16 %v126, %v110
    %v335 = vpack.c.bf16 %v127, %v111
    %v336 = vpack.c.bf16 %v128, %v112
    %v337 = vpack.c.bf16 %v129, %v113
    %v338 = vpack.c.bf16 %v130, %v114
    %v339 = vpack.c.bf16 %v131, %v115
    %v340 = vpack.c.bf16 %v148, %v132
    %v341 = vpack.c.bf16 %v149, %v133
    %v342 = vpack.c.bf16 %v150, %v134
    %v343 = vpack.c.bf16 %v151, %v135
    %v344 = vpack.c.bf16 %v152, %v136
    %v345 = vpack.c.bf16 %v153, %v137
    %v346 = vpack.c.bf16 %v154, %v138
    %v347 = vpack.c.bf16 %v155, %v139
    %v348 = vpack.c.bf16 %v156, %v140
    %v349 = vpack.c.bf16 %v157, %v141
    %v350 = vpack.c.bf16 %v158, %v142
    %v351 = vpack.c.bf16 %v159, %v143
    %v352 = vpack.c.bf16 %v160, %v144
    %v353 = vpack.c.bf16 %v161, %v145
    %v354 = vpack.c.bf16 %v162, %v146
    %v355 = vpack.c.bf16 %v163, %v147
    %v356 = vpack.c.bf16 %v180, %v164
    %v357 = vpack.c.bf16 %v181, %v165
    %v358 = vpack.c.bf16 %v182, %v166
    %v359 = vpack.c.bf16 %v183, %v167
    %v360 = vpack.c.bf16 %v184, %v168
    %v361 = vpack.c.bf16 %v185, %v169
    %v362 = vpack.c.bf16 %v186, %v170
    %v363 = vpack.c.bf16 %v187, %v171
    %v364 = vpack.c.bf16 %v188, %v172
    %v365 = vpack.c.bf16 %v189, %v173
    %v366 = vpack.c.bf16 %v190, %v174
    %v367 = vpack.c.bf16 %v191, %v175
    %v368 = vpack.c.bf16 %v192, %v176
    %v369 = vpack.c.bf16 %v193, %v177
    %v370 = vpack.c.bf16 %v194, %v178
    %v371 = vpack.c.bf16 %v195, %v179
    %v372 = vpack.c.bf16 %v212, %v196
    %v373 = vpack.c.bf16 %v213, %v197
    %v374 = vpack.c.bf16 %v214, %v198
    %v375 = vpack.c.bf16 %v215, %v199
    %v376 = vpack.c.bf16 %v216, %v200
    %v377 = vpack.c.bf16 %v217, %v201
    %v378 = vpack.c.bf16 %v218, %v202
    %v379 = vpack.c.bf16 %v219, %v203
    %v380 = vpack.c.bf16 %v220, %v204
    %v381 = vpack.c.bf16 %v221, %v205
    %v382 = vpack.c.bf16 %v222, %v206
    %v383 = vpack.c.bf16 %v223, %v207
    %v384 = vpack.c.bf16 %v224, %v208
    %v385 = vpack.c.bf16 %v225, %v209
    %v386 = vpack.c.bf16 %v226, %v210
    %v387 = vpack.c.bf16 %v227, %v211
    %v388 = vpack.c.bf16 %v244, %v228
    %v389 = vpack.c.bf16 %v245, %v229
    %v390 = vpack.c.bf16 %v246, %v230
    %v391 = vpack.c.bf16 %v247, %v231
    %v392 = vpack.c.bf16 %v248, %v232
    %v393 = vpack.c.bf16 %v249, %v233
    %v394 = vpack.c.bf16 %v250, %v234
    %v395 = vpack.c.bf16 %v251, %v235
    %v396 = vpack.c.bf16 %v252, %v236
    %v397 = vpack.c.bf16 %v253, %v237
    %v398 = vpack.c.bf16 %v254, %v238
    %v399 = vpack.c.bf16 %v255, %v239
    %v400 = vpack.c.bf16 %v256, %v240
    %v401 = vpack.c.bf16 %v257, %v241
    %v402 = vpack.c.bf16 %v258, %v242
    %v403 = vpack.c.bf16 %v259, %v243
    %v404 = vpack.c.bf16 %v276, %v260
    %v405 = vpack.c.bf16 %v277, %v261
    %v406 = vpack.c.bf16 %v278, %v262
    %v407 = vpack.c.bf16 %v279, %v263
    %v408 = vpack.c.bf16 %v280, %v264
    %v409 = vpack.c.bf16 %v281, %v265
    %v410 = vpack.c.bf16 %v282, %v266
    %v411 = vpack.c.bf16 %v283, %v267
    %v412 = vpack.c.bf16 %v284, %v268
    %v413 = vpack.c.bf16 %v285, %v269
    %v414 = vpack.c.bf16 %v286, %v270
    %v415 = vpack.c.bf16 %v287, %v271
    %v416 = vpack.c.bf16 %v288, %v272
    %v417 = vpack.c.bf16 %v289, %v273
    %v418 = vpack.c.bf16 %v290, %v274
    %v419 = vpack.c.bf16 %v291, %v275
    %v420 = vld [vmem:[%s1] sm:$0xff]
    %v421 = vld [vmem:[%s1 + $0x8] sm:$0xff]
    %v422 = vld [vmem:[%s1 + $0x10] sm:$0xff]
    %v423 = vld [vmem:[%s1 + $0x18] sm:$0xff]
    %v424 = vld [vmem:[%s1 + $0x20] sm:$0xff]
    %v425 = vld [vmem:[%s1 + $0x28] sm:$0xff]
    %v426 = vld [vmem:[%s1 + $0x30] sm:$0xff]
    %v427 = vld [vmem:[%s1 + $0x38] sm:$0xff]
    %v428 = vld [vmem:[%s1 + $0x40] sm:$0xff]
    %v429 = vld [vmem:[%s1 + $0x48] sm:$0xff]
    %v430 = vld [vmem:[%s1 + $0x50] sm:$0xff]
    %v431 = vld [vmem:[%s1 + $0x58] sm:$0xff]
    %v432 = vld [vmem:[%s1 + $0x60] sm:$0xff]
    %v433 = vld [vmem:[%s1 + $0x68] sm:$0xff]
    %v434 = vld [vmem:[%s1 + $0x70] sm:$0xff]
    %v435 = vld [vmem:[%s1 + $0x78] sm:$0xff]
    %v436 = vld [vmem:[%s1 + $0x80] sm:$0xff]
    %v437 = vld [vmem:[%s1 + $0x88] sm:$0xff]
    %v438 = vld [vmem:[%s1 + $0x90] sm:$0xff]
    %v439 = vld [vmem:[%s1 + $0x98] sm:$0xff]
    %v440 = vld [vmem:[%s1 + $0xa0] sm:$0xff]
    %v441 = vld [vmem:[%s1 + $0xa8] sm:$0xff]
    %v442 = vld [vmem:[%s1 + $0xb0] sm:$0xff]
    %v443 = vld [vmem:[%s1 + $0xb8] sm:$0xff]
    %v444 = vld [vmem:[%s1 + $0xc0] sm:$0xff]
    %v445 = vld [vmem:[%s1 + $0xc8] sm:$0xff]
    %v446 = vld [vmem:[%s1 + $0xd0] sm:$0xff]
    %v447 = vld [vmem:[%s1 + $0xd8] sm:$0xff]
    %v448 = vld [vmem:[%s1 + $0xe0] sm:$0xff]
    %v449 = vld [vmem:[%s1 + $0xe8] sm:$0xff]
    %v450 = vld [vmem:[%s1 + $0xf0] sm:$0xff]
    %v451 = vld [vmem:[%s1 + $0xf8] sm:$0xff]
    %v452 = vld [vmem:[%s1 + $0x100] sm:$0xff]
    %v453 = vld [vmem:[%s1 + $0x108] sm:$0xff]
    %v454 = vld [vmem:[%s1 + $0x110] sm:$0xff]
    %v455 = vld [vmem:[%s1 + $0x118] sm:$0xff]
    %v456 = vld [vmem:[%s1 + $0x120] sm:$0xff]
    %v457 = vld [vmem:[%s1 + $0x128] sm:$0xff]
    %v458 = vld [vmem:[%s1 + $0x130] sm:$0xff]
    %v459 = vld [vmem:[%s1 + $0x138] sm:$0xff]
    %v460 = vld [vmem:[%s1 + $0x140] sm:$0xff]
    %v461 = vld [vmem:[%s1 + $0x148] sm:$0xff]
    %v462 = vld [vmem:[%s1 + $0x150] sm:$0xff]
    %v463 = vld [vmem:[%s1 + $0x158] sm:$0xff]
    %v464 = vld [vmem:[%s1 + $0x160] sm:$0xff]
    %v465 = vld [vmem:[%s1 + $0x168] sm:$0xff]
    %v466 = vld [vmem:[%s1 + $0x170] sm:$0xff]
    %v467 = vld [vmem:[%s1 + $0x178] sm:$0xff]
    %v468 = vld [vmem:[%s1 + $0x180] sm:$0xff]
    %v469 = vld [vmem:[%s1 + $0x188] sm:$0xff]
    %v470 = vld [vmem:[%s1 + $0x190] sm:$0xff]
    %v471 = vld [vmem:[%s1 + $0x198] sm:$0xff]
    %v472 = vld [vmem:[%s1 + $0x1a0] sm:$0xff]
    %v473 = vld [vmem:[%s1 + $0x1a8] sm:$0xff]
    %v474 = vld [vmem:[%s1 + $0x1b0] sm:$0xff]
    %v475 = vld [vmem:[%s1 + $0x1b8] sm:$0xff]
    %v476 = vld [vmem:[%s1 + $0x1c0] sm:$0xff]
    %v477 = vld [vmem:[%s1 + $0x1c8] sm:$0xff]
    %v478 = vld [vmem:[%s1 + $0x1d0] sm:$0xff]
    %v479 = vld [vmem:[%s1 + $0x1d8] sm:$0xff]
    %v480 = vld [vmem:[%s1 + $0x1e0] sm:$0xff]
    %v481 = vld [vmem:[%s1 + $0x1e8] sm:$0xff]
    %v482 = vld [vmem:[%s1 + $0x1f0] sm:$0xff]
    %v483 = vld [vmem:[%s1 + $0x1f8] sm:$0xff]
    %v484 = vld [vmem:[%s1 + $0x200] sm:$0xff]
    %v485 = vld [vmem:[%s1 + $0x208] sm:$0xff]
    %v486 = vld [vmem:[%s1 + $0x210] sm:$0xff]
    %v487 = vld [vmem:[%s1 + $0x218] sm:$0xff]
    %v488 = vld [vmem:[%s1 + $0x220] sm:$0xff]
    %v489 = vld [vmem:[%s1 + $0x228] sm:$0xff]
    %v490 = vld [vmem:[%s1 + $0x230] sm:$0xff]
    %v491 = vld [vmem:[%s1 + $0x238] sm:$0xff]
    %v492 = vld [vmem:[%s1 + $0x240] sm:$0xff]
    %v493 = vld [vmem:[%s1 + $0x248] sm:$0xff]
    %v494 = vld [vmem:[%s1 + $0x250] sm:$0xff]
    %v495 = vld [vmem:[%s1 + $0x258] sm:$0xff]
    %v496 = vld [vmem:[%s1 + $0x260] sm:$0xff]
    %v497 = vld [vmem:[%s1 + $0x268] sm:$0xff]
    %v498 = vld [vmem:[%s1 + $0x270] sm:$0xff]
    %v499 = vld [vmem:[%s1 + $0x278] sm:$0xff]
    %v500 = vld [vmem:[%s1 + $0x280] sm:$0xff]
    %v501 = vld [vmem:[%s1 + $0x288] sm:$0xff]
    %v502 = vld [vmem:[%s1 + $0x290] sm:$0xff]
    %v503 = vld [vmem:[%s1 + $0x298] sm:$0xff]
    %v504 = vld [vmem:[%s1 + $0x2a0] sm:$0xff]
    %v505 = vld [vmem:[%s1 + $0x2a8] sm:$0xff]
    %v506 = vld [vmem:[%s1 + $0x2b0] sm:$0xff]
    %v507 = vld [vmem:[%s1 + $0x2b8] sm:$0xff]
    %v508 = vld [vmem:[%s1 + $0x2c0] sm:$0xff]
    %v509 = vld [vmem:[%s1 + $0x2c8] sm:$0xff]
    %v510 = vld [vmem:[%s1 + $0x2d0] sm:$0xff]
    %v511 = vld [vmem:[%s1 + $0x2d8] sm:$0xff]
    %v512 = vld [vmem:[%s1 + $0x2e0] sm:$0xff]
    %v513 = vld [vmem:[%s1 + $0x2e8] sm:$0xff]
    %v514 = vld [vmem:[%s1 + $0x2f0] sm:$0xff]
    %v515 = vld [vmem:[%s1 + $0x2f8] sm:$0xff]
    %v516 = vld [vmem:[%s1 + $0x300] sm:$0xff]
    %v517 = vld [vmem:[%s1 + $0x308] sm:$0xff]
    %v518 = vld [vmem:[%s1 + $0x310] sm:$0xff]
    %v519 = vld [vmem:[%s1 + $0x318] sm:$0xff]
    %v520 = vld [vmem:[%s1 + $0x320] sm:$0xff]
    %v521 = vld [vmem:[%s1 + $0x328] sm:$0xff]
    %v522 = vld [vmem:[%s1 + $0x330] sm:$0xff]
    %v523 = vld [vmem:[%s1 + $0x338] sm:$0xff]
    %v524 = vld [vmem:[%s1 + $0x340] sm:$0xff]
    %v525 = vld [vmem:[%s1 + $0x348] sm:$0xff]
    %v526 = vld [vmem:[%s1 + $0x350] sm:$0xff]
    %v527 = vld [vmem:[%s1 + $0x358] sm:$0xff]
    %v528 = vld [vmem:[%s1 + $0x360] sm:$0xff]
    %v529 = vld [vmem:[%s1 + $0x368] sm:$0xff]
    %v530 = vld [vmem:[%s1 + $0x370] sm:$0xff]
    %v531 = vld [vmem:[%s1 + $0x378] sm:$0xff]
    %v532 = vld [vmem:[%s1 + $0x380] sm:$0xff]
    %v533 = vld [vmem:[%s1 + $0x388] sm:$0xff]
    %v534 = vld [vmem:[%s1 + $0x390] sm:$0xff]
    %v535 = vld [vmem:[%s1 + $0x398] sm:$0xff]
    %v536 = vld [vmem:[%s1 + $0x3a0] sm:$0xff]
    %v537 = vld [vmem:[%s1 + $0x3a8] sm:$0xff]
    %v538 = vld [vmem:[%s1 + $0x3b0] sm:$0xff]
    %v539 = vld [vmem:[%s1 + $0x3b8] sm:$0xff]
    %v540 = vld [vmem:[%s1 + $0x3c0] sm:$0xff]
    %v541 = vld [vmem:[%s1 + $0x3c8] sm:$0xff]
    %v542 = vld [vmem:[%s1 + $0x3d0] sm:$0xff]
    %v543 = vld [vmem:[%s1 + $0x3d8] sm:$0xff]
    %v544 = vld [vmem:[%s1 + $0x3e0] sm:$0xff]
    %v545 = vld [vmem:[%s1 + $0x3e8] sm:$0xff]
    %v546 = vld [vmem:[%s1 + $0x3f0] sm:$0xff]
    %v547 = vld [vmem:[%s1 + $0x3f8] sm:$0xff]
    %v548 = vld [vmem:[%s1 + $0x400] sm:$0xff]
    %v549 = vld [vmem:[%s1 + $0x408] sm:$0xff]
    %v550 = vld [vmem:[%s1 + $0x410] sm:$0xff]
    %v551 = vld [vmem:[%s1 + $0x418] sm:$0xff]
    %v552 = vld [vmem:[%s1 + $0x420] sm:$0xff]
    %v553 = vld [vmem:[%s1 + $0x428] sm:$0xff]
    %v554 = vld [vmem:[%s1 + $0x430] sm:$0xff]
    %v555 = vld [vmem:[%s1 + $0x438] sm:$0xff]
    %v556 = vld [vmem:[%s1 + $0x440] sm:$0xff]
    %v557 = vld [vmem:[%s1 + $0x448] sm:$0xff]
    %v558 = vld [vmem:[%s1 + $0x450] sm:$0xff]
    %v559 = vld [vmem:[%s1 + $0x458] sm:$0xff]
    %v560 = vld [vmem:[%s1 + $0x460] sm:$0xff]
    %v561 = vld [vmem:[%s1 + $0x468] sm:$0xff]
    %v562 = vld [vmem:[%s1 + $0x470] sm:$0xff]
    %v563 = vld [vmem:[%s1 + $0x478] sm:$0xff]
    %v564 = vld [vmem:[%s1 + $0x480] sm:$0xff]
    %v565 = vld [vmem:[%s1 + $0x488] sm:$0xff]
    %v566 = vld [vmem:[%s1 + $0x490] sm:$0xff]
    %v567 = vld [vmem:[%s1 + $0x498] sm:$0xff]
    %v568 = vld [vmem:[%s1 + $0x4a0] sm:$0xff]
    %v569 = vld [vmem:[%s1 + $0x4a8] sm:$0xff]
    %v570 = vld [vmem:[%s1 + $0x4b0] sm:$0xff]
    %v571 = vld [vmem:[%s1 + $0x4b8] sm:$0xff]
    %v572 = vld [vmem:[%s1 + $0x4c0] sm:$0xff]
    %v573 = vld [vmem:[%s1 + $0x4c8] sm:$0xff]
    %v574 = vld [vmem:[%s1 + $0x4d0] sm:$0xff]
    %v575 = vld [vmem:[%s1 + $0x4d8] sm:$0xff]
    %v576 = vld [vmem:[%s1 + $0x4e0] sm:$0xff]
    %v577 = vld [vmem:[%s1 + $0x4e8] sm:$0xff]
    %v578 = vld [vmem:[%s1 + $0x4f0] sm:$0xff]
    %v579 = vld [vmem:[%s1 + $0x4f8] sm:$0xff]
    %v580 = vld [vmem:[%s1 + $0x500] sm:$0xff]
    %v581 = vld [vmem:[%s1 + $0x508] sm:$0xff]
    %v582 = vld [vmem:[%s1 + $0x510] sm:$0xff]
    %v583 = vld [vmem:[%s1 + $0x518] sm:$0xff]
    %v584 = vld [vmem:[%s1 + $0x520] sm:$0xff]
    %v585 = vld [vmem:[%s1 + $0x528] sm:$0xff]
    %v586 = vld [vmem:[%s1 + $0x530] sm:$0xff]
    %v587 = vld [vmem:[%s1 + $0x538] sm:$0xff]
    %v588 = vld [vmem:[%s1 + $0x540] sm:$0xff]
    %v589 = vld [vmem:[%s1 + $0x548] sm:$0xff]
    %v590 = vld [vmem:[%s1 + $0x550] sm:$0xff]
    %v591 = vld [vmem:[%s1 + $0x558] sm:$0xff]
    %v592 = vld [vmem:[%s1 + $0x560] sm:$0xff]
    %v593 = vld [vmem:[%s1 + $0x568] sm:$0xff]
    %v594 = vld [vmem:[%s1 + $0x570] sm:$0xff]
    %v595 = vld [vmem:[%s1 + $0x578] sm:$0xff]
    %v596 = vld [vmem:[%s1 + $0x580] sm:$0xff]
    %v597 = vld [vmem:[%s1 + $0x588] sm:$0xff]
    %v598 = vld [vmem:[%s1 + $0x590] sm:$0xff]
    %v599 = vld [vmem:[%s1 + $0x598] sm:$0xff]
    %v600 = vld [vmem:[%s1 + $0x5a0] sm:$0xff]
    %v601 = vld [vmem:[%s1 + $0x5a8] sm:$0xff]
    %v602 = vld [vmem:[%s1 + $0x5b0] sm:$0xff]
    %v603 = vld [vmem:[%s1 + $0x5b8] sm:$0xff]
    %v604 = vld [vmem:[%s1 + $0x5c0] sm:$0xff]
    %v605 = vld [vmem:[%s1 + $0x5c8] sm:$0xff]
    %v606 = vld [vmem:[%s1 + $0x5d0] sm:$0xff]
    %v607 = vld [vmem:[%s1 + $0x5d8] sm:$0xff]
    %v608 = vld [vmem:[%s1 + $0x5e0] sm:$0xff]
    %v609 = vld [vmem:[%s1 + $0x5e8] sm:$0xff]
    %v610 = vld [vmem:[%s1 + $0x5f0] sm:$0xff]
    %v611 = vld [vmem:[%s1 + $0x5f8] sm:$0xff]
    %v612 = vld [vmem:[%s1 + $0x600] sm:$0xff]
    %v613 = vld [vmem:[%s1 + $0x608] sm:$0xff]
    %v614 = vld [vmem:[%s1 + $0x610] sm:$0xff]
    %v615 = vld [vmem:[%s1 + $0x618] sm:$0xff]
    %v616 = vld [vmem:[%s1 + $0x620] sm:$0xff]
    %v617 = vld [vmem:[%s1 + $0x628] sm:$0xff]
    %v618 = vld [vmem:[%s1 + $0x630] sm:$0xff]
    %v619 = vld [vmem:[%s1 + $0x638] sm:$0xff]
    %v620 = vld [vmem:[%s1 + $0x640] sm:$0xff]
    %v621 = vld [vmem:[%s1 + $0x648] sm:$0xff]
    %v622 = vld [vmem:[%s1 + $0x650] sm:$0xff]
    %v623 = vld [vmem:[%s1 + $0x658] sm:$0xff]
    %v624 = vld [vmem:[%s1 + $0x660] sm:$0xff]
    %v625 = vld [vmem:[%s1 + $0x668] sm:$0xff]
    %v626 = vld [vmem:[%s1 + $0x670] sm:$0xff]
    %v627 = vld [vmem:[%s1 + $0x678] sm:$0xff]
    %v628 = vld [vmem:[%s1 + $0x680] sm:$0xff]
    %v629 = vld [vmem:[%s1 + $0x688] sm:$0xff]
    %v630 = vld [vmem:[%s1 + $0x690] sm:$0xff]
    %v631 = vld [vmem:[%s1 + $0x698] sm:$0xff]
    %v632 = vld [vmem:[%s1 + $0x6a0] sm:$0xff]
    %v633 = vld [vmem:[%s1 + $0x6a8] sm:$0xff]
    %v634 = vld [vmem:[%s1 + $0x6b0] sm:$0xff]
    %v635 = vld [vmem:[%s1 + $0x6b8] sm:$0xff]
    %v636 = vld [vmem:[%s1 + $0x6c0] sm:$0xff]
    %v637 = vld [vmem:[%s1 + $0x6c8] sm:$0xff]
    %v638 = vld [vmem:[%s1 + $0x6d0] sm:$0xff]
    %v639 = vld [vmem:[%s1 + $0x6d8] sm:$0xff]
    %v640 = vld [vmem:[%s1 + $0x6e0] sm:$0xff]
    %v641 = vld [vmem:[%s1 + $0x6e8] sm:$0xff]
    %v642 = vld [vmem:[%s1 + $0x6f0] sm:$0xff]
    %v643 = vld [vmem:[%s1 + $0x6f8] sm:$0xff]
    %v644 = vld [vmem:[%s1 + $0x700] sm:$0xff]
    %v645 = vld [vmem:[%s1 + $0x708] sm:$0xff]
    %v646 = vld [vmem:[%s1 + $0x710] sm:$0xff]
    %v647 = vld [vmem:[%s1 + $0x718] sm:$0xff]
    %v648 = vld [vmem:[%s1 + $0x720] sm:$0xff]
    %v649 = vld [vmem:[%s1 + $0x728] sm:$0xff]
    %v650 = vld [vmem:[%s1 + $0x730] sm:$0xff]
    %v651 = vld [vmem:[%s1 + $0x738] sm:$0xff]
    %v652 = vld [vmem:[%s1 + $0x740] sm:$0xff]
    %v653 = vld [vmem:[%s1 + $0x748] sm:$0xff]
    %v654 = vld [vmem:[%s1 + $0x750] sm:$0xff]
    %v655 = vld [vmem:[%s1 + $0x758] sm:$0xff]
    %v656 = vld [vmem:[%s1 + $0x760] sm:$0xff]
    %v657 = vld [vmem:[%s1 + $0x768] sm:$0xff]
    %v658 = vld [vmem:[%s1 + $0x770] sm:$0xff]
    %v659 = vld [vmem:[%s1 + $0x778] sm:$0xff]
    %v660 = vld [vmem:[%s1 + $0x780] sm:$0xff]
    %v661 = vld [vmem:[%s1 + $0x788] sm:$0xff]
    %v662 = vld [vmem:[%s1 + $0x790] sm:$0xff]
    %v663 = vld [vmem:[%s1 + $0x798] sm:$0xff]
    %v664 = vld [vmem:[%s1 + $0x7a0] sm:$0xff]
    %v665 = vld [vmem:[%s1 + $0x7a8] sm:$0xff]
    %v666 = vld [vmem:[%s1 + $0x7b0] sm:$0xff]
    %v667 = vld [vmem:[%s1 + $0x7b8] sm:$0xff]
    %v668 = vld [vmem:[%s1 + $0x7c0] sm:$0xff]
    %v669 = vld [vmem:[%s1 + $0x7c8] sm:$0xff]
    %v670 = vld [vmem:[%s1 + $0x7d0] sm:$0xff]
    %v671 = vld [vmem:[%s1 + $0x7d8] sm:$0xff]
    %v672 = vld [vmem:[%s1 + $0x7e0] sm:$0xff]
    %v673 = vld [vmem:[%s1 + $0x7e8] sm:$0xff]
    %v674 = vld [vmem:[%s1 + $0x7f0] sm:$0xff]
    %v675 = vld [vmem:[%s1 + $0x7f8] sm:$0xff]
    %v676 = vld [vmem:[%s1 + $0x800] sm:$0xff]
    %v677 = vld [vmem:[%s1 + $0x808] sm:$0xff]
    %v678 = vld [vmem:[%s1 + $0x810] sm:$0xff]
    %v679 = vld [vmem:[%s1 + $0x818] sm:$0xff]
    %v680 = vld [vmem:[%s1 + $0x820] sm:$0xff]
    %v681 = vld [vmem:[%s1 + $0x828] sm:$0xff]
    %v682 = vld [vmem:[%s1 + $0x830] sm:$0xff]
    %v683 = vld [vmem:[%s1 + $0x838] sm:$0xff]
    %v684 = vld [vmem:[%s1 + $0x840] sm:$0xff]
    %v685 = vld [vmem:[%s1 + $0x848] sm:$0xff]
    %v686 = vld [vmem:[%s1 + $0x850] sm:$0xff]
    %v687 = vld [vmem:[%s1 + $0x858] sm:$0xff]
    %v688 = vld [vmem:[%s1 + $0x860] sm:$0xff]
    %v689 = vld [vmem:[%s1 + $0x868] sm:$0xff]
    %v690 = vld [vmem:[%s1 + $0x870] sm:$0xff]
    %v691 = vld [vmem:[%s1 + $0x878] sm:$0xff]
    %v692 = vld [vmem:[%s1 + $0x880] sm:$0xff]
    %v693 = vld [vmem:[%s1 + $0x888] sm:$0xff]
    %v694 = vld [vmem:[%s1 + $0x890] sm:$0xff]
    %v695 = vld [vmem:[%s1 + $0x898] sm:$0xff]
    %v696 = vld [vmem:[%s1 + $0x8a0] sm:$0xff]
    %v697 = vld [vmem:[%s1 + $0x8a8] sm:$0xff]
    %v698 = vld [vmem:[%s1 + $0x8b0] sm:$0xff]
    %v699 = vld [vmem:[%s1 + $0x8b8] sm:$0xff]
    %v700 = vld [vmem:[%s1 + $0x8c0] sm:$0xff]
    %v701 = vld [vmem:[%s1 + $0x8c8] sm:$0xff]
    %v702 = vld [vmem:[%s1 + $0x8d0] sm:$0xff]
    %v703 = vld [vmem:[%s1 + $0x8d8] sm:$0xff]
    %v704 = vld [vmem:[%s1 + $0x8e0] sm:$0xff]
    %v705 = vld [vmem:[%s1 + $0x8e8] sm:$0xff]
    %v706 = vld [vmem:[%s1 + $0x8f0] sm:$0xff]
    %v707 = vld [vmem:[%s1 + $0x8f8] sm:$0xff]
    %v708 = vld [vmem:[%s1 + $0x900] sm:$0xff]
    %v709 = vld [vmem:[%s1 + $0x908] sm:$0xff]
    %v710 = vld [vmem:[%s1 + $0x910] sm:$0xff]
    %v711 = vld [vmem:[%s1 + $0x918] sm:$0xff]
    %v712 = vld [vmem:[%s1 + $0x920] sm:$0xff]
    %v713 = vld [vmem:[%s1 + $0x928] sm:$0xff]
    %v714 = vld [vmem:[%s1 + $0x930] sm:$0xff]
    %v715 = vld [vmem:[%s1 + $0x938] sm:$0xff]
    %v716 = vld [vmem:[%s1 + $0x940] sm:$0xff]
    %v717 = vld [vmem:[%s1 + $0x948] sm:$0xff]
    %v718 = vld [vmem:[%s1 + $0x950] sm:$0xff]
    %v719 = vld [vmem:[%s1 + $0x958] sm:$0xff]
    %v720 = vld [vmem:[%s1 + $0x960] sm:$0xff]
    %v721 = vld [vmem:[%s1 + $0x968] sm:$0xff]
    %v722 = vld [vmem:[%s1 + $0x970] sm:$0xff]
    %v723 = vld [vmem:[%s1 + $0x978] sm:$0xff]
    %v724 = vld [vmem:[%s1 + $0x980] sm:$0xff]
    %v725 = vld [vmem:[%s1 + $0x988] sm:$0xff]
    %v726 = vld [vmem:[%s1 + $0x990] sm:$0xff]
    %v727 = vld [vmem:[%s1 + $0x998] sm:$0xff]
    %v728 = vld [vmem:[%s1 + $0x9a0] sm:$0xff]
    %v729 = vld [vmem:[%s1 + $0x9a8] sm:$0xff]
    %v730 = vld [vmem:[%s1 + $0x9b0] sm:$0xff]
    %v731 = vld [vmem:[%s1 + $0x9b8] sm:$0xff]
    %v732 = vld [vmem:[%s1 + $0x9c0] sm:$0xff]
    %v733 = vld [vmem:[%s1 + $0x9c8] sm:$0xff]
    %v734 = vld [vmem:[%s1 + $0x9d0] sm:$0xff]
    %v735 = vld [vmem:[%s1 + $0x9d8] sm:$0xff]
    %v736 = vld [vmem:[%s1 + $0x9e0] sm:$0xff]
    %v737 = vld [vmem:[%s1 + $0x9e8] sm:$0xff]
    %v738 = vld [vmem:[%s1 + $0x9f0] sm:$0xff]
    %v739 = vld [vmem:[%s1 + $0x9f8] sm:$0xff]
    %v740 = vld [vmem:[%s1 + $0xa00] sm:$0xff]
    %v741 = vld [vmem:[%s1 + $0xa08] sm:$0xff]
    %v742 = vld [vmem:[%s1 + $0xa10] sm:$0xff]
    %v743 = vld [vmem:[%s1 + $0xa18] sm:$0xff]
    %v744 = vld [vmem:[%s1 + $0xa20] sm:$0xff]
    %v745 = vld [vmem:[%s1 + $0xa28] sm:$0xff]
    %v746 = vld [vmem:[%s1 + $0xa30] sm:$0xff]
    %v747 = vld [vmem:[%s1 + $0xa38] sm:$0xff]
    %v748 = vld [vmem:[%s1 + $0xa40] sm:$0xff]
    %v749 = vld [vmem:[%s1 + $0xa48] sm:$0xff]
    %v750 = vld [vmem:[%s1 + $0xa50] sm:$0xff]
    %v751 = vld [vmem:[%s1 + $0xa58] sm:$0xff]
    %v752 = vld [vmem:[%s1 + $0xa60] sm:$0xff]
    %v753 = vld [vmem:[%s1 + $0xa68] sm:$0xff]
    %v754 = vld [vmem:[%s1 + $0xa70] sm:$0xff]
    %v755 = vld [vmem:[%s1 + $0xa78] sm:$0xff]
    %v756 = vld [vmem:[%s1 + $0xa80] sm:$0xff]
    %v757 = vld [vmem:[%s1 + $0xa88] sm:$0xff]
    %v758 = vld [vmem:[%s1 + $0xa90] sm:$0xff]
    %v759 = vld [vmem:[%s1 + $0xa98] sm:$0xff]
    %v760 = vld [vmem:[%s1 + $0xaa0] sm:$0xff]
    %v761 = vld [vmem:[%s1 + $0xaa8] sm:$0xff]
    %v762 = vld [vmem:[%s1 + $0xab0] sm:$0xff]
    %v763 = vld [vmem:[%s1 + $0xab8] sm:$0xff]
    %v764 = vld [vmem:[%s1 + $0xac0] sm:$0xff]
    %v765 = vld [vmem:[%s1 + $0xac8] sm:$0xff]
    %v766 = vld [vmem:[%s1 + $0xad0] sm:$0xff]
    %v767 = vld [vmem:[%s1 + $0xad8] sm:$0xff]
    %v768 = vld [vmem:[%s1 + $0xae0] sm:$0xff]
    %v769 = vld [vmem:[%s1 + $0xae8] sm:$0xff]
    %v770 = vld [vmem:[%s1 + $0xaf0] sm:$0xff]
    %v771 = vld [vmem:[%s1 + $0xaf8] sm:$0xff]
    %v772 = vld [vmem:[%s1 + $0xb00] sm:$0xff]
    %v773 = vld [vmem:[%s1 + $0xb08] sm:$0xff]
    %v774 = vld [vmem:[%s1 + $0xb10] sm:$0xff]
    %v775 = vld [vmem:[%s1 + $0xb18] sm:$0xff]
    %v776 = vld [vmem:[%s1 + $0xb20] sm:$0xff]
    %v777 = vld [vmem:[%s1 + $0xb28] sm:$0xff]
    %v778 = vld [vmem:[%s1 + $0xb30] sm:$0xff]
    %v779 = vld [vmem:[%s1 + $0xb38] sm:$0xff]
    %v780 = vld [vmem:[%s1 + $0xb40] sm:$0xff]
    %v781 = vld [vmem:[%s1 + $0xb48] sm:$0xff]
    %v782 = vld [vmem:[%s1 + $0xb50] sm:$0xff]
    %v783 = vld [vmem:[%s1 + $0xb58] sm:$0xff]
    %v784 = vld [vmem:[%s1 + $0xb60] sm:$0xff]
    %v785 = vld [vmem:[%s1 + $0xb68] sm:$0xff]
    %v786 = vld [vmem:[%s1 + $0xb70] sm:$0xff]
    %v787 = vld [vmem:[%s1 + $0xb78] sm:$0xff]
    %v788 = vld [vmem:[%s1 + $0xb80] sm:$0xff]
    %v789 = vld [vmem:[%s1 + $0xb88] sm:$0xff]
    %v790 = vld [vmem:[%s1 + $0xb90] sm:$0xff]
    %v791 = vld [vmem:[%s1 + $0xb98] sm:$0xff]
    %v792 = vld [vmem:[%s1 + $0xba0] sm:$0xff]
    %v793 = vld [vmem:[%s1 + $0xba8] sm:$0xff]
    %v794 = vld [vmem:[%s1 + $0xbb0] sm:$0xff]
    %v795 = vld [vmem:[%s1 + $0xbb8] sm:$0xff]
    %v796 = vld [vmem:[%s1 + $0xbc0] sm:$0xff]
    %v797 = vld [vmem:[%s1 + $0xbc8] sm:$0xff]
    %v798 = vld [vmem:[%s1 + $0xbd0] sm:$0xff]
    %v799 = vld [vmem:[%s1 + $0xbd8] sm:$0xff]
    %v800 = vld [vmem:[%s1 + $0xbe0] sm:$0xff]
    %v801 = vld [vmem:[%s1 + $0xbe8] sm:$0xff]
    %v802 = vld [vmem:[%s1 + $0xbf0] sm:$0xff]
    %v803 = vld [vmem:[%s1 + $0xbf8] sm:$0xff]
    %v804 = vld [vmem:[%s1 + $0xc00] sm:$0xff]
    %v805 = vld [vmem:[%s1 + $0xc08] sm:$0xff]
    %v806 = vld [vmem:[%s1 + $0xc10] sm:$0xff]
    %v807 = vld [vmem:[%s1 + $0xc18] sm:$0xff]
    %v808 = vld [vmem:[%s1 + $0xc20] sm:$0xff]
    %v809 = vld [vmem:[%s1 + $0xc28] sm:$0xff]
    %v810 = vld [vmem:[%s1 + $0xc30] sm:$0xff]
    %v811 = vld [vmem:[%s1 + $0xc38] sm:$0xff]
    %v812 = vld [vmem:[%s1 + $0xc40] sm:$0xff]
    %v813 = vld [vmem:[%s1 + $0xc48] sm:$0xff]
    %v814 = vld [vmem:[%s1 + $0xc50] sm:$0xff]
    %v815 = vld [vmem:[%s1 + $0xc58] sm:$0xff]
    %v816 = vld [vmem:[%s1 + $0xc60] sm:$0xff]
    %v817 = vld [vmem:[%s1 + $0xc68] sm:$0xff]
    %v818 = vld [vmem:[%s1 + $0xc70] sm:$0xff]
    %v819 = vld [vmem:[%s1 + $0xc78] sm:$0xff]
    %v820 = vld [vmem:[%s1 + $0xc80] sm:$0xff]
    %v821 = vld [vmem:[%s1 + $0xc88] sm:$0xff]
    %v822 = vld [vmem:[%s1 + $0xc90] sm:$0xff]
    %v823 = vld [vmem:[%s1 + $0xc98] sm:$0xff]
    %v824 = vld [vmem:[%s1 + $0xca0] sm:$0xff]
    %v825 = vld [vmem:[%s1 + $0xca8] sm:$0xff]
    %v826 = vld [vmem:[%s1 + $0xcb0] sm:$0xff]
    %v827 = vld [vmem:[%s1 + $0xcb8] sm:$0xff]
    %v828 = vld [vmem:[%s1 + $0xcc0] sm:$0xff]
    %v829 = vld [vmem:[%s1 + $0xcc8] sm:$0xff]
    %v830 = vld [vmem:[%s1 + $0xcd0] sm:$0xff]
    %v831 = vld [vmem:[%s1 + $0xcd8] sm:$0xff]
    %v832 = vld [vmem:[%s1 + $0xce0] sm:$0xff]
    %v833 = vld [vmem:[%s1 + $0xce8] sm:$0xff]
    %v834 = vld [vmem:[%s1 + $0xcf0] sm:$0xff]
    %v835 = vld [vmem:[%s1 + $0xcf8] sm:$0xff]
    %v836 = vld [vmem:[%s1 + $0xd00] sm:$0xff]
    %v837 = vld [vmem:[%s1 + $0xd08] sm:$0xff]
    %v838 = vld [vmem:[%s1 + $0xd10] sm:$0xff]
    %v839 = vld [vmem:[%s1 + $0xd18] sm:$0xff]
    %v840 = vld [vmem:[%s1 + $0xd20] sm:$0xff]
    %v841 = vld [vmem:[%s1 + $0xd28] sm:$0xff]
    %v842 = vld [vmem:[%s1 + $0xd30] sm:$0xff]
    %v843 = vld [vmem:[%s1 + $0xd38] sm:$0xff]
    %v844 = vld [vmem:[%s1 + $0xd40] sm:$0xff]
    %v845 = vld [vmem:[%s1 + $0xd48] sm:$0xff]
    %v846 = vld [vmem:[%s1 + $0xd50] sm:$0xff]
    %v847 = vld [vmem:[%s1 + $0xd58] sm:$0xff]
    %v848 = vld [vmem:[%s1 + $0xd60] sm:$0xff]
    %v849 = vld [vmem:[%s1 + $0xd68] sm:$0xff]
    %v850 = vld [vmem:[%s1 + $0xd70] sm:$0xff]
    %v851 = vld [vmem:[%s1 + $0xd78] sm:$0xff]
    %v852 = vld [vmem:[%s1 + $0xd80] sm:$0xff]
    %v853 = vld [vmem:[%s1 + $0xd88] sm:$0xff]
    %v854 = vld [vmem:[%s1 + $0xd90] sm:$0xff]
    %v855 = vld [vmem:[%s1 + $0xd98] sm:$0xff]
    %v856 = vld [vmem:[%s1 + $0xda0] sm:$0xff]
    %v857 = vld [vmem:[%s1 + $0xda8] sm:$0xff]
    %v858 = vld [vmem:[%s1 + $0xdb0] sm:$0xff]
    %v859 = vld [vmem:[%s1 + $0xdb8] sm:$0xff]
    %v860 = vld [vmem:[%s1 + $0xdc0] sm:$0xff]
    %v861 = vld [vmem:[%s1 + $0xdc8] sm:$0xff]
    %v862 = vld [vmem:[%s1 + $0xdd0] sm:$0xff]
    %v863 = vld [vmem:[%s1 + $0xdd8] sm:$0xff]
    %v864 = vld [vmem:[%s1 + $0xde0] sm:$0xff]
    %v865 = vld [vmem:[%s1 + $0xde8] sm:$0xff]
    %v866 = vld [vmem:[%s1 + $0xdf0] sm:$0xff]
    %v867 = vld [vmem:[%s1 + $0xdf8] sm:$0xff]
    %v868 = vld [vmem:[%s1 + $0xe00] sm:$0xff]
    %v869 = vld [vmem:[%s1 + $0xe08] sm:$0xff]
    %v870 = vld [vmem:[%s1 + $0xe10] sm:$0xff]
    %v871 = vld [vmem:[%s1 + $0xe18] sm:$0xff]
    %v872 = vld [vmem:[%s1 + $0xe20] sm:$0xff]
    %v873 = vld [vmem:[%s1 + $0xe28] sm:$0xff]
    %v874 = vld [vmem:[%s1 + $0xe30] sm:$0xff]
    %v875 = vld [vmem:[%s1 + $0xe38] sm:$0xff]
    %v876 = vld [vmem:[%s1 + $0xe40] sm:$0xff]
    %v877 = vld [vmem:[%s1 + $0xe48] sm:$0xff]
    %v878 = vld [vmem:[%s1 + $0xe50] sm:$0xff]
    %v879 = vld [vmem:[%s1 + $0xe58] sm:$0xff]
    %v880 = vld [vmem:[%s1 + $0xe60] sm:$0xff]
    %v881 = vld [vmem:[%s1 + $0xe68] sm:$0xff]
    %v882 = vld [vmem:[%s1 + $0xe70] sm:$0xff]
    %v883 = vld [vmem:[%s1 + $0xe78] sm:$0xff]
    %v884 = vld [vmem:[%s1 + $0xe80] sm:$0xff]
    %v885 = vld [vmem:[%s1 + $0xe88] sm:$0xff]
    %v886 = vld [vmem:[%s1 + $0xe90] sm:$0xff]
    %v887 = vld [vmem:[%s1 + $0xe98] sm:$0xff]
    %v888 = vld [vmem:[%s1 + $0xea0] sm:$0xff]
    %v889 = vld [vmem:[%s1 + $0xea8] sm:$0xff]
    %v890 = vld [vmem:[%s1 + $0xeb0] sm:$0xff]
    %v891 = vld [vmem:[%s1 + $0xeb8] sm:$0xff]
    %v892 = vld [vmem:[%s1 + $0xec0] sm:$0xff]
    %v893 = vld [vmem:[%s1 + $0xec8] sm:$0xff]
    %v894 = vld [vmem:[%s1 + $0xed0] sm:$0xff]
    %v895 = vld [vmem:[%s1 + $0xed8] sm:$0xff]
    %v896 = vld [vmem:[%s1 + $0xee0] sm:$0xff]
    %v897 = vld [vmem:[%s1 + $0xee8] sm:$0xff]
    %v898 = vld [vmem:[%s1 + $0xef0] sm:$0xff]
    %v899 = vld [vmem:[%s1 + $0xef8] sm:$0xff]
    %v900 = vld [vmem:[%s1 + $0xf00] sm:$0xff]
    %v901 = vld [vmem:[%s1 + $0xf08] sm:$0xff]
    %v902 = vld [vmem:[%s1 + $0xf10] sm:$0xff]
    %v903 = vld [vmem:[%s1 + $0xf18] sm:$0xff]
    %v904 = vld [vmem:[%s1 + $0xf20] sm:$0xff]
    %v905 = vld [vmem:[%s1 + $0xf28] sm:$0xff]
    %v906 = vld [vmem:[%s1 + $0xf30] sm:$0xff]
    %v907 = vld [vmem:[%s1 + $0xf38] sm:$0xff]
    %v908 = vld [vmem:[%s1 + $0xf40] sm:$0xff]
    %v909 = vld [vmem:[%s1 + $0xf48] sm:$0xff]
    %v910 = vld [vmem:[%s1 + $0xf50] sm:$0xff]
    %v911 = vld [vmem:[%s1 + $0xf58] sm:$0xff]
    %v912 = vld [vmem:[%s1 + $0xf60] sm:$0xff]
    %v913 = vld [vmem:[%s1 + $0xf68] sm:$0xff]
    %v914 = vld [vmem:[%s1 + $0xf70] sm:$0xff]
    %v915 = vld [vmem:[%s1 + $0xf78] sm:$0xff]
    %v916 = vld [vmem:[%s1 + $0xf80] sm:$0xff]
    %v917 = vld [vmem:[%s1 + $0xf88] sm:$0xff]
    %v918 = vld [vmem:[%s1 + $0xf90] sm:$0xff]
    %v919 = vld [vmem:[%s1 + $0xf98] sm:$0xff]
    %v920 = vld [vmem:[%s2] sm:$0xf]
    %v922 = vlaneseq
    %v923 = vshrl.u32 %v922, 7
    %v924 = vsub.s32 0, %v923
    %v925 = vrot.slane %v920, %v924
    %v926 = vlaneseq
    %v927 = vshrl.u32 %v926, 7
    %v928 = vsub.s32 1, %v927
    %v929 = vrot.slane %v920, %v928
    %v930 = vlaneseq
    %v931 = vshrl.u32 %v930, 7
    %v932 = vsub.s32 2, %v931
    %v933 = vrot.slane %v920, %v932
    %v934 = vlaneseq
    %v935 = vshrl.u32 %v934, 7
    %v936 = vsub.s32 3, %v935
    %v937 = vrot.slane %v920, %v936
    %v1442 = vunpack.c.l.b16 %v420
    %v1443 = vunpack.c.h.b16 %v420
    %v1444 = vunpack.c.l.b16 %v421
    %v1445 = vunpack.c.h.b16 %v421
    %v1446 = vunpack.c.l.b16 %v422
    %v1447 = vunpack.c.h.b16 %v422
    %v1448 = vunpack.c.l.b16 %v423
    %v1449 = vunpack.c.h.b16 %v423
    %v1450 = vunpack.c.l.b16 %v424
    %v1451 = vunpack.c.h.b16 %v424
    %v1452 = vunpack.c.l.b16 %v425
    %v1453 = vunpack.c.h.b16 %v425
    %v1454 = vunpack.c.l.b16 %v426
    %v1455 = vunpack.c.h.b16 %v426
    %v1456 = vunpack.c.l.b16 %v427
    %v1457 = vunpack.c.h.b16 %v427
    %v1458 = vunpack.c.l.b16 %v428
    %v1459 = vunpack.c.h.b16 %v428
    %v1460 = vunpack.c.l.b16 %v429
    %v1461 = vunpack.c.h.b16 %v429
    %v1462 = vunpack.c.l.b16 %v430
    %v1463 = vunpack.c.h.b16 %v430
    %v1464 = vunpack.c.l.b16 %v431
    %v1465 = vunpack.c.h.b16 %v431
    %v1466 = vunpack.c.l.b16 %v432
    %v1467 = vunpack.c.h.b16 %v432
    %v1468 = vunpack.c.l.b16 %v433
    %v1469 = vunpack.c.h.b16 %v433
    %v1470 = vunpack.c.l.b16 %v434
    %v1471 = vunpack.c.h.b16 %v434
    %v1472 = vunpack.c.l.b16 %v435
    %v1473 = vunpack.c.h.b16 %v435
    %v1474 = vunpack.c.l.b16 %v436
    %v1475 = vunpack.c.h.b16 %v436
    %v1476 = vunpack.c.l.b16 %v437
    %v1477 = vunpack.c.h.b16 %v437
    %v1478 = vunpack.c.l.b16 %v438
    %v1479 = vunpack.c.h.b16 %v438
    %v1480 = vunpack.c.l.b16 %v439
    %v1481 = vunpack.c.h.b16 %v439
    %v1482 = vunpack.c.l.b16 %v440
    %v1483 = vunpack.c.h.b16 %v440
    %v1484 = vunpack.c.l.b16 %v441
    %v1485 = vunpack.c.h.b16 %v441
    %v1486 = vunpack.c.l.b16 %v442
    %v1487 = vunpack.c.h.b16 %v442
    %v1488 = vunpack.c.l.b16 %v443
    %v1489 = vunpack.c.h.b16 %v443
    %v1490 = vunpack.c.l.b16 %v444
    %v1491 = vunpack.c.h.b16 %v444
    %v1492 = vunpack.c.l.b16 %v445
    %v1493 = vunpack.c.h.b16 %v445
    %v1494 = vunpack.c.l.b16 %v446
    %v1495 = vunpack.c.h.b16 %v446
    %v1496 = vunpack.c.l.b16 %v447
    %v1497 = vunpack.c.h.b16 %v447
    %v1498 = vunpack.c.l.b16 %v448
    %v1499 = vunpack.c.h.b16 %v448
    %v1500 = vunpack.c.l.b16 %v449
    %v1501 = vunpack.c.h.b16 %v449
    %v1502 = vunpack.c.l.b16 %v450
    %v1503 = vunpack.c.h.b16 %v450
    %v1504 = vunpack.c.l.b16 %v451
    %v1505 = vunpack.c.h.b16 %v451
    %v1506 = vunpack.c.l.b16 %v452
    %v1507 = vunpack.c.h.b16 %v452
    %v1508 = vunpack.c.l.b16 %v453
    %v1509 = vunpack.c.h.b16 %v453
    %v1510 = vunpack.c.l.b16 %v454
    %v1511 = vunpack.c.h.b16 %v454
    %v1512 = vunpack.c.l.b16 %v455
    %v1513 = vunpack.c.h.b16 %v455
    %v1514 = vunpack.c.l.b16 %v456
    %v1515 = vunpack.c.h.b16 %v456
    %v1516 = vunpack.c.l.b16 %v457
    %v1517 = vunpack.c.h.b16 %v457
    %v1518 = vunpack.c.l.b16 %v458
    %v1519 = vunpack.c.h.b16 %v458
    %v1520 = vunpack.c.l.b16 %v459
    %v1521 = vunpack.c.h.b16 %v459
    %v1522 = vunpack.c.l.b16 %v460
    %v1523 = vunpack.c.h.b16 %v460
    %v1524 = vunpack.c.l.b16 %v461
    %v1525 = vunpack.c.h.b16 %v461
    %v1526 = vunpack.c.l.b16 %v462
    %v1527 = vunpack.c.h.b16 %v462
    %v1528 = vunpack.c.l.b16 %v463
    %v1529 = vunpack.c.h.b16 %v463
    %v1530 = vunpack.c.l.b16 %v464
    %v1531 = vunpack.c.h.b16 %v464
    %v1532 = vunpack.c.l.b16 %v465
    %v1533 = vunpack.c.h.b16 %v465
    %v1534 = vunpack.c.l.b16 %v466
    %v1535 = vunpack.c.h.b16 %v466
    %v1536 = vunpack.c.l.b16 %v467
    %v1537 = vunpack.c.h.b16 %v467
    %v1538 = vunpack.c.l.b16 %v468
    %v1539 = vunpack.c.h.b16 %v468
    %v1540 = vunpack.c.l.b16 %v469
    %v1541 = vunpack.c.h.b16 %v469
    %v1542 = vunpack.c.l.b16 %v470
    %v1543 = vunpack.c.h.b16 %v470
    %v1544 = vunpack.c.l.b16 %v471
    %v1545 = vunpack.c.h.b16 %v471
    %v1546 = vunpack.c.l.b16 %v472
    %v1547 = vunpack.c.h.b16 %v472
    %v1548 = vunpack.c.l.b16 %v473
    %v1549 = vunpack.c.h.b16 %v473
    %v1550 = vunpack.c.l.b16 %v474
    %v1551 = vunpack.c.h.b16 %v474
    %v1552 = vunpack.c.l.b16 %v475
    %v1553 = vunpack.c.h.b16 %v475
    %v1554 = vunpack.c.l.b16 %v476
    %v1555 = vunpack.c.h.b16 %v476
    %v1556 = vunpack.c.l.b16 %v477
    %v1557 = vunpack.c.h.b16 %v477
    %v1558 = vunpack.c.l.b16 %v478
    %v1559 = vunpack.c.h.b16 %v478
    %v1560 = vunpack.c.l.b16 %v479
    %v1561 = vunpack.c.h.b16 %v479
    %v1562 = vunpack.c.l.b16 %v480
    %v1563 = vunpack.c.h.b16 %v480
    %v1564 = vunpack.c.l.b16 %v481
    %v1565 = vunpack.c.h.b16 %v481
    %v1566 = vunpack.c.l.b16 %v482
    %v1567 = vunpack.c.h.b16 %v482
    %v1568 = vunpack.c.l.b16 %v483
    %v1569 = vunpack.c.h.b16 %v483
    %v1570 = vunpack.c.l.b16 %v484
    %v1571 = vunpack.c.h.b16 %v484
    %v1572 = vunpack.c.l.b16 %v485
    %v1573 = vunpack.c.h.b16 %v485
    %v1574 = vunpack.c.l.b16 %v486
    %v1575 = vunpack.c.h.b16 %v486
    %v1576 = vunpack.c.l.b16 %v487
    %v1577 = vunpack.c.h.b16 %v487
    %v1578 = vunpack.c.l.b16 %v488
    %v1579 = vunpack.c.h.b16 %v488
    %v1580 = vunpack.c.l.b16 %v489
    %v1581 = vunpack.c.h.b16 %v489
    %v1582 = vunpack.c.l.b16 %v490
    %v1583 = vunpack.c.h.b16 %v490
    %v1584 = vunpack.c.l.b16 %v491
    %v1585 = vunpack.c.h.b16 %v491
    %v1586 = vunpack.c.l.b16 %v492
    %v1587 = vunpack.c.h.b16 %v492
    %v1588 = vunpack.c.l.b16 %v493
    %v1589 = vunpack.c.h.b16 %v493
    %v1590 = vunpack.c.l.b16 %v494
    %v1591 = vunpack.c.h.b16 %v494
    %v1592 = vunpack.c.l.b16 %v495
    %v1593 = vunpack.c.h.b16 %v495
    %v1594 = vunpack.c.l.b16 %v496
    %v1595 = vunpack.c.h.b16 %v496
    %v1596 = vunpack.c.l.b16 %v497
    %v1597 = vunpack.c.h.b16 %v497
    %v1598 = vunpack.c.l.b16 %v498
    %v1599 = vunpack.c.h.b16 %v498
    %v1600 = vunpack.c.l.b16 %v499
    %v1601 = vunpack.c.h.b16 %v499
    %v1602 = vunpack.c.l.b16 %v500
    %v1603 = vunpack.c.h.b16 %v500
    %v1604 = vunpack.c.l.b16 %v501
    %v1605 = vunpack.c.h.b16 %v501
    %v1606 = vunpack.c.l.b16 %v502
    %v1607 = vunpack.c.h.b16 %v502
    %v1608 = vunpack.c.l.b16 %v503
    %v1609 = vunpack.c.h.b16 %v503
    %v1610 = vunpack.c.l.b16 %v504
    %v1611 = vunpack.c.h.b16 %v504
    %v1612 = vunpack.c.l.b16 %v505
    %v1613 = vunpack.c.h.b16 %v505
    %v1614 = vunpack.c.l.b16 %v506
    %v1615 = vunpack.c.h.b16 %v506
    %v1616 = vunpack.c.l.b16 %v507
    %v1617 = vunpack.c.h.b16 %v507
    %v1618 = vunpack.c.l.b16 %v508
    %v1619 = vunpack.c.h.b16 %v508
    %v1620 = vunpack.c.l.b16 %v509
    %v1621 = vunpack.c.h.b16 %v509
    %v1622 = vunpack.c.l.b16 %v510
    %v1623 = vunpack.c.h.b16 %v510
    %v1624 = vunpack.c.l.b16 %v511
    %v1625 = vunpack.c.h.b16 %v511
    %v1626 = vunpack.c.l.b16 %v512
    %v1627 = vunpack.c.h.b16 %v512
    %v1628 = vunpack.c.l.b16 %v513
    %v1629 = vunpack.c.h.b16 %v513
    %v1630 = vunpack.c.l.b16 %v514
    %v1631 = vunpack.c.h.b16 %v514
    %v1632 = vunpack.c.l.b16 %v515
    %v1633 = vunpack.c.h.b16 %v515
    %v1634 = vunpack.c.l.b16 %v516
    %v1635 = vunpack.c.h.b16 %v516
    %v1636 = vunpack.c.l.b16 %v517
    %v1637 = vunpack.c.h.b16 %v517
    %v1638 = vunpack.c.l.b16 %v518
    %v1639 = vunpack.c.h.b16 %v518
    %v1640 = vunpack.c.l.b16 %v519
    %v1641 = vunpack.c.h.b16 %v519
    %v1642 = vunpack.c.l.b16 %v520
    %v1643 = vunpack.c.h.b16 %v520
    %v1644 = vunpack.c.l.b16 %v521
    %v1645 = vunpack.c.h.b16 %v521
    %v1646 = vunpack.c.l.b16 %v522
    %v1647 = vunpack.c.h.b16 %v522
    %v1648 = vunpack.c.l.b16 %v523
    %v1649 = vunpack.c.h.b16 %v523
    %v1650 = vunpack.c.l.b16 %v524
    %v1651 = vunpack.c.h.b16 %v524
    %v1652 = vunpack.c.l.b16 %v525
    %v1653 = vunpack.c.h.b16 %v525
    %v1654 = vunpack.c.l.b16 %v526
    %v1655 = vunpack.c.h.b16 %v526
    %v1656 = vunpack.c.l.b16 %v527
    %v1657 = vunpack.c.h.b16 %v527
    %v1658 = vunpack.c.l.b16 %v528
    %v1659 = vunpack.c.h.b16 %v528
    %v1660 = vunpack.c.l.b16 %v529
    %v1661 = vunpack.c.h.b16 %v529
    %v1662 = vunpack.c.l.b16 %v530
    %v1663 = vunpack.c.h.b16 %v530
    %v1664 = vunpack.c.l.b16 %v531
    %v1665 = vunpack.c.h.b16 %v531
    %v1666 = vunpack.c.l.b16 %v532
    %v1667 = vunpack.c.h.b16 %v532
    %v1668 = vunpack.c.l.b16 %v533
    %v1669 = vunpack.c.h.b16 %v533
    %v1670 = vunpack.c.l.b16 %v534
    %v1671 = vunpack.c.h.b16 %v534
    %v1672 = vunpack.c.l.b16 %v535
    %v1673 = vunpack.c.h.b16 %v535
    %v1674 = vunpack.c.l.b16 %v536
    %v1675 = vunpack.c.h.b16 %v536
    %v1676 = vunpack.c.l.b16 %v537
    %v1677 = vunpack.c.h.b16 %v537
    %v1678 = vunpack.c.l.b16 %v538
    %v1679 = vunpack.c.h.b16 %v538
    %v1680 = vunpack.c.l.b16 %v539
    %v1681 = vunpack.c.h.b16 %v539
    %v1682 = vunpack.c.l.b16 %v540
    %v1683 = vunpack.c.h.b16 %v540
    %v1684 = vunpack.c.l.b16 %v541
    %v1685 = vunpack.c.h.b16 %v541
    %v1686 = vunpack.c.l.b16 %v542
    %v1687 = vunpack.c.h.b16 %v542
    %v1688 = vunpack.c.l.b16 %v543
    %v1689 = vunpack.c.h.b16 %v543
    %v1690 = vunpack.c.l.b16 %v544
    %v1691 = vunpack.c.h.b16 %v544
    %v1692 = vunpack.c.l.b16 %v545
    %v1693 = vunpack.c.h.b16 %v545
    %v1694 = vunpack.c.l.b16 %v546
    %v1695 = vunpack.c.h.b16 %v546
    %v1696 = vunpack.c.l.b16 %v547
    %v1697 = vunpack.c.h.b16 %v547
    %v1698 = vunpack.c.l.b16 %v548
    %v1699 = vunpack.c.h.b16 %v548
    %v1700 = vunpack.c.l.b16 %v549
    %v1701 = vunpack.c.h.b16 %v549
    %v1702 = vunpack.c.l.b16 %v550
    %v1703 = vunpack.c.h.b16 %v550
    %v1704 = vunpack.c.l.b16 %v551
    %v1705 = vunpack.c.h.b16 %v551
    %v1706 = vunpack.c.l.b16 %v552
    %v1707 = vunpack.c.h.b16 %v552
    %v1708 = vunpack.c.l.b16 %v553
    %v1709 = vunpack.c.h.b16 %v553
    %v1710 = vunpack.c.l.b16 %v554
    %v1711 = vunpack.c.h.b16 %v554
    %v1712 = vunpack.c.l.b16 %v555
    %v1713 = vunpack.c.h.b16 %v555
    %v1714 = vunpack.c.l.b16 %v556
    %v1715 = vunpack.c.h.b16 %v556
    %v1716 = vunpack.c.l.b16 %v557
    %v1717 = vunpack.c.h.b16 %v557
    %v1718 = vunpack.c.l.b16 %v558
    %v1719 = vunpack.c.h.b16 %v558
    %v1720 = vunpack.c.l.b16 %v559
    %v1721 = vunpack.c.h.b16 %v559
    %v1722 = vunpack.c.l.b16 %v560
    %v1723 = vunpack.c.h.b16 %v560
    %v1724 = vunpack.c.l.b16 %v561
    %v1725 = vunpack.c.h.b16 %v561
    %v1726 = vunpack.c.l.b16 %v562
    %v1727 = vunpack.c.h.b16 %v562
    %v1728 = vunpack.c.l.b16 %v563
    %v1729 = vunpack.c.h.b16 %v563
    %v1730 = vunpack.c.l.b16 %v564
    %v1731 = vunpack.c.h.b16 %v564
    %v1732 = vunpack.c.l.b16 %v565
    %v1733 = vunpack.c.h.b16 %v565
    %v1734 = vunpack.c.l.b16 %v566
    %v1735 = vunpack.c.h.b16 %v566
    %v1736 = vunpack.c.l.b16 %v567
    %v1737 = vunpack.c.h.b16 %v567
    %v1738 = vunpack.c.l.b16 %v568
    %v1739 = vunpack.c.h.b16 %v568
    %v1740 = vunpack.c.l.b16 %v569
    %v1741 = vunpack.c.h.b16 %v569
    %v1742 = vunpack.c.l.b16 %v570
    %v1743 = vunpack.c.h.b16 %v570
    %v1744 = vunpack.c.l.b16 %v571
    %v1745 = vunpack.c.h.b16 %v571
    %v1746 = vunpack.c.l.b16 %v572
    %v1747 = vunpack.c.h.b16 %v572
    %v1748 = vunpack.c.l.b16 %v573
    %v1749 = vunpack.c.h.b16 %v573
    %v1750 = vunpack.c.l.b16 %v574
    %v1751 = vunpack.c.h.b16 %v574
    %v1752 = vunpack.c.l.b16 %v575
    %v1753 = vunpack.c.h.b16 %v575
    %v1754 = vunpack.c.l.b16 %v576
    %v1755 = vunpack.c.h.b16 %v576
    %v1756 = vunpack.c.l.b16 %v577
    %v1757 = vunpack.c.h.b16 %v577
    %v1758 = vunpack.c.l.b16 %v578
    %v1759 = vunpack.c.h.b16 %v578
    %v1760 = vunpack.c.l.b16 %v579
    %v1761 = vunpack.c.h.b16 %v579
    %v1762 = vunpack.c.l.b16 %v580
    %v1763 = vunpack.c.h.b16 %v580
    %v1764 = vunpack.c.l.b16 %v581
    %v1765 = vunpack.c.h.b16 %v581
    %v1766 = vunpack.c.l.b16 %v582
    %v1767 = vunpack.c.h.b16 %v582
    %v1768 = vunpack.c.l.b16 %v583
    %v1769 = vunpack.c.h.b16 %v583
    %v1770 = vunpack.c.l.b16 %v584
    %v1771 = vunpack.c.h.b16 %v584
    %v1772 = vunpack.c.l.b16 %v585
    %v1773 = vunpack.c.h.b16 %v585
    %v1774 = vunpack.c.l.b16 %v586
    %v1775 = vunpack.c.h.b16 %v586
    %v1776 = vunpack.c.l.b16 %v587
    %v1777 = vunpack.c.h.b16 %v587
    %v1778 = vunpack.c.l.b16 %v588
    %v1779 = vunpack.c.h.b16 %v588
    %v1780 = vunpack.c.l.b16 %v589
    %v1781 = vunpack.c.h.b16 %v589
    %v1782 = vunpack.c.l.b16 %v590
    %v1783 = vunpack.c.h.b16 %v590
    %v1784 = vunpack.c.l.b16 %v591
    %v1785 = vunpack.c.h.b16 %v591
    %v1786 = vunpack.c.l.b16 %v592
    %v1787 = vunpack.c.h.b16 %v592
    %v1788 = vunpack.c.l.b16 %v593
    %v1789 = vunpack.c.h.b16 %v593
    %v1790 = vunpack.c.l.b16 %v594
    %v1791 = vunpack.c.h.b16 %v594
    %v1792 = vunpack.c.l.b16 %v595
    %v1793 = vunpack.c.h.b16 %v595
    %v1794 = vunpack.c.l.b16 %v596
    %v1795 = vunpack.c.h.b16 %v596
    %v1796 = vunpack.c.l.b16 %v597
    %v1797 = vunpack.c.h.b16 %v597
    %v1798 = vunpack.c.l.b16 %v598
    %v1799 = vunpack.c.h.b16 %v598
    %v1800 = vunpack.c.l.b16 %v599
    %v1801 = vunpack.c.h.b16 %v599
    %v1802 = vunpack.c.l.b16 %v600
    %v1803 = vunpack.c.h.b16 %v600
    %v1804 = vunpack.c.l.b16 %v601
    %v1805 = vunpack.c.h.b16 %v601
    %v1806 = vunpack.c.l.b16 %v602
    %v1807 = vunpack.c.h.b16 %v602
    %v1808 = vunpack.c.l.b16 %v603
    %v1809 = vunpack.c.h.b16 %v603
    %v1810 = vunpack.c.l.b16 %v604
    %v1811 = vunpack.c.h.b16 %v604
    %v1812 = vunpack.c.l.b16 %v605
    %v1813 = vunpack.c.h.b16 %v605
    %v1814 = vunpack.c.l.b16 %v606
    %v1815 = vunpack.c.h.b16 %v606
    %v1816 = vunpack.c.l.b16 %v607
    %v1817 = vunpack.c.h.b16 %v607
    %v1818 = vunpack.c.l.b16 %v608
    %v1819 = vunpack.c.h.b16 %v608
    %v1820 = vunpack.c.l.b16 %v609
    %v1821 = vunpack.c.h.b16 %v609
    %v1822 = vunpack.c.l.b16 %v610
    %v1823 = vunpack.c.h.b16 %v610
    %v1824 = vunpack.c.l.b16 %v611
    %v1825 = vunpack.c.h.b16 %v611
    %v1826 = vunpack.c.l.b16 %v612
    %v1827 = vunpack.c.h.b16 %v612
    %v1828 = vunpack.c.l.b16 %v613
    %v1829 = vunpack.c.h.b16 %v613
    %v1830 = vunpack.c.l.b16 %v614
    %v1831 = vunpack.c.h.b16 %v614
    %v1832 = vunpack.c.l.b16 %v615
    %v1833 = vunpack.c.h.b16 %v615
    %v1834 = vunpack.c.l.b16 %v616
    %v1835 = vunpack.c.h.b16 %v616
    %v1836 = vunpack.c.l.b16 %v617
    %v1837 = vunpack.c.h.b16 %v617
    %v1838 = vunpack.c.l.b16 %v618
    %v1839 = vunpack.c.h.b16 %v618
    %v1840 = vunpack.c.l.b16 %v619
    %v1841 = vunpack.c.h.b16 %v619
    %v1842 = vunpack.c.l.b16 %v620
    %v1843 = vunpack.c.h.b16 %v620
    %v1844 = vunpack.c.l.b16 %v621
    %v1845 = vunpack.c.h.b16 %v621
    %v1846 = vunpack.c.l.b16 %v622
    %v1847 = vunpack.c.h.b16 %v622
    %v1848 = vunpack.c.l.b16 %v623
    %v1849 = vunpack.c.h.b16 %v623
    %v1850 = vunpack.c.l.b16 %v624
    %v1851 = vunpack.c.h.b16 %v624
    %v1852 = vunpack.c.l.b16 %v625
    %v1853 = vunpack.c.h.b16 %v625
    %v1854 = vunpack.c.l.b16 %v626
    %v1855 = vunpack.c.h.b16 %v626
    %v1856 = vunpack.c.l.b16 %v627
    %v1857 = vunpack.c.h.b16 %v627
    %v1858 = vunpack.c.l.b16 %v628
    %v1859 = vunpack.c.h.b16 %v628
    %v1860 = vunpack.c.l.b16 %v629
    %v1861 = vunpack.c.h.b16 %v629
    %v1862 = vunpack.c.l.b16 %v630
    %v1863 = vunpack.c.h.b16 %v630
    %v1864 = vunpack.c.l.b16 %v631
    %v1865 = vunpack.c.h.b16 %v631
    %v1866 = vunpack.c.l.b16 %v632
    %v1867 = vunpack.c.h.b16 %v632
    %v1868 = vunpack.c.l.b16 %v633
    %v1869 = vunpack.c.h.b16 %v633
    %v1870 = vunpack.c.l.b16 %v634
    %v1871 = vunpack.c.h.b16 %v634
    %v1872 = vunpack.c.l.b16 %v635
    %v1873 = vunpack.c.h.b16 %v635
    %v1874 = vunpack.c.l.b16 %v636
    %v1875 = vunpack.c.h.b16 %v636
    %v1876 = vunpack.c.l.b16 %v637
    %v1877 = vunpack.c.h.b16 %v637
    %v1878 = vunpack.c.l.b16 %v638
    %v1879 = vunpack.c.h.b16 %v638
    %v1880 = vunpack.c.l.b16 %v639
    %v1881 = vunpack.c.h.b16 %v639
    %v1882 = vunpack.c.l.b16 %v640
    %v1883 = vunpack.c.h.b16 %v640
    %v1884 = vunpack.c.l.b16 %v641
    %v1885 = vunpack.c.h.b16 %v641
    %v1886 = vunpack.c.l.b16 %v642
    %v1887 = vunpack.c.h.b16 %v642
    %v1888 = vunpack.c.l.b16 %v643
    %v1889 = vunpack.c.h.b16 %v643
    %v1890 = vunpack.c.l.b16 %v644
    %v1891 = vunpack.c.h.b16 %v644
    %v1892 = vunpack.c.l.b16 %v645
    %v1893 = vunpack.c.h.b16 %v645
    %v1894 = vunpack.c.l.b16 %v646
    %v1895 = vunpack.c.h.b16 %v646
    %v1896 = vunpack.c.l.b16 %v647
    %v1897 = vunpack.c.h.b16 %v647
    %v1898 = vunpack.c.l.b16 %v648
    %v1899 = vunpack.c.h.b16 %v648
    %v1900 = vunpack.c.l.b16 %v649
    %v1901 = vunpack.c.h.b16 %v649
    %v1902 = vunpack.c.l.b16 %v650
    %v1903 = vunpack.c.h.b16 %v650
    %v1904 = vunpack.c.l.b16 %v651
    %v1905 = vunpack.c.h.b16 %v651
    %v1906 = vunpack.c.l.b16 %v652
    %v1907 = vunpack.c.h.b16 %v652
    %v1908 = vunpack.c.l.b16 %v653
    %v1909 = vunpack.c.h.b16 %v653
    %v1910 = vunpack.c.l.b16 %v654
    %v1911 = vunpack.c.h.b16 %v654
    %v1912 = vunpack.c.l.b16 %v655
    %v1913 = vunpack.c.h.b16 %v655
    %v1914 = vunpack.c.l.b16 %v656
    %v1915 = vunpack.c.h.b16 %v656
    %v1916 = vunpack.c.l.b16 %v657
    %v1917 = vunpack.c.h.b16 %v657
    %v1918 = vunpack.c.l.b16 %v658
    %v1919 = vunpack.c.h.b16 %v658
    %v1920 = vunpack.c.l.b16 %v659
    %v1921 = vunpack.c.h.b16 %v659
    %v1922 = vunpack.c.l.b16 %v660
    %v1923 = vunpack.c.h.b16 %v660
    %v1924 = vunpack.c.l.b16 %v661
    %v1925 = vunpack.c.h.b16 %v661
    %v1926 = vunpack.c.l.b16 %v662
    %v1927 = vunpack.c.h.b16 %v662
    %v1928 = vunpack.c.l.b16 %v663
    %v1929 = vunpack.c.h.b16 %v663
    %v1930 = vunpack.c.l.b16 %v664
    %v1931 = vunpack.c.h.b16 %v664
    %v1932 = vunpack.c.l.b16 %v665
    %v1933 = vunpack.c.h.b16 %v665
    %v1934 = vunpack.c.l.b16 %v666
    %v1935 = vunpack.c.h.b16 %v666
    %v1936 = vunpack.c.l.b16 %v667
    %v1937 = vunpack.c.h.b16 %v667
    %v1938 = vunpack.c.l.b16 %v668
    %v1939 = vunpack.c.h.b16 %v668
    %v1940 = vunpack.c.l.b16 %v669
    %v1941 = vunpack.c.h.b16 %v669
    %v1942 = vunpack.c.l.b16 %v670
    %v1943 = vunpack.c.h.b16 %v670
    %v1944 = vunpack.c.l.b16 %v671
    %v1945 = vunpack.c.h.b16 %v671
    %v1946 = vunpack.c.l.b16 %v672
    %v1947 = vunpack.c.h.b16 %v672
    %v1948 = vunpack.c.l.b16 %v673
    %v1949 = vunpack.c.h.b16 %v673
    %v1950 = vunpack.c.l.b16 %v674
    %v1951 = vunpack.c.h.b16 %v674
    %v1952 = vunpack.c.l.b16 %v675
    %v1953 = vunpack.c.h.b16 %v675
    %v1954 = vunpack.c.l.b16 %v676
    %v1955 = vunpack.c.h.b16 %v676
    %v1956 = vunpack.c.l.b16 %v677
    %v1957 = vunpack.c.h.b16 %v677
    %v1958 = vunpack.c.l.b16 %v678
    %v1959 = vunpack.c.h.b16 %v678
    %v1960 = vunpack.c.l.b16 %v679
    %v1961 = vunpack.c.h.b16 %v679
    %v1962 = vunpack.c.l.b16 %v680
    %v1963 = vunpack.c.h.b16 %v680
    %v1964 = vunpack.c.l.b16 %v681
    %v1965 = vunpack.c.h.b16 %v681
    %v1966 = vunpack.c.l.b16 %v682
    %v1967 = vunpack.c.h.b16 %v682
    %v1968 = vunpack.c.l.b16 %v683
    %v1969 = vunpack.c.h.b16 %v683
    %v1970 = vunpack.c.l.b16 %v684
    %v1971 = vunpack.c.h.b16 %v684
    %v1972 = vunpack.c.l.b16 %v685
    %v1973 = vunpack.c.h.b16 %v685
    %v1974 = vunpack.c.l.b16 %v686
    %v1975 = vunpack.c.h.b16 %v686
    %v1976 = vunpack.c.l.b16 %v687
    %v1977 = vunpack.c.h.b16 %v687
    %v1978 = vunpack.c.l.b16 %v688
    %v1979 = vunpack.c.h.b16 %v688
    %v1980 = vunpack.c.l.b16 %v689
    %v1981 = vunpack.c.h.b16 %v689
    %v1982 = vunpack.c.l.b16 %v690
    %v1983 = vunpack.c.h.b16 %v690
    %v1984 = vunpack.c.l.b16 %v691
    %v1985 = vunpack.c.h.b16 %v691
    %v1986 = vunpack.c.l.b16 %v692
    %v1987 = vunpack.c.h.b16 %v692
    %v1988 = vunpack.c.l.b16 %v693
    %v1989 = vunpack.c.h.b16 %v693
    %v1990 = vunpack.c.l.b16 %v694
    %v1991 = vunpack.c.h.b16 %v694
    %v1992 = vunpack.c.l.b16 %v695
    %v1993 = vunpack.c.h.b16 %v695
    %v1994 = vunpack.c.l.b16 %v696
    %v1995 = vunpack.c.h.b16 %v696
    %v1996 = vunpack.c.l.b16 %v697
    %v1997 = vunpack.c.h.b16 %v697
    %v1998 = vunpack.c.l.b16 %v698
    %v1999 = vunpack.c.h.b16 %v698
    %v2000 = vunpack.c.l.b16 %v699
    %v2001 = vunpack.c.h.b16 %v699
    %v2002 = vunpack.c.l.b16 %v700
    %v2003 = vunpack.c.h.b16 %v700
    %v2004 = vunpack.c.l.b16 %v701
    %v2005 = vunpack.c.h.b16 %v701
    %v2006 = vunpack.c.l.b16 %v702
    %v2007 = vunpack.c.h.b16 %v702
    %v2008 = vunpack.c.l.b16 %v703
    %v2009 = vunpack.c.h.b16 %v703
    %v2010 = vunpack.c.l.b16 %v704
    %v2011 = vunpack.c.h.b16 %v704
    %v2012 = vunpack.c.l.b16 %v705
    %v2013 = vunpack.c.h.b16 %v705
    %v2014 = vunpack.c.l.b16 %v706
    %v2015 = vunpack.c.h.b16 %v706
    %v2016 = vunpack.c.l.b16 %v707
    %v2017 = vunpack.c.h.b16 %v707
    %v2018 = vunpack.c.l.b16 %v708
    %v2019 = vunpack.c.h.b16 %v708
    %v2020 = vunpack.c.l.b16 %v709
    %v2021 = vunpack.c.h.b16 %v709
    %v2022 = vunpack.c.l.b16 %v710
    %v2023 = vunpack.c.h.b16 %v710
    %v2024 = vunpack.c.l.b16 %v711
    %v2025 = vunpack.c.h.b16 %v711
    %v2026 = vunpack.c.l.b16 %v712
    %v2027 = vunpack.c.h.b16 %v712
    %v2028 = vunpack.c.l.b16 %v713
    %v2029 = vunpack.c.h.b16 %v713
    %v2030 = vunpack.c.l.b16 %v714
    %v2031 = vunpack.c.h.b16 %v714
    %v2032 = vunpack.c.l.b16 %v715
    %v2033 = vunpack.c.h.b16 %v715
    %v2034 = vunpack.c.l.b16 %v716
    %v2035 = vunpack.c.h.b16 %v716
    %v2036 = vunpack.c.l.b16 %v717
    %v2037 = vunpack.c.h.b16 %v717
    %v2038 = vunpack.c.l.b16 %v718
    %v2039 = vunpack.c.h.b16 %v718
    %v2040 = vunpack.c.l.b16 %v719
    %v2041 = vunpack.c.h.b16 %v719
    %v2042 = vunpack.c.l.b16 %v720
    %v2043 = vunpack.c.h.b16 %v720
    %v2044 = vunpack.c.l.b16 %v721
    %v2045 = vunpack.c.h.b16 %v721
    %v2046 = vunpack.c.l.b16 %v722
    %v2047 = vunpack.c.h.b16 %v722
    %v2048 = vunpack.c.l.b16 %v723
    %v2049 = vunpack.c.h.b16 %v723
    %v2050 = vunpack.c.l.b16 %v724
    %v2051 = vunpack.c.h.b16 %v724
    %v2052 = vunpack.c.l.b16 %v725
    %v2053 = vunpack.c.h.b16 %v725
    %v2054 = vunpack.c.l.b16 %v726
    %v2055 = vunpack.c.h.b16 %v726
    %v2056 = vunpack.c.l.b16 %v727
    %v2057 = vunpack.c.h.b16 %v727
    %v2058 = vunpack.c.l.b16 %v728
    %v2059 = vunpack.c.h.b16 %v728
    %v2060 = vunpack.c.l.b16 %v729
    %v2061 = vunpack.c.h.b16 %v729
    %v2062 = vunpack.c.l.b16 %v730
    %v2063 = vunpack.c.h.b16 %v730
    %v2064 = vunpack.c.l.b16 %v731
    %v2065 = vunpack.c.h.b16 %v731
    %v2066 = vunpack.c.l.b16 %v732
    %v2067 = vunpack.c.h.b16 %v732
    %v2068 = vunpack.c.l.b16 %v733
    %v2069 = vunpack.c.h.b16 %v733
    %v2070 = vunpack.c.l.b16 %v734
    %v2071 = vunpack.c.h.b16 %v734
    %v2072 = vunpack.c.l.b16 %v735
    %v2073 = vunpack.c.h.b16 %v735
    %v2074 = vunpack.c.l.b16 %v736
    %v2075 = vunpack.c.h.b16 %v736
    %v2076 = vunpack.c.l.b16 %v737
    %v2077 = vunpack.c.h.b16 %v737
    %v2078 = vunpack.c.l.b16 %v738
    %v2079 = vunpack.c.h.b16 %v738
    %v2080 = vunpack.c.l.b16 %v739
    %v2081 = vunpack.c.h.b16 %v739
    %v2082 = vunpack.c.l.b16 %v740
    %v2083 = vunpack.c.h.b16 %v740
    %v2084 = vunpack.c.l.b16 %v741
    %v2085 = vunpack.c.h.b16 %v741
    %v2086 = vunpack.c.l.b16 %v742
    %v2087 = vunpack.c.h.b16 %v742
    %v2088 = vunpack.c.l.b16 %v743
    %v2089 = vunpack.c.h.b16 %v743
    %v2090 = vunpack.c.l.b16 %v744
    %v2091 = vunpack.c.h.b16 %v744
    %v2092 = vunpack.c.l.b16 %v745
    %v2093 = vunpack.c.h.b16 %v745
    %v2094 = vunpack.c.l.b16 %v746
    %v2095 = vunpack.c.h.b16 %v746
    %v2096 = vunpack.c.l.b16 %v747
    %v2097 = vunpack.c.h.b16 %v747
    %v2098 = vunpack.c.l.b16 %v748
    %v2099 = vunpack.c.h.b16 %v748
    %v2100 = vunpack.c.l.b16 %v749
    %v2101 = vunpack.c.h.b16 %v749
    %v2102 = vunpack.c.l.b16 %v750
    %v2103 = vunpack.c.h.b16 %v750
    %v2104 = vunpack.c.l.b16 %v751
    %v2105 = vunpack.c.h.b16 %v751
    %v2106 = vunpack.c.l.b16 %v752
    %v2107 = vunpack.c.h.b16 %v752
    %v2108 = vunpack.c.l.b16 %v753
    %v2109 = vunpack.c.h.b16 %v753
    %v2110 = vunpack.c.l.b16 %v754
    %v2111 = vunpack.c.h.b16 %v754
    %v2112 = vunpack.c.l.b16 %v755
    %v2113 = vunpack.c.h.b16 %v755
    %v2114 = vunpack.c.l.b16 %v756
    %v2115 = vunpack.c.h.b16 %v756
    %v2116 = vunpack.c.l.b16 %v757
    %v2117 = vunpack.c.h.b16 %v757
    %v2118 = vunpack.c.l.b16 %v758
    %v2119 = vunpack.c.h.b16 %v758
    %v2120 = vunpack.c.l.b16 %v759
    %v2121 = vunpack.c.h.b16 %v759
    %v2122 = vunpack.c.l.b16 %v760
    %v2123 = vunpack.c.h.b16 %v760
    %v2124 = vunpack.c.l.b16 %v761
    %v2125 = vunpack.c.h.b16 %v761
    %v2126 = vunpack.c.l.b16 %v762
    %v2127 = vunpack.c.h.b16 %v762
    %v2128 = vunpack.c.l.b16 %v763
    %v2129 = vunpack.c.h.b16 %v763
    %v2130 = vunpack.c.l.b16 %v764
    %v2131 = vunpack.c.h.b16 %v764
    %v2132 = vunpack.c.l.b16 %v765
    %v2133 = vunpack.c.h.b16 %v765
    %v2134 = vunpack.c.l.b16 %v766
    %v2135 = vunpack.c.h.b16 %v766
    %v2136 = vunpack.c.l.b16 %v767
    %v2137 = vunpack.c.h.b16 %v767
    %v2138 = vunpack.c.l.b16 %v768
    %v2139 = vunpack.c.h.b16 %v768
    %v2140 = vunpack.c.l.b16 %v769
    %v2141 = vunpack.c.h.b16 %v769
    %v2142 = vunpack.c.l.b16 %v770
    %v2143 = vunpack.c.h.b16 %v770
    %v2144 = vunpack.c.l.b16 %v771
    %v2145 = vunpack.c.h.b16 %v771
    %v2146 = vunpack.c.l.b16 %v772
    %v2147 = vunpack.c.h.b16 %v772
    %v2148 = vunpack.c.l.b16 %v773
    %v2149 = vunpack.c.h.b16 %v773
    %v2150 = vunpack.c.l.b16 %v774
    %v2151 = vunpack.c.h.b16 %v774
    %v2152 = vunpack.c.l.b16 %v775
    %v2153 = vunpack.c.h.b16 %v775
    %v2154 = vunpack.c.l.b16 %v776
    %v2155 = vunpack.c.h.b16 %v776
    %v2156 = vunpack.c.l.b16 %v777
    %v2157 = vunpack.c.h.b16 %v777
    %v2158 = vunpack.c.l.b16 %v778
    %v2159 = vunpack.c.h.b16 %v778
    %v2160 = vunpack.c.l.b16 %v779
    %v2161 = vunpack.c.h.b16 %v779
    %v2162 = vunpack.c.l.b16 %v780
    %v2163 = vunpack.c.h.b16 %v780
    %v2164 = vunpack.c.l.b16 %v781
    %v2165 = vunpack.c.h.b16 %v781
    %v2166 = vunpack.c.l.b16 %v782
    %v2167 = vunpack.c.h.b16 %v782
    %v2168 = vunpack.c.l.b16 %v783
    %v2169 = vunpack.c.h.b16 %v783
    %v2170 = vunpack.c.l.b16 %v784
    %v2171 = vunpack.c.h.b16 %v784
    %v2172 = vunpack.c.l.b16 %v785
    %v2173 = vunpack.c.h.b16 %v785
    %v2174 = vunpack.c.l.b16 %v786
    %v2175 = vunpack.c.h.b16 %v786
    %v2176 = vunpack.c.l.b16 %v787
    %v2177 = vunpack.c.h.b16 %v787
    %v2178 = vunpack.c.l.b16 %v788
    %v2179 = vunpack.c.h.b16 %v788
    %v2180 = vunpack.c.l.b16 %v789
    %v2181 = vunpack.c.h.b16 %v789
    %v2182 = vunpack.c.l.b16 %v790
    %v2183 = vunpack.c.h.b16 %v790
    %v2184 = vunpack.c.l.b16 %v791
    %v2185 = vunpack.c.h.b16 %v791
    %v2186 = vunpack.c.l.b16 %v792
    %v2187 = vunpack.c.h.b16 %v792
    %v2188 = vunpack.c.l.b16 %v793
    %v2189 = vunpack.c.h.b16 %v793
    %v2190 = vunpack.c.l.b16 %v794
    %v2191 = vunpack.c.h.b16 %v794
    %v2192 = vunpack.c.l.b16 %v795
    %v2193 = vunpack.c.h.b16 %v795
    %v2194 = vunpack.c.l.b16 %v796
    %v2195 = vunpack.c.h.b16 %v796
    %v2196 = vunpack.c.l.b16 %v797
    %v2197 = vunpack.c.h.b16 %v797
    %v2198 = vunpack.c.l.b16 %v798
    %v2199 = vunpack.c.h.b16 %v798
    %v2200 = vunpack.c.l.b16 %v799
    %v2201 = vunpack.c.h.b16 %v799
    %v2202 = vunpack.c.l.b16 %v800
    %v2203 = vunpack.c.h.b16 %v800
    %v2204 = vunpack.c.l.b16 %v801
    %v2205 = vunpack.c.h.b16 %v801
    %v2206 = vunpack.c.l.b16 %v802
    %v2207 = vunpack.c.h.b16 %v802
    %v2208 = vunpack.c.l.b16 %v803
    %v2209 = vunpack.c.h.b16 %v803
    %v2210 = vunpack.c.l.b16 %v804
    %v2211 = vunpack.c.h.b16 %v804
    %v2212 = vunpack.c.l.b16 %v805
    %v2213 = vunpack.c.h.b16 %v805
    %v2214 = vunpack.c.l.b16 %v806
    %v2215 = vunpack.c.h.b16 %v806
    %v2216 = vunpack.c.l.b16 %v807
    %v2217 = vunpack.c.h.b16 %v807
    %v2218 = vunpack.c.l.b16 %v808
    %v2219 = vunpack.c.h.b16 %v808
    %v2220 = vunpack.c.l.b16 %v809
    %v2221 = vunpack.c.h.b16 %v809
    %v2222 = vunpack.c.l.b16 %v810
    %v2223 = vunpack.c.h.b16 %v810
    %v2224 = vunpack.c.l.b16 %v811
    %v2225 = vunpack.c.h.b16 %v811
    %v2226 = vunpack.c.l.b16 %v812
    %v2227 = vunpack.c.h.b16 %v812
    %v2228 = vunpack.c.l.b16 %v813
    %v2229 = vunpack.c.h.b16 %v813
    %v2230 = vunpack.c.l.b16 %v814
    %v2231 = vunpack.c.h.b16 %v814
    %v2232 = vunpack.c.l.b16 %v815
    %v2233 = vunpack.c.h.b16 %v815
    %v2234 = vunpack.c.l.b16 %v816
    %v2235 = vunpack.c.h.b16 %v816
    %v2236 = vunpack.c.l.b16 %v817
    %v2237 = vunpack.c.h.b16 %v817
    %v2238 = vunpack.c.l.b16 %v818
    %v2239 = vunpack.c.h.b16 %v818
    %v2240 = vunpack.c.l.b16 %v819
    %v2241 = vunpack.c.h.b16 %v819
    %v2242 = vunpack.c.l.b16 %v820
    %v2243 = vunpack.c.h.b16 %v820
    %v2244 = vunpack.c.l.b16 %v821
    %v2245 = vunpack.c.h.b16 %v821
    %v2246 = vunpack.c.l.b16 %v822
    %v2247 = vunpack.c.h.b16 %v822
    %v2248 = vunpack.c.l.b16 %v823
    %v2249 = vunpack.c.h.b16 %v823
    %v2250 = vunpack.c.l.b16 %v824
    %v2251 = vunpack.c.h.b16 %v824
    %v2252 = vunpack.c.l.b16 %v825
    %v2253 = vunpack.c.h.b16 %v825
    %v2254 = vunpack.c.l.b16 %v826
    %v2255 = vunpack.c.h.b16 %v826
    %v2256 = vunpack.c.l.b16 %v827
    %v2257 = vunpack.c.h.b16 %v827
    %v2258 = vunpack.c.l.b16 %v828
    %v2259 = vunpack.c.h.b16 %v828
    %v2260 = vunpack.c.l.b16 %v829
    %v2261 = vunpack.c.h.b16 %v829
    %v2262 = vunpack.c.l.b16 %v830
    %v2263 = vunpack.c.h.b16 %v830
    %v2264 = vunpack.c.l.b16 %v831
    %v2265 = vunpack.c.h.b16 %v831
    %v2266 = vunpack.c.l.b16 %v832
    %v2267 = vunpack.c.h.b16 %v832
    %v2268 = vunpack.c.l.b16 %v833
    %v2269 = vunpack.c.h.b16 %v833
    %v2270 = vunpack.c.l.b16 %v834
    %v2271 = vunpack.c.h.b16 %v834
    %v2272 = vunpack.c.l.b16 %v835
    %v2273 = vunpack.c.h.b16 %v835
    %v2274 = vunpack.c.l.b16 %v836
    %v2275 = vunpack.c.h.b16 %v836
    %v2276 = vunpack.c.l.b16 %v837
    %v2277 = vunpack.c.h.b16 %v837
    %v2278 = vunpack.c.l.b16 %v838
    %v2279 = vunpack.c.h.b16 %v838
    %v2280 = vunpack.c.l.b16 %v839
    %v2281 = vunpack.c.h.b16 %v839
    %v2282 = vunpack.c.l.b16 %v840
    %v2283 = vunpack.c.h.b16 %v840
    %v2284 = vunpack.c.l.b16 %v841
    %v2285 = vunpack.c.h.b16 %v841
    %v2286 = vunpack.c.l.b16 %v842
    %v2287 = vunpack.c.h.b16 %v842
    %v2288 = vunpack.c.l.b16 %v843
    %v2289 = vunpack.c.h.b16 %v843
    %v2290 = vunpack.c.l.b16 %v844
    %v2291 = vunpack.c.h.b16 %v844
    %v2292 = vunpack.c.l.b16 %v845
    %v2293 = vunpack.c.h.b16 %v845
    %v2294 = vunpack.c.l.b16 %v846
    %v2295 = vunpack.c.h.b16 %v846
    %v2296 = vunpack.c.l.b16 %v847
    %v2297 = vunpack.c.h.b16 %v847
    %v2298 = vunpack.c.l.b16 %v848
    %v2299 = vunpack.c.h.b16 %v848
    %v2300 = vunpack.c.l.b16 %v849
    %v2301 = vunpack.c.h.b16 %v849
    %v2302 = vunpack.c.l.b16 %v850
    %v2303 = vunpack.c.h.b16 %v850
    %v2304 = vunpack.c.l.b16 %v851
    %v2305 = vunpack.c.h.b16 %v851
    %v2306 = vunpack.c.l.b16 %v852
    %v2307 = vunpack.c.h.b16 %v852
    %v2308 = vunpack.c.l.b16 %v853
    %v2309 = vunpack.c.h.b16 %v853
    %v2310 = vunpack.c.l.b16 %v854
    %v2311 = vunpack.c.h.b16 %v854
    %v2312 = vunpack.c.l.b16 %v855
    %v2313 = vunpack.c.h.b16 %v855
    %v2314 = vunpack.c.l.b16 %v856
    %v2315 = vunpack.c.h.b16 %v856
    %v2316 = vunpack.c.l.b16 %v857
    %v2317 = vunpack.c.h.b16 %v857
    %v2318 = vunpack.c.l.b16 %v858
    %v2319 = vunpack.c.h.b16 %v858
    %v2320 = vunpack.c.l.b16 %v859
    %v2321 = vunpack.c.h.b16 %v859
    %v2322 = vunpack.c.l.b16 %v860
    %v2323 = vunpack.c.h.b16 %v860
    %v2324 = vunpack.c.l.b16 %v861
    %v2325 = vunpack.c.h.b16 %v861
    %v2326 = vunpack.c.l.b16 %v862
    %v2327 = vunpack.c.h.b16 %v862
    %v2328 = vunpack.c.l.b16 %v863
    %v2329 = vunpack.c.h.b16 %v863
    %v2330 = vunpack.c.l.b16 %v864
    %v2331 = vunpack.c.h.b16 %v864
    %v2332 = vunpack.c.l.b16 %v865
    %v2333 = vunpack.c.h.b16 %v865
    %v2334 = vunpack.c.l.b16 %v866
    %v2335 = vunpack.c.h.b16 %v866
    %v2336 = vunpack.c.l.b16 %v867
    %v2337 = vunpack.c.h.b16 %v867
    %v2338 = vunpack.c.l.b16 %v868
    %v2339 = vunpack.c.h.b16 %v868
    %v2340 = vunpack.c.l.b16 %v869
    %v2341 = vunpack.c.h.b16 %v869
    %v2342 = vunpack.c.l.b16 %v870
    %v2343 = vunpack.c.h.b16 %v870
    %v2344 = vunpack.c.l.b16 %v871
    %v2345 = vunpack.c.h.b16 %v871
    %v2346 = vunpack.c.l.b16 %v872
    %v2347 = vunpack.c.h.b16 %v872
    %v2348 = vunpack.c.l.b16 %v873
    %v2349 = vunpack.c.h.b16 %v873
    %v2350 = vunpack.c.l.b16 %v874
    %v2351 = vunpack.c.h.b16 %v874
    %v2352 = vunpack.c.l.b16 %v875
    %v2353 = vunpack.c.h.b16 %v875
    %v2354 = vunpack.c.l.b16 %v876
    %v2355 = vunpack.c.h.b16 %v876
    %v2356 = vunpack.c.l.b16 %v877
    %v2357 = vunpack.c.h.b16 %v877
    %v2358 = vunpack.c.l.b16 %v878
    %v2359 = vunpack.c.h.b16 %v878
    %v2360 = vunpack.c.l.b16 %v879
    %v2361 = vunpack.c.h.b16 %v879
    %v2362 = vunpack.c.l.b16 %v880
    %v2363 = vunpack.c.h.b16 %v880
    %v2364 = vunpack.c.l.b16 %v881
    %v2365 = vunpack.c.h.b16 %v881
    %v2366 = vunpack.c.l.b16 %v882
    %v2367 = vunpack.c.h.b16 %v882
    %v2368 = vunpack.c.l.b16 %v883
    %v2369 = vunpack.c.h.b16 %v883
    %v2370 = vunpack.c.l.b16 %v884
    %v2371 = vunpack.c.h.b16 %v884
    %v2372 = vunpack.c.l.b16 %v885
    %v2373 = vunpack.c.h.b16 %v885
    %v2374 = vunpack.c.l.b16 %v886
    %v2375 = vunpack.c.h.b16 %v886
    %v2376 = vunpack.c.l.b16 %v887
    %v2377 = vunpack.c.h.b16 %v887
    %v2378 = vunpack.c.l.b16 %v888
    %v2379 = vunpack.c.h.b16 %v888
    %v2380 = vunpack.c.l.b16 %v889
    %v2381 = vunpack.c.h.b16 %v889
    %v2382 = vunpack.c.l.b16 %v890
    %v2383 = vunpack.c.h.b16 %v890
    %v2384 = vunpack.c.l.b16 %v891
    %v2385 = vunpack.c.h.b16 %v891
    %v2386 = vunpack.c.l.b16 %v892
    %v2387 = vunpack.c.h.b16 %v892
    %v2388 = vunpack.c.l.b16 %v893
    %v2389 = vunpack.c.h.b16 %v893
    %v2390 = vunpack.c.l.b16 %v894
    %v2391 = vunpack.c.h.b16 %v894
    %v2392 = vunpack.c.l.b16 %v895
    %v2393 = vunpack.c.h.b16 %v895
    %v2394 = vunpack.c.l.b16 %v896
    %v2395 = vunpack.c.h.b16 %v896
    %v2396 = vunpack.c.l.b16 %v897
    %v2397 = vunpack.c.h.b16 %v897
    %v2398 = vunpack.c.l.b16 %v898
    %v2399 = vunpack.c.h.b16 %v898
    %v2400 = vunpack.c.l.b16 %v899
    %v2401 = vunpack.c.h.b16 %v899
    %v2402 = vunpack.c.l.b16 %v900
    %v2403 = vunpack.c.h.b16 %v900
    %v2404 = vunpack.c.l.b16 %v901
    %v2405 = vunpack.c.h.b16 %v901
    %v2406 = vunpack.c.l.b16 %v902
    %v2407 = vunpack.c.h.b16 %v902
    %v2408 = vunpack.c.l.b16 %v903
    %v2409 = vunpack.c.h.b16 %v903
    %v2410 = vunpack.c.l.b16 %v904
    %v2411 = vunpack.c.h.b16 %v904
    %v2412 = vunpack.c.l.b16 %v905
    %v2413 = vunpack.c.h.b16 %v905
    %v2414 = vunpack.c.l.b16 %v906
    %v2415 = vunpack.c.h.b16 %v906
    %v2416 = vunpack.c.l.b16 %v907
    %v2417 = vunpack.c.h.b16 %v907
    %v2418 = vunpack.c.l.b16 %v908
    %v2419 = vunpack.c.h.b16 %v908
    %v2420 = vunpack.c.l.b16 %v909
    %v2421 = vunpack.c.h.b16 %v909
    %v2422 = vunpack.c.l.b16 %v910
    %v2423 = vunpack.c.h.b16 %v910
    %v2424 = vunpack.c.l.b16 %v911
    %v2425 = vunpack.c.h.b16 %v911
    %v2426 = vunpack.c.l.b16 %v912
    %v2427 = vunpack.c.h.b16 %v912
    %v2428 = vunpack.c.l.b16 %v913
    %v2429 = vunpack.c.h.b16 %v913
    %v2430 = vunpack.c.l.b16 %v914
    %v2431 = vunpack.c.h.b16 %v914
    %v2432 = vunpack.c.l.b16 %v915
    %v2433 = vunpack.c.h.b16 %v915
    %v2434 = vunpack.c.l.b16 %v916
    %v2435 = vunpack.c.h.b16 %v916
    %v2436 = vunpack.c.l.b16 %v917
    %v2437 = vunpack.c.h.b16 %v917
    %v2438 = vunpack.c.l.b16 %v918
    %v2439 = vunpack.c.h.b16 %v918
    %v2440 = vunpack.c.l.b16 %v919
    %v2441 = vunpack.c.h.b16 %v919
    %v2442 = vpack.c.b16 %v1446, %v1442
    %v2443 = vpack.c.b16 %v1447, %v1443
    %v2444 = vpack.c.b16 %v1448, %v1444
    %v2445 = vpack.c.b16 %v1449, %v1445
    %v2446 = vpack.c.b16 %v1454, %v1450
    %v2447 = vpack.c.b16 %v1455, %v1451
    %v2448 = vpack.c.b16 %v1456, %v1452
    %v2449 = vpack.c.b16 %v1457, %v1453
    %v2450 = vpack.c.b16 %v1462, %v1458
    %v2451 = vpack.c.b16 %v1463, %v1459
    %v2452 = vpack.c.b16 %v1464, %v1460
    %v2453 = vpack.c.b16 %v1465, %v1461
    %v2454 = vpack.c.b16 %v1470, %v1466
    %v2455 = vpack.c.b16 %v1471, %v1467
    %v2456 = vpack.c.b16 %v1472, %v1468
    %v2457 = vpack.c.b16 %v1473, %v1469
    %v2458 = vpack.c.b16 %v1478, %v1474
    %v2459 = vpack.c.b16 %v1479, %v1475
    %v2460 = vpack.c.b16 %v1480, %v1476
    %v2461 = vpack.c.b16 %v1481, %v1477
    %v2462 = vpack.c.b16 %v1486, %v1482
    %v2463 = vpack.c.b16 %v1487, %v1483
    %v2464 = vpack.c.b16 %v1488, %v1484
    %v2465 = vpack.c.b16 %v1489, %v1485
    %v2466 = vpack.c.b16 %v1494, %v1490
    %v2467 = vpack.c.b16 %v1495, %v1491
    %v2468 = vpack.c.b16 %v1496, %v1492
    %v2469 = vpack.c.b16 %v1497, %v1493
    %v2470 = vpack.c.b16 %v1502, %v1498
    %v2471 = vpack.c.b16 %v1503, %v1499
    %v2472 = vpack.c.b16 %v1504, %v1500
    %v2473 = vpack.c.b16 %v1505, %v1501
    %v2474 = vpack.c.b16 %v1510, %v1506
    %v2475 = vpack.c.b16 %v1511, %v1507
    %v2476 = vpack.c.b16 %v1512, %v1508
    %v2477 = vpack.c.b16 %v1513, %v1509
    %v2478 = vpack.c.b16 %v1518, %v1514
    %v2479 = vpack.c.b16 %v1519, %v1515
    %v2480 = vpack.c.b16 %v1520, %v1516
    %v2481 = vpack.c.b16 %v1521, %v1517
    %v2482 = vpack.c.b16 %v1526, %v1522
    %v2483 = vpack.c.b16 %v1527, %v1523
    %v2484 = vpack.c.b16 %v1528, %v1524
    %v2485 = vpack.c.b16 %v1529, %v1525
    %v2486 = vpack.c.b16 %v1534, %v1530
    %v2487 = vpack.c.b16 %v1535, %v1531
    %v2488 = vpack.c.b16 %v1536, %v1532
    %v2489 = vpack.c.b16 %v1537, %v1533
    %v2490 = vpack.c.b16 %v1542, %v1538
    %v2491 = vpack.c.b16 %v1543, %v1539
    %v2492 = vpack.c.b16 %v1544, %v1540
    %v2493 = vpack.c.b16 %v1545, %v1541
    %v2494 = vpack.c.b16 %v1550, %v1546
    %v2495 = vpack.c.b16 %v1551, %v1547
    %v2496 = vpack.c.b16 %v1552, %v1548
    %v2497 = vpack.c.b16 %v1553, %v1549
    %v2498 = vpack.c.b16 %v1558, %v1554
    %v2499 = vpack.c.b16 %v1559, %v1555
    %v2500 = vpack.c.b16 %v1560, %v1556
    %v2501 = vpack.c.b16 %v1561, %v1557
    %v2502 = vpack.c.b16 %v1566, %v1562
    %v2503 = vpack.c.b16 %v1567, %v1563
    %v2504 = vpack.c.b16 %v1568, %v1564
    %v2505 = vpack.c.b16 %v1569, %v1565
    %v2506 = vpack.c.b16 %v1574, %v1570
    %v2507 = vpack.c.b16 %v1575, %v1571
    %v2508 = vpack.c.b16 %v1576, %v1572
    %v2509 = vpack.c.b16 %v1577, %v1573
    %v2510 = vpack.c.b16 %v1582, %v1578
    %v2511 = vpack.c.b16 %v1583, %v1579
    %v2512 = vpack.c.b16 %v1584, %v1580
    %v2513 = vpack.c.b16 %v1585, %v1581
    %v2514 = vpack.c.b16 %v1590, %v1586
    %v2515 = vpack.c.b16 %v1591, %v1587
    %v2516 = vpack.c.b16 %v1592, %v1588
    %v2517 = vpack.c.b16 %v1593, %v1589
    %v2518 = vpack.c.b16 %v1598, %v1594
    %v2519 = vpack.c.b16 %v1599, %v1595
    %v2520 = vpack.c.b16 %v1600, %v1596
    %v2521 = vpack.c.b16 %v1601, %v1597
    %v2522 = vpack.c.b16 %v1606, %v1602
    %v2523 = vpack.c.b16 %v1607, %v1603
    %v2524 = vpack.c.b16 %v1608, %v1604
    %v2525 = vpack.c.b16 %v1609, %v1605
    %v2526 = vpack.c.b16 %v1614, %v1610
    %v2527 = vpack.c.b16 %v1615, %v1611
    %v2528 = vpack.c.b16 %v1616, %v1612
    %v2529 = vpack.c.b16 %v1617, %v1613
    %v2530 = vpack.c.b16 %v1622, %v1618
    %v2531 = vpack.c.b16 %v1623, %v1619
    %v2532 = vpack.c.b16 %v1624, %v1620
    %v2533 = vpack.c.b16 %v1625, %v1621
    %v2534 = vpack.c.b16 %v1630, %v1626
    %v2535 = vpack.c.b16 %v1631, %v1627
    %v2536 = vpack.c.b16 %v1632, %v1628
    %v2537 = vpack.c.b16 %v1633, %v1629
    %v2538 = vpack.c.b16 %v1638, %v1634
    %v2539 = vpack.c.b16 %v1639, %v1635
    %v2540 = vpack.c.b16 %v1640, %v1636
    %v2541 = vpack.c.b16 %v1641, %v1637
    %v2542 = vpack.c.b16 %v1646, %v1642
    %v2543 = vpack.c.b16 %v1647, %v1643
    %v2544 = vpack.c.b16 %v1648, %v1644
    %v2545 = vpack.c.b16 %v1649, %v1645
    %v2546 = vpack.c.b16 %v1654, %v1650
    %v2547 = vpack.c.b16 %v1655, %v1651
    %v2548 = vpack.c.b16 %v1656, %v1652
    %v2549 = vpack.c.b16 %v1657, %v1653
    %v2550 = vpack.c.b16 %v1662, %v1658
    %v2551 = vpack.c.b16 %v1663, %v1659
    %v2552 = vpack.c.b16 %v1664, %v1660
    %v2553 = vpack.c.b16 %v1665, %v1661
    %v2554 = vpack.c.b16 %v1670, %v1666
    %v2555 = vpack.c.b16 %v1671, %v1667
    %v2556 = vpack.c.b16 %v1672, %v1668
    %v2557 = vpack.c.b16 %v1673, %v1669
    %v2558 = vpack.c.b16 %v1678, %v1674
    %v2559 = vpack.c.b16 %v1679, %v1675
    %v2560 = vpack.c.b16 %v1680, %v1676
    %v2561 = vpack.c.b16 %v1681, %v1677
    %v2562 = vpack.c.b16 %v1686, %v1682
    %v2563 = vpack.c.b16 %v1687, %v1683
    %v2564 = vpack.c.b16 %v1688, %v1684
    %v2565 = vpack.c.b16 %v1689, %v1685
    %v2566 = vpack.c.b16 %v1694, %v1690
    %v2567 = vpack.c.b16 %v1695, %v1691
    %v2568 = vpack.c.b16 %v1696, %v1692
    %v2569 = vpack.c.b16 %v1697, %v1693
    %v2570 = vpack.c.b16 %v1702, %v1698
    %v2571 = vpack.c.b16 %v1703, %v1699
    %v2572 = vpack.c.b16 %v1704, %v1700
    %v2573 = vpack.c.b16 %v1705, %v1701
    %v2574 = vpack.c.b16 %v1710, %v1706
    %v2575 = vpack.c.b16 %v1711, %v1707
    %v2576 = vpack.c.b16 %v1712, %v1708
    %v2577 = vpack.c.b16 %v1713, %v1709
    %v2578 = vpack.c.b16 %v1718, %v1714
    %v2579 = vpack.c.b16 %v1719, %v1715
    %v2580 = vpack.c.b16 %v1720, %v1716
    %v2581 = vpack.c.b16 %v1721, %v1717
    %v2582 = vpack.c.b16 %v1726, %v1722
    %v2583 = vpack.c.b16 %v1727, %v1723
    %v2584 = vpack.c.b16 %v1728, %v1724
    %v2585 = vpack.c.b16 %v1729, %v1725
    %v2586 = vpack.c.b16 %v1734, %v1730
    %v2587 = vpack.c.b16 %v1735, %v1731
    %v2588 = vpack.c.b16 %v1736, %v1732
    %v2589 = vpack.c.b16 %v1737, %v1733
    %v2590 = vpack.c.b16 %v1742, %v1738
    %v2591 = vpack.c.b16 %v1743, %v1739
    %v2592 = vpack.c.b16 %v1744, %v1740
    %v2593 = vpack.c.b16 %v1745, %v1741
    %v2594 = vpack.c.b16 %v1750, %v1746
    %v2595 = vpack.c.b16 %v1751, %v1747
    %v2596 = vpack.c.b16 %v1752, %v1748
    %v2597 = vpack.c.b16 %v1753, %v1749
    %v2598 = vpack.c.b16 %v1758, %v1754
    %v2599 = vpack.c.b16 %v1759, %v1755
    %v2600 = vpack.c.b16 %v1760, %v1756
    %v2601 = vpack.c.b16 %v1761, %v1757
    %v2602 = vpack.c.b16 %v1766, %v1762
    %v2603 = vpack.c.b16 %v1767, %v1763
    %v2604 = vpack.c.b16 %v1768, %v1764
    %v2605 = vpack.c.b16 %v1769, %v1765
    %v2606 = vpack.c.b16 %v1774, %v1770
    %v2607 = vpack.c.b16 %v1775, %v1771
    %v2608 = vpack.c.b16 %v1776, %v1772
    %v2609 = vpack.c.b16 %v1777, %v1773
    %v2610 = vpack.c.b16 %v1782, %v1778
    %v2611 = vpack.c.b16 %v1783, %v1779
    %v2612 = vpack.c.b16 %v1784, %v1780
    %v2613 = vpack.c.b16 %v1785, %v1781
    %v2614 = vpack.c.b16 %v1790, %v1786
    %v2615 = vpack.c.b16 %v1791, %v1787
    %v2616 = vpack.c.b16 %v1792, %v1788
    %v2617 = vpack.c.b16 %v1793, %v1789
    %v2618 = vpack.c.b16 %v1798, %v1794
    %v2619 = vpack.c.b16 %v1799, %v1795
    %v2620 = vpack.c.b16 %v1800, %v1796
    %v2621 = vpack.c.b16 %v1801, %v1797
    %v2622 = vpack.c.b16 %v1806, %v1802
    %v2623 = vpack.c.b16 %v1807, %v1803
    %v2624 = vpack.c.b16 %v1808, %v1804
    %v2625 = vpack.c.b16 %v1809, %v1805
    %v2626 = vpack.c.b16 %v1814, %v1810
    %v2627 = vpack.c.b16 %v1815, %v1811
    %v2628 = vpack.c.b16 %v1816, %v1812
    %v2629 = vpack.c.b16 %v1817, %v1813
    %v2630 = vpack.c.b16 %v1822, %v1818
    %v2631 = vpack.c.b16 %v1823, %v1819
    %v2632 = vpack.c.b16 %v1824, %v1820
    %v2633 = vpack.c.b16 %v1825, %v1821
    %v2634 = vpack.c.b16 %v1830, %v1826
    %v2635 = vpack.c.b16 %v1831, %v1827
    %v2636 = vpack.c.b16 %v1832, %v1828
    %v2637 = vpack.c.b16 %v1833, %v1829
    %v2638 = vpack.c.b16 %v1838, %v1834
    %v2639 = vpack.c.b16 %v1839, %v1835
    %v2640 = vpack.c.b16 %v1840, %v1836
    %v2641 = vpack.c.b16 %v1841, %v1837
    %v2642 = vpack.c.b16 %v1846, %v1842
    %v2643 = vpack.c.b16 %v1847, %v1843
    %v2644 = vpack.c.b16 %v1848, %v1844
    %v2645 = vpack.c.b16 %v1849, %v1845
    %v2646 = vpack.c.b16 %v1854, %v1850
    %v2647 = vpack.c.b16 %v1855, %v1851
    %v2648 = vpack.c.b16 %v1856, %v1852
    %v2649 = vpack.c.b16 %v1857, %v1853
    %v2650 = vpack.c.b16 %v1862, %v1858
    %v2651 = vpack.c.b16 %v1863, %v1859
    %v2652 = vpack.c.b16 %v1864, %v1860
    %v2653 = vpack.c.b16 %v1865, %v1861
    %v2654 = vpack.c.b16 %v1870, %v1866
    %v2655 = vpack.c.b16 %v1871, %v1867
    %v2656 = vpack.c.b16 %v1872, %v1868
    %v2657 = vpack.c.b16 %v1873, %v1869
    %v2658 = vpack.c.b16 %v1878, %v1874
    %v2659 = vpack.c.b16 %v1879, %v1875
    %v2660 = vpack.c.b16 %v1880, %v1876
    %v2661 = vpack.c.b16 %v1881, %v1877
    %v2662 = vpack.c.b16 %v1886, %v1882
    %v2663 = vpack.c.b16 %v1887, %v1883
    %v2664 = vpack.c.b16 %v1888, %v1884
    %v2665 = vpack.c.b16 %v1889, %v1885
    %v2666 = vpack.c.b16 %v1894, %v1890
    %v2667 = vpack.c.b16 %v1895, %v1891
    %v2668 = vpack.c.b16 %v1896, %v1892
    %v2669 = vpack.c.b16 %v1897, %v1893
    %v2670 = vpack.c.b16 %v1902, %v1898
    %v2671 = vpack.c.b16 %v1903, %v1899
    %v2672 = vpack.c.b16 %v1904, %v1900
    %v2673 = vpack.c.b16 %v1905, %v1901
    %v2674 = vpack.c.b16 %v1910, %v1906
    %v2675 = vpack.c.b16 %v1911, %v1907
    %v2676 = vpack.c.b16 %v1912, %v1908
    %v2677 = vpack.c.b16 %v1913, %v1909
    %v2678 = vpack.c.b16 %v1918, %v1914
    %v2679 = vpack.c.b16 %v1919, %v1915
    %v2680 = vpack.c.b16 %v1920, %v1916
    %v2681 = vpack.c.b16 %v1921, %v1917
    %v2682 = vpack.c.b16 %v1926, %v1922
    %v2683 = vpack.c.b16 %v1927, %v1923
    %v2684 = vpack.c.b16 %v1928, %v1924
    %v2685 = vpack.c.b16 %v1929, %v1925
    %v2686 = vpack.c.b16 %v1934, %v1930
    %v2687 = vpack.c.b16 %v1935, %v1931
    %v2688 = vpack.c.b16 %v1936, %v1932
    %v2689 = vpack.c.b16 %v1937, %v1933
    %v2690 = vpack.c.b16 %v1942, %v1938
    %v2691 = vpack.c.b16 %v1943, %v1939
    %v2692 = vpack.c.b16 %v1944, %v1940
    %v2693 = vpack.c.b16 %v1945, %v1941
    %v2694 = vpack.c.b16 %v1950, %v1946
    %v2695 = vpack.c.b16 %v1951, %v1947
    %v2696 = vpack.c.b16 %v1952, %v1948
    %v2697 = vpack.c.b16 %v1953, %v1949
    %v2698 = vpack.c.b16 %v1958, %v1954
    %v2699 = vpack.c.b16 %v1959, %v1955
    %v2700 = vpack.c.b16 %v1960, %v1956
    %v2701 = vpack.c.b16 %v1961, %v1957
    %v2702 = vpack.c.b16 %v1966, %v1962
    %v2703 = vpack.c.b16 %v1967, %v1963
    %v2704 = vpack.c.b16 %v1968, %v1964
    %v2705 = vpack.c.b16 %v1969, %v1965
    %v2706 = vpack.c.b16 %v1974, %v1970
    %v2707 = vpack.c.b16 %v1975, %v1971
    %v2708 = vpack.c.b16 %v1976, %v1972
    %v2709 = vpack.c.b16 %v1977, %v1973
    %v2710 = vpack.c.b16 %v1982, %v1978
    %v2711 = vpack.c.b16 %v1983, %v1979
    %v2712 = vpack.c.b16 %v1984, %v1980
    %v2713 = vpack.c.b16 %v1985, %v1981
    %v2714 = vpack.c.b16 %v1990, %v1986
    %v2715 = vpack.c.b16 %v1991, %v1987
    %v2716 = vpack.c.b16 %v1992, %v1988
    %v2717 = vpack.c.b16 %v1993, %v1989
    %v2718 = vpack.c.b16 %v1998, %v1994
    %v2719 = vpack.c.b16 %v1999, %v1995
    %v2720 = vpack.c.b16 %v2000, %v1996
    %v2721 = vpack.c.b16 %v2001, %v1997
    %v2722 = vpack.c.b16 %v2006, %v2002
    %v2723 = vpack.c.b16 %v2007, %v2003
    %v2724 = vpack.c.b16 %v2008, %v2004
    %v2725 = vpack.c.b16 %v2009, %v2005
    %v2726 = vpack.c.b16 %v2014, %v2010
    %v2727 = vpack.c.b16 %v2015, %v2011
    %v2728 = vpack.c.b16 %v2016, %v2012
    %v2729 = vpack.c.b16 %v2017, %v2013
    %v2730 = vpack.c.b16 %v2022, %v2018
    %v2731 = vpack.c.b16 %v2023, %v2019
    %v2732 = vpack.c.b16 %v2024, %v2020
    %v2733 = vpack.c.b16 %v2025, %v2021
    %v2734 = vpack.c.b16 %v2030, %v2026
    %v2735 = vpack.c.b16 %v2031, %v2027
    %v2736 = vpack.c.b16 %v2032, %v2028
    %v2737 = vpack.c.b16 %v2033, %v2029
    %v2738 = vpack.c.b16 %v2038, %v2034
    %v2739 = vpack.c.b16 %v2039, %v2035
    %v2740 = vpack.c.b16 %v2040, %v2036
    %v2741 = vpack.c.b16 %v2041, %v2037
    %v2742 = vpack.c.b16 %v2046, %v2042
    %v2743 = vpack.c.b16 %v2047, %v2043
    %v2744 = vpack.c.b16 %v2048, %v2044
    %v2745 = vpack.c.b16 %v2049, %v2045
    %v2746 = vpack.c.b16 %v2054, %v2050
    %v2747 = vpack.c.b16 %v2055, %v2051
    %v2748 = vpack.c.b16 %v2056, %v2052
    %v2749 = vpack.c.b16 %v2057, %v2053
    %v2750 = vpack.c.b16 %v2062, %v2058
    %v2751 = vpack.c.b16 %v2063, %v2059
    %v2752 = vpack.c.b16 %v2064, %v2060
    %v2753 = vpack.c.b16 %v2065, %v2061
    %v2754 = vpack.c.b16 %v2070, %v2066
    %v2755 = vpack.c.b16 %v2071, %v2067
    %v2756 = vpack.c.b16 %v2072, %v2068
    %v2757 = vpack.c.b16 %v2073, %v2069
    %v2758 = vpack.c.b16 %v2078, %v2074
    %v2759 = vpack.c.b16 %v2079, %v2075
    %v2760 = vpack.c.b16 %v2080, %v2076
    %v2761 = vpack.c.b16 %v2081, %v2077
    %v2762 = vpack.c.b16 %v2086, %v2082
    %v2763 = vpack.c.b16 %v2087, %v2083
    %v2764 = vpack.c.b16 %v2088, %v2084
    %v2765 = vpack.c.b16 %v2089, %v2085
    %v2766 = vpack.c.b16 %v2094, %v2090
    %v2767 = vpack.c.b16 %v2095, %v2091
    %v2768 = vpack.c.b16 %v2096, %v2092
    %v2769 = vpack.c.b16 %v2097, %v2093
    %v2770 = vpack.c.b16 %v2102, %v2098
    %v2771 = vpack.c.b16 %v2103, %v2099
    %v2772 = vpack.c.b16 %v2104, %v2100
    %v2773 = vpack.c.b16 %v2105, %v2101
    %v2774 = vpack.c.b16 %v2110, %v2106
    %v2775 = vpack.c.b16 %v2111, %v2107
    %v2776 = vpack.c.b16 %v2112, %v2108
    %v2777 = vpack.c.b16 %v2113, %v2109
    %v2778 = vpack.c.b16 %v2118, %v2114
    %v2779 = vpack.c.b16 %v2119, %v2115
    %v2780 = vpack.c.b16 %v2120, %v2116
    %v2781 = vpack.c.b16 %v2121, %v2117
    %v2782 = vpack.c.b16 %v2126, %v2122
    %v2783 = vpack.c.b16 %v2127, %v2123
    %v2784 = vpack.c.b16 %v2128, %v2124
    %v2785 = vpack.c.b16 %v2129, %v2125
    %v2786 = vpack.c.b16 %v2134, %v2130
    %v2787 = vpack.c.b16 %v2135, %v2131
    %v2788 = vpack.c.b16 %v2136, %v2132
    %v2789 = vpack.c.b16 %v2137, %v2133
    %v2790 = vpack.c.b16 %v2142, %v2138
    %v2791 = vpack.c.b16 %v2143, %v2139
    %v2792 = vpack.c.b16 %v2144, %v2140
    %v2793 = vpack.c.b16 %v2145, %v2141
    %v2794 = vpack.c.b16 %v2150, %v2146
    %v2795 = vpack.c.b16 %v2151, %v2147
    %v2796 = vpack.c.b16 %v2152, %v2148
    %v2797 = vpack.c.b16 %v2153, %v2149
    %v2798 = vpack.c.b16 %v2158, %v2154
    %v2799 = vpack.c.b16 %v2159, %v2155
    %v2800 = vpack.c.b16 %v2160, %v2156
    %v2801 = vpack.c.b16 %v2161, %v2157
    %v2802 = vpack.c.b16 %v2166, %v2162
    %v2803 = vpack.c.b16 %v2167, %v2163
    %v2804 = vpack.c.b16 %v2168, %v2164
    %v2805 = vpack.c.b16 %v2169, %v2165
    %v2806 = vpack.c.b16 %v2174, %v2170
    %v2807 = vpack.c.b16 %v2175, %v2171
    %v2808 = vpack.c.b16 %v2176, %v2172
    %v2809 = vpack.c.b16 %v2177, %v2173
    %v2810 = vpack.c.b16 %v2182, %v2178
    %v2811 = vpack.c.b16 %v2183, %v2179
    %v2812 = vpack.c.b16 %v2184, %v2180
    %v2813 = vpack.c.b16 %v2185, %v2181
    %v2814 = vpack.c.b16 %v2190, %v2186
    %v2815 = vpack.c.b16 %v2191, %v2187
    %v2816 = vpack.c.b16 %v2192, %v2188
    %v2817 = vpack.c.b16 %v2193, %v2189
    %v2818 = vpack.c.b16 %v2198, %v2194
    %v2819 = vpack.c.b16 %v2199, %v2195
    %v2820 = vpack.c.b16 %v2200, %v2196
    %v2821 = vpack.c.b16 %v2201, %v2197
    %v2822 = vpack.c.b16 %v2206, %v2202
    %v2823 = vpack.c.b16 %v2207, %v2203
    %v2824 = vpack.c.b16 %v2208, %v2204
    %v2825 = vpack.c.b16 %v2209, %v2205
    %v2826 = vpack.c.b16 %v2214, %v2210
    %v2827 = vpack.c.b16 %v2215, %v2211
    %v2828 = vpack.c.b16 %v2216, %v2212
    %v2829 = vpack.c.b16 %v2217, %v2213
    %v2830 = vpack.c.b16 %v2222, %v2218
    %v2831 = vpack.c.b16 %v2223, %v2219
    %v2832 = vpack.c.b16 %v2224, %v2220
    %v2833 = vpack.c.b16 %v2225, %v2221
    %v2834 = vpack.c.b16 %v2230, %v2226
    %v2835 = vpack.c.b16 %v2231, %v2227
    %v2836 = vpack.c.b16 %v2232, %v2228
    %v2837 = vpack.c.b16 %v2233, %v2229
    %v2838 = vpack.c.b16 %v2238, %v2234
    %v2839 = vpack.c.b16 %v2239, %v2235
    %v2840 = vpack.c.b16 %v2240, %v2236
    %v2841 = vpack.c.b16 %v2241, %v2237
    %v2842 = vpack.c.b16 %v2246, %v2242
    %v2843 = vpack.c.b16 %v2247, %v2243
    %v2844 = vpack.c.b16 %v2248, %v2244
    %v2845 = vpack.c.b16 %v2249, %v2245
    %v2846 = vpack.c.b16 %v2254, %v2250
    %v2847 = vpack.c.b16 %v2255, %v2251
    %v2848 = vpack.c.b16 %v2256, %v2252
    %v2849 = vpack.c.b16 %v2257, %v2253
    %v2850 = vpack.c.b16 %v2262, %v2258
    %v2851 = vpack.c.b16 %v2263, %v2259
    %v2852 = vpack.c.b16 %v2264, %v2260
    %v2853 = vpack.c.b16 %v2265, %v2261
    %v2854 = vpack.c.b16 %v2270, %v2266
    %v2855 = vpack.c.b16 %v2271, %v2267
    %v2856 = vpack.c.b16 %v2272, %v2268
    %v2857 = vpack.c.b16 %v2273, %v2269
    %v2858 = vpack.c.b16 %v2278, %v2274
    %v2859 = vpack.c.b16 %v2279, %v2275
    %v2860 = vpack.c.b16 %v2280, %v2276
    %v2861 = vpack.c.b16 %v2281, %v2277
    %v2862 = vpack.c.b16 %v2286, %v2282
    %v2863 = vpack.c.b16 %v2287, %v2283
    %v2864 = vpack.c.b16 %v2288, %v2284
    %v2865 = vpack.c.b16 %v2289, %v2285
    %v2866 = vpack.c.b16 %v2294, %v2290
    %v2867 = vpack.c.b16 %v2295, %v2291
    %v2868 = vpack.c.b16 %v2296, %v2292
    %v2869 = vpack.c.b16 %v2297, %v2293
    %v2870 = vpack.c.b16 %v2302, %v2298
    %v2871 = vpack.c.b16 %v2303, %v2299
    %v2872 = vpack.c.b16 %v2304, %v2300
    %v2873 = vpack.c.b16 %v2305, %v2301
    %v2874 = vpack.c.b16 %v2310, %v2306
    %v2875 = vpack.c.b16 %v2311, %v2307
    %v2876 = vpack.c.b16 %v2312, %v2308
    %v2877 = vpack.c.b16 %v2313, %v2309
    %v2878 = vpack.c.b16 %v2318, %v2314
    %v2879 = vpack.c.b16 %v2319, %v2315
    %v2880 = vpack.c.b16 %v2320, %v2316
    %v2881 = vpack.c.b16 %v2321, %v2317
    %v2882 = vpack.c.b16 %v2326, %v2322
    %v2883 = vpack.c.b16 %v2327, %v2323
    %v2884 = vpack.c.b16 %v2328, %v2324
    %v2885 = vpack.c.b16 %v2329, %v2325
    %v2886 = vpack.c.b16 %v2334, %v2330
    %v2887 = vpack.c.b16 %v2335, %v2331
    %v2888 = vpack.c.b16 %v2336, %v2332
    %v2889 = vpack.c.b16 %v2337, %v2333
    %v2890 = vpack.c.b16 %v2342, %v2338
    %v2891 = vpack.c.b16 %v2343, %v2339
    %v2892 = vpack.c.b16 %v2344, %v2340
    %v2893 = vpack.c.b16 %v2345, %v2341
    %v2894 = vpack.c.b16 %v2350, %v2346
    %v2895 = vpack.c.b16 %v2351, %v2347
    %v2896 = vpack.c.b16 %v2352, %v2348
    %v2897 = vpack.c.b16 %v2353, %v2349
    %v2898 = vpack.c.b16 %v2358, %v2354
    %v2899 = vpack.c.b16 %v2359, %v2355
    %v2900 = vpack.c.b16 %v2360, %v2356
    %v2901 = vpack.c.b16 %v2361, %v2357
    %v2902 = vpack.c.b16 %v2366, %v2362
    %v2903 = vpack.c.b16 %v2367, %v2363
    %v2904 = vpack.c.b16 %v2368, %v2364
    %v2905 = vpack.c.b16 %v2369, %v2365
    %v2906 = vpack.c.b16 %v2374, %v2370
    %v2907 = vpack.c.b16 %v2375, %v2371
    %v2908 = vpack.c.b16 %v2376, %v2372
    %v2909 = vpack.c.b16 %v2377, %v2373
    %v2910 = vpack.c.b16 %v2382, %v2378
    %v2911 = vpack.c.b16 %v2383, %v2379
    %v2912 = vpack.c.b16 %v2384, %v2380
    %v2913 = vpack.c.b16 %v2385, %v2381
    %v2914 = vpack.c.b16 %v2390, %v2386
    %v2915 = vpack.c.b16 %v2391, %v2387
    %v2916 = vpack.c.b16 %v2392, %v2388
    %v2917 = vpack.c.b16 %v2393, %v2389
    %v2918 = vpack.c.b16 %v2398, %v2394
    %v2919 = vpack.c.b16 %v2399, %v2395
    %v2920 = vpack.c.b16 %v2400, %v2396
    %v2921 = vpack.c.b16 %v2401, %v2397
    %v2922 = vpack.c.b16 %v2406, %v2402
    %v2923 = vpack.c.b16 %v2407, %v2403
    %v2924 = vpack.c.b16 %v2408, %v2404
    %v2925 = vpack.c.b16 %v2409, %v2405
    %v2926 = vpack.c.b16 %v2414, %v2410
    %v2927 = vpack.c.b16 %v2415, %v2411
    %v2928 = vpack.c.b16 %v2416, %v2412
    %v2929 = vpack.c.b16 %v2417, %v2413
    %v2930 = vpack.c.b16 %v2422, %v2418
    %v2931 = vpack.c.b16 %v2423, %v2419
    %v2932 = vpack.c.b16 %v2424, %v2420
    %v2933 = vpack.c.b16 %v2425, %v2421
    %v2934 = vpack.c.b16 %v2430, %v2426
    %v2935 = vpack.c.b16 %v2431, %v2427
    %v2936 = vpack.c.b16 %v2432, %v2428
    %v2937 = vpack.c.b16 %v2433, %v2429
    %v2938 = vpack.c.b16 %v2438, %v2434
    %v2939 = vpack.c.b16 %v2439, %v2435
    %v2940 = vpack.c.b16 %v2440, %v2436
    %v2941 = vpack.c.b16 %v2441, %v2437
    %vm3442 = vcmask 654336
    %v3444 = vsel %vm3442, %v307, 0
    %v3447 = vsel %vm3442, %v323, 0
    %v3450 = vsel %vm3442, %v339, 0
    %v3453 = vsel %vm3442, %v355, 0
    %v3456 = vsel %vm3442, %v371, 0
    %v3459 = vsel %vm3442, %v387, 0
    %v3462 = vsel %vm3442, %v403, 0
    %v3465 = vsel %vm3442, %v419, 0
    %3467 = vmatprep.subr.bf16.mxu0 %v2443
    %3468 = vmatpush1.bf16.msra.mxu0 %v2442
    %3469 = vmatprep.subr.bf16.mxu0 %v2447
    %3470 = vmatpush1.bf16.msra.mxu0 %v2446
    %3471 = vmatprep.subr.bf16.mxu0 %v2451
    %3472 = vmatpush1.bf16.msra.mxu0 %v2450
    %3473 = vmatprep.subr.bf16.mxu0 %v2455
    %3474 = vmatpush1.bf16.msra.mxu0 %v2454
    %3475 = vmatprep.subr.bf16.mxu0 %v2459
    %3476 = vmatpush1.bf16.msra.mxu0 %v2458
    %3477 = vmatprep.subr.bf16.mxu0 %v2463
    %3478 = vmatpush1.bf16.msra.mxu0 %v2462
    %3479 = vmatprep.subr.bf16.mxu0 %v2467
    %3480 = vmatpush1.bf16.msra.mxu0 %v2466
    %3481 = vmatprep.subr.bf16.mxu0 %v2471
    %3482 = vmatpush1.bf16.msra.mxu0 %v2470
    %3483 = vmatprep.subr.bf16.mxu0 %v2475
    %3484 = vmatpush1.bf16.msra.mxu0 %v2474
    %3485 = vmatprep.subr.bf16.mxu0 %v2479
    %3486 = vmatpush1.bf16.msra.mxu0 %v2478
    %3487 = vmatprep.subr.bf16.mxu0 %v2483
    %3488 = vmatpush1.bf16.msra.mxu0 %v2482
    %3489 = vmatprep.subr.bf16.mxu0 %v2487
    %3490 = vmatpush1.bf16.msra.mxu0 %v2486
    %3491 = vmatprep.subr.bf16.mxu0 %v2491
    %3492 = vmatpush1.bf16.msra.mxu0 %v2490
    %3493 = vmatprep.subr.bf16.mxu0 %v2495
    %3494 = vmatpush1.bf16.msra.mxu0 %v2494
    %3495 = vmatprep.subr.bf16.mxu0 %v2499
    %3496 = vmatpush1.bf16.msra.mxu0 %v2498
    %3497 = vmatprep.subr.bf16.mxu0 %v2503
    %3498 = vmatpush1.bf16.msra.mxu0 %v2502
    %3499 = vmatprep.mubr.bf16.mxu0 %v293
    %3500 = vmatmul.mubr.bf16.gmra.mrb[0].mxu0 %v292
    %v3501 = vpop.f32.mrb[0].mxu0
    %v3502 = vadd.f32 %v925, %v3501
    %v3503 = vpop.f32.mrb[0].mxu0
    %v3504 = vadd.f32 %v929, %v3503
    %v3505 = vpop.f32.mrb[0].mxu0
    %v3506 = vadd.f32 %v925, %v3505
    %v3507 = vpop.f32.mrb[0].mxu0
    %v3508 = vadd.f32 %v929, %v3507
    %3509 = vmatprep.mubr.bf16.mxu0 %v309
    %3510 = vmatmul.mubr.bf16.gmra.mrb[0].mxu0 %v308
    %v3511 = vpop.f32.mrb[0].mxu0
    %v3512 = vadd.f32 %v925, %v3511
    %v3513 = vpop.f32.mrb[0].mxu0
    %v3514 = vadd.f32 %v929, %v3513
    %v3515 = vpop.f32.mrb[0].mxu0
    %v3516 = vadd.f32 %v925, %v3515
    %v3517 = vpop.f32.mrb[0].mxu0
    %v3518 = vadd.f32 %v929, %v3517
    %3519 = vmatprep.mubr.bf16.mxu0 %v325
    %3520 = vmatmul.mubr.bf16.gmra.mrb[0].mxu0 %v324
    %v3521 = vpop.f32.mrb[0].mxu0
    %v3522 = vadd.f32 %v925, %v3521
    %v3523 = vpop.f32.mrb[0].mxu0
    %v3524 = vadd.f32 %v929, %v3523
    %v3525 = vpop.f32.mrb[0].mxu0
    %v3526 = vadd.f32 %v925, %v3525
    %v3527 = vpop.f32.mrb[0].mxu0
    %v3528 = vadd.f32 %v929, %v3527
    %3529 = vmatprep.mubr.bf16.mxu0 %v341
    %3530 = vmatmul.mubr.bf16.gmra.mrb[0].mxu0 %v340
    %v3531 = vpop.f32.mrb[0].mxu0
    %v3532 = vadd.f32 %v925, %v3531
    %v3533 = vpop.f32.mrb[0].mxu0
    %v3534 = vadd.f32 %v929, %v3533
    %v3535 = vpop.f32.mrb[0].mxu0
    %v3536 = vadd.f32 %v925, %v3535
    %v3537 = vpop.f32.mrb[0].mxu0
    %v3538 = vadd.f32 %v929, %v3537
    %3539 = vmatprep.mubr.bf16.mxu0 %v357
    %3540 = vmatmul.mubr.bf16.gmra.mrb[0].mxu0 %v356
    %v3541 = vpop.f32.mrb[0].mxu0
    %v3542 = vadd.f32 %v925, %v3541
    %v3543 = vpop.f32.mrb[0].mxu0
    %v3544 = vadd.f32 %v929, %v3543
    %v3545 = vpop.f32.mrb[0].mxu0
    %v3546 = vadd.f32 %v925, %v3545
    %v3547 = vpop.f32.mrb[0].mxu0
    %v3548 = vadd.f32 %v929, %v3547
    %3549 = vmatprep.mubr.bf16.mxu0 %v373
    %3550 = vmatmul.mubr.bf16.gmra.mrb[0].mxu0 %v372
    %v3551 = vpop.f32.mrb[0].mxu0
    %v3552 = vadd.f32 %v925, %v3551
    %v3553 = vpop.f32.mrb[0].mxu0
    %v3554 = vadd.f32 %v929, %v3553
    %v3555 = vpop.f32.mrb[0].mxu0
    %v3556 = vadd.f32 %v925, %v3555
    %v3557 = vpop.f32.mrb[0].mxu0
    %v3558 = vadd.f32 %v929, %v3557
    %3559 = vmatprep.mubr.bf16.mxu0 %v389
    %3560 = vmatmul.mubr.bf16.gmra.mrb[0].mxu0 %v388
    %v3561 = vpop.f32.mrb[0].mxu0
    %v3562 = vadd.f32 %v925, %v3561
    %v3563 = vpop.f32.mrb[0].mxu0
    %v3564 = vadd.f32 %v929, %v3563
    %v3565 = vpop.f32.mrb[0].mxu0
    %v3566 = vadd.f32 %v925, %v3565
    %v3567 = vpop.f32.mrb[0].mxu0
    %v3568 = vadd.f32 %v929, %v3567
    %3569 = vmatprep.mubr.bf16.mxu0 %v405
    %3570 = vmatmul.mubr.bf16.gmra.mrb[0].mxu0 %v404
    %v3571 = vpop.f32.mrb[0].mxu0
    %v3572 = vadd.f32 %v925, %v3571
    %v3573 = vpop.f32.mrb[0].mxu0
    %v3574 = vadd.f32 %v929, %v3573
    %v3575 = vpop.f32.mrb[0].mxu0
    %v3576 = vadd.f32 %v925, %v3575
    %v3577 = vpop.f32.mrb[0].mxu0
    %v3578 = vadd.f32 %v929, %v3577
    %3579 = vdwg.mxu0
    %3580 = vmatprep.subr.bf16.mxu0 %v2507
    %3581 = vmatpush1.bf16.msra.mxu0 %v2506
    %3582 = vmatprep.subr.bf16.mxu0 %v2511
    %3583 = vmatpush1.bf16.msra.mxu0 %v2510
    %3584 = vmatprep.subr.bf16.mxu0 %v2515
    %3585 = vmatpush1.bf16.msra.mxu0 %v2514
    %3586 = vmatprep.subr.bf16.mxu0 %v2519
    %3587 = vmatpush1.bf16.msra.mxu0 %v2518
    %3588 = vmatprep.subr.bf16.mxu0 %v2523
    %3589 = vmatpush1.bf16.msra.mxu0 %v2522
    %3590 = vmatprep.subr.bf16.mxu0 %v2527
    %3591 = vmatpush1.bf16.msra.mxu0 %v2526
    %3592 = vmatprep.subr.bf16.mxu0 %v2531
    %3593 = vmatpush1.bf16.msra.mxu0 %v2530
    %3594 = vmatprep.subr.bf16.mxu0 %v2535
    %3595 = vmatpush1.bf16.msra.mxu0 %v2534
    %3596 = vmatprep.subr.bf16.mxu0 %v2539
    %3597 = vmatpush1.bf16.msra.mxu0 %v2538
    %3598 = vmatprep.subr.bf16.mxu0 %v2543
    %3599 = vmatpush1.bf16.msra.mxu0 %v2542
    %3600 = vmatprep.subr.bf16.mxu0 %v2547
    %3601 = vmatpush1.bf16.msra.mxu0 %v2546
    %3602 = vmatprep.subr.bf16.mxu0 %v2551
    %3603 = vmatpush1.bf16.msra.mxu0 %v2550
    %3604 = vmatprep.subr.bf16.mxu0 %v2555
    %3605 = vmatpush1.bf16.msra.mxu0 %v2554
    %3606 = vmatprep.subr.bf16.mxu0 %v2559
    %3607 = vmatpush1.bf16.msra.mxu0 %v2558
    %3608 = vmatprep.subr.bf16.mxu0 %v2563
    %3609 = vmatpush1.bf16.msra.mxu0 %v2562
    %3610 = vmatprep.subr.bf16.mxu0 %v2567
    %3611 = vmatpush1.bf16.msra.mxu0 %v2566
    %3612 = vmatprep.mubr.bf16.mxu0 %v295
    %3613 = vmatmul.mubr.bf16.gmra.mrb[0].mxu0 %v294
    %v3614 = vpop.f32.mrb[0].mxu0
    %v3615 = vadd.f32 %v3502, %v3614
    %v3616 = vpop.f32.mrb[0].mxu0
    %v3617 = vadd.f32 %v3504, %v3616
    %v3618 = vpop.f32.mrb[0].mxu0
    %v3619 = vadd.f32 %v3506, %v3618
    %v3620 = vpop.f32.mrb[0].mxu0
    %v3621 = vadd.f32 %v3508, %v3620
    %3622 = vmatprep.mubr.bf16.mxu0 %v311
    %3623 = vmatmul.mubr.bf16.gmra.mrb[0].mxu0 %v310
    %v3624 = vpop.f32.mrb[0].mxu0
    %v3625 = vadd.f32 %v3512, %v3624
    %v3626 = vpop.f32.mrb[0].mxu0
    %v3627 = vadd.f32 %v3514, %v3626
    %v3628 = vpop.f32.mrb[0].mxu0
    %v3629 = vadd.f32 %v3516, %v3628
    %v3630 = vpop.f32.mrb[0].mxu0
    %v3631 = vadd.f32 %v3518, %v3630
    %3632 = vmatprep.mubr.bf16.mxu0 %v327
    %3633 = vmatmul.mubr.bf16.gmra.mrb[0].mxu0 %v326
    %v3634 = vpop.f32.mrb[0].mxu0
    %v3635 = vadd.f32 %v3522, %v3634
    %v3636 = vpop.f32.mrb[0].mxu0
    %v3637 = vadd.f32 %v3524, %v3636
    %v3638 = vpop.f32.mrb[0].mxu0
    %v3639 = vadd.f32 %v3526, %v3638
    %v3640 = vpop.f32.mrb[0].mxu0
    %v3641 = vadd.f32 %v3528, %v3640
    %3642 = vmatprep.mubr.bf16.mxu0 %v343
    %3643 = vmatmul.mubr.bf16.gmra.mrb[0].mxu0 %v342
    %v3644 = vpop.f32.mrb[0].mxu0
    %v3645 = vadd.f32 %v3532, %v3644
    %v3646 = vpop.f32.mrb[0].mxu0
    %v3647 = vadd.f32 %v3534, %v3646
    %v3648 = vpop.f32.mrb[0].mxu0
    %v3649 = vadd.f32 %v3536, %v3648
    %v3650 = vpop.f32.mrb[0].mxu0
    %v3651 = vadd.f32 %v3538, %v3650
    %3652 = vmatprep.mubr.bf16.mxu0 %v359
    %3653 = vmatmul.mubr.bf16.gmra.mrb[0].mxu0 %v358
    %v3654 = vpop.f32.mrb[0].mxu0
    %v3655 = vadd.f32 %v3542, %v3654
    %v3656 = vpop.f32.mrb[0].mxu0
    %v3657 = vadd.f32 %v3544, %v3656
    %v3658 = vpop.f32.mrb[0].mxu0
    %v3659 = vadd.f32 %v3546, %v3658
    %v3660 = vpop.f32.mrb[0].mxu0
    %v3661 = vadd.f32 %v3548, %v3660
    %3662 = vmatprep.mubr.bf16.mxu0 %v375
    %3663 = vmatmul.mubr.bf16.gmra.mrb[0].mxu0 %v374
    %v3664 = vpop.f32.mrb[0].mxu0
    %v3665 = vadd.f32 %v3552, %v3664
    %v3666 = vpop.f32.mrb[0].mxu0
    %v3667 = vadd.f32 %v3554, %v3666
    %v3668 = vpop.f32.mrb[0].mxu0
    %v3669 = vadd.f32 %v3556, %v3668
    %v3670 = vpop.f32.mrb[0].mxu0
    %v3671 = vadd.f32 %v3558, %v3670
    %3672 = vmatprep.mubr.bf16.mxu0 %v391
    %3673 = vmatmul.mubr.bf16.gmra.mrb[0].mxu0 %v390
    %v3674 = vpop.f32.mrb[0].mxu0
    %v3675 = vadd.f32 %v3562, %v3674
    %v3676 = vpop.f32.mrb[0].mxu0
    %v3677 = vadd.f32 %v3564, %v3676
    %v3678 = vpop.f32.mrb[0].mxu0
    %v3679 = vadd.f32 %v3566, %v3678
    %v3680 = vpop.f32.mrb[0].mxu0
    %v3681 = vadd.f32 %v3568, %v3680
    %3682 = vmatprep.mubr.bf16.mxu0 %v407
    %3683 = vmatmul.mubr.bf16.gmra.mrb[0].mxu0 %v406
    %v3684 = vpop.f32.mrb[0].mxu0
    %v3685 = vadd.f32 %v3572, %v3684
    %v3686 = vpop.f32.mrb[0].mxu0
    %v3687 = vadd.f32 %v3574, %v3686
    %v3688 = vpop.f32.mrb[0].mxu0
    %v3689 = vadd.f32 %v3576, %v3688
    %v3690 = vpop.f32.mrb[0].mxu0
    %v3691 = vadd.f32 %v3578, %v3690
    %3692 = vdwg.mxu0
    %3693 = vmatprep.subr.bf16.mxu0 %v2571
    %3694 = vmatpush1.bf16.msra.mxu0 %v2570
    %3695 = vmatprep.subr.bf16.mxu0 %v2575
    %3696 = vmatpush1.bf16.msra.mxu0 %v2574
    %3697 = vmatprep.subr.bf16.mxu0 %v2579
    %3698 = vmatpush1.bf16.msra.mxu0 %v2578
    %3699 = vmatprep.subr.bf16.mxu0 %v2583
    %3700 = vmatpush1.bf16.msra.mxu0 %v2582
    %3701 = vmatprep.subr.bf16.mxu0 %v2587
    %3702 = vmatpush1.bf16.msra.mxu0 %v2586
    %3703 = vmatprep.subr.bf16.mxu0 %v2591
    %3704 = vmatpush1.bf16.msra.mxu0 %v2590
    %3705 = vmatprep.subr.bf16.mxu0 %v2595
    %3706 = vmatpush1.bf16.msra.mxu0 %v2594
    %3707 = vmatprep.subr.bf16.mxu0 %v2599
    %3708 = vmatpush1.bf16.msra.mxu0 %v2598
    %3709 = vmatprep.subr.bf16.mxu0 %v2603
    %3710 = vmatpush1.bf16.msra.mxu0 %v2602
    %3711 = vmatprep.subr.bf16.mxu0 %v2607
    %3712 = vmatpush1.bf16.msra.mxu0 %v2606
    %3713 = vmatprep.subr.bf16.mxu0 %v2611
    %3714 = vmatpush1.bf16.msra.mxu0 %v2610
    %3715 = vmatprep.subr.bf16.mxu0 %v2615
    %3716 = vmatpush1.bf16.msra.mxu0 %v2614
    %3717 = vmatprep.subr.bf16.mxu0 %v2619
    %3718 = vmatpush1.bf16.msra.mxu0 %v2618
    %3719 = vmatprep.subr.bf16.mxu0 %v2623
    %3720 = vmatpush1.bf16.msra.mxu0 %v2622
    %3721 = vmatprep.subr.bf16.mxu0 %v2627
    %3722 = vmatpush1.bf16.msra.mxu0 %v2626
    %3723 = vmatprep.subr.bf16.mxu0 %v2631
    %3724 = vmatpush1.bf16.msra.mxu0 %v2630
    %3725 = vmatprep.mubr.bf16.mxu0 %v297
    %3726 = vmatmul.mubr.bf16.gmra.mrb[0].mxu0 %v296
    %v3727 = vpop.f32.mrb[0].mxu0
    %v3728 = vadd.f32 %v3615, %v3727
    %v3729 = vpop.f32.mrb[0].mxu0
    %v3730 = vadd.f32 %v3617, %v3729
    %v3731 = vpop.f32.mrb[0].mxu0
    %v3732 = vadd.f32 %v3619, %v3731
    %v3733 = vpop.f32.mrb[0].mxu0
    %v3734 = vadd.f32 %v3621, %v3733
    %3735 = vmatprep.mubr.bf16.mxu0 %v313
    %3736 = vmatmul.mubr.bf16.gmra.mrb[0].mxu0 %v312
    %v3737 = vpop.f32.mrb[0].mxu0
    %v3738 = vadd.f32 %v3625, %v3737
    %v3739 = vpop.f32.mrb[0].mxu0
    %v3740 = vadd.f32 %v3627, %v3739
    %v3741 = vpop.f32.mrb[0].mxu0
    %v3742 = vadd.f32 %v3629, %v3741
    %v3743 = vpop.f32.mrb[0].mxu0
    %v3744 = vadd.f32 %v3631, %v3743
    %3745 = vmatprep.mubr.bf16.mxu0 %v329
    %3746 = vmatmul.mubr.bf16.gmra.mrb[0].mxu0 %v328
    %v3747 = vpop.f32.mrb[0].mxu0
    %v3748 = vadd.f32 %v3635, %v3747
    %v3749 = vpop.f32.mrb[0].mxu0
    %v3750 = vadd.f32 %v3637, %v3749
    %v3751 = vpop.f32.mrb[0].mxu0
    %v3752 = vadd.f32 %v3639, %v3751
    %v3753 = vpop.f32.mrb[0].mxu0
    %v3754 = vadd.f32 %v3641, %v3753
    %3755 = vmatprep.mubr.bf16.mxu0 %v345
    %3756 = vmatmul.mubr.bf16.gmra.mrb[0].mxu0 %v344
    %v3757 = vpop.f32.mrb[0].mxu0
    %v3758 = vadd.f32 %v3645, %v3757
    %v3759 = vpop.f32.mrb[0].mxu0
    %v3760 = vadd.f32 %v3647, %v3759
    %v3761 = vpop.f32.mrb[0].mxu0
    %v3762 = vadd.f32 %v3649, %v3761
    %v3763 = vpop.f32.mrb[0].mxu0
    %v3764 = vadd.f32 %v3651, %v3763
    %3765 = vmatprep.mubr.bf16.mxu0 %v361
    %3766 = vmatmul.mubr.bf16.gmra.mrb[0].mxu0 %v360
    %v3767 = vpop.f32.mrb[0].mxu0
    %v3768 = vadd.f32 %v3655, %v3767
    %v3769 = vpop.f32.mrb[0].mxu0
    %v3770 = vadd.f32 %v3657, %v3769
    %v3771 = vpop.f32.mrb[0].mxu0
    %v3772 = vadd.f32 %v3659, %v3771
    %v3773 = vpop.f32.mrb[0].mxu0
    %v3774 = vadd.f32 %v3661, %v3773
    %3775 = vmatprep.mubr.bf16.mxu0 %v377
    %3776 = vmatmul.mubr.bf16.gmra.mrb[0].mxu0 %v376
    %v3777 = vpop.f32.mrb[0].mxu0
    %v3778 = vadd.f32 %v3665, %v3777
    %v3779 = vpop.f32.mrb[0].mxu0
    %v3780 = vadd.f32 %v3667, %v3779
    %v3781 = vpop.f32.mrb[0].mxu0
    %v3782 = vadd.f32 %v3669, %v3781
    %v3783 = vpop.f32.mrb[0].mxu0
    %v3784 = vadd.f32 %v3671, %v3783
    %3785 = vmatprep.mubr.bf16.mxu0 %v393
    %3786 = vmatmul.mubr.bf16.gmra.mrb[0].mxu0 %v392
    %v3787 = vpop.f32.mrb[0].mxu0
    %v3788 = vadd.f32 %v3675, %v3787
    %v3789 = vpop.f32.mrb[0].mxu0
    %v3790 = vadd.f32 %v3677, %v3789
    %v3791 = vpop.f32.mrb[0].mxu0
    %v3792 = vadd.f32 %v3679, %v3791
    %v3793 = vpop.f32.mrb[0].mxu0
    %v3794 = vadd.f32 %v3681, %v3793
    %3795 = vmatprep.mubr.bf16.mxu0 %v409
    %3796 = vmatmul.mubr.bf16.gmra.mrb[0].mxu0 %v408
    %v3797 = vpop.f32.mrb[0].mxu0
    %v3798 = vadd.f32 %v3685, %v3797
    %v3799 = vpop.f32.mrb[0].mxu0
    %v3800 = vadd.f32 %v3687, %v3799
    %v3801 = vpop.f32.mrb[0].mxu0
    %v3802 = vadd.f32 %v3689, %v3801
    %v3803 = vpop.f32.mrb[0].mxu0
    %v3804 = vadd.f32 %v3691, %v3803
    %3805 = vdwg.mxu0
    %3806 = vmatprep.subr.bf16.mxu0 %v2635
    %3807 = vmatpush1.bf16.msra.mxu0 %v2634
    %3808 = vmatprep.subr.bf16.mxu0 %v2639
    %3809 = vmatpush1.bf16.msra.mxu0 %v2638
    %3810 = vmatprep.subr.bf16.mxu0 %v2643
    %3811 = vmatpush1.bf16.msra.mxu0 %v2642
    %3812 = vmatprep.subr.bf16.mxu0 %v2647
    %3813 = vmatpush1.bf16.msra.mxu0 %v2646
    %3814 = vmatprep.subr.bf16.mxu0 %v2651
    %3815 = vmatpush1.bf16.msra.mxu0 %v2650
    %3816 = vmatprep.subr.bf16.mxu0 %v2655
    %3817 = vmatpush1.bf16.msra.mxu0 %v2654
    %3818 = vmatprep.subr.bf16.mxu0 %v2659
    %3819 = vmatpush1.bf16.msra.mxu0 %v2658
    %3820 = vmatprep.subr.bf16.mxu0 %v2663
    %3821 = vmatpush1.bf16.msra.mxu0 %v2662
    %3822 = vmatprep.subr.bf16.mxu0 %v2667
    %3823 = vmatpush1.bf16.msra.mxu0 %v2666
    %3824 = vmatprep.subr.bf16.mxu0 %v2671
    %3825 = vmatpush1.bf16.msra.mxu0 %v2670
    %3826 = vmatprep.subr.bf16.mxu0 %v2675
    %3827 = vmatpush1.bf16.msra.mxu0 %v2674
    %3828 = vmatprep.subr.bf16.mxu0 %v2679
    %3829 = vmatpush1.bf16.msra.mxu0 %v2678
    %3830 = vmatprep.subr.bf16.mxu0 %v2683
    %3831 = vmatpush1.bf16.msra.mxu0 %v2682
    %3832 = vmatprep.subr.bf16.mxu0 %v2687
    %3833 = vmatpush1.bf16.msra.mxu0 %v2686
    %3834 = vmatprep.subr.bf16.mxu0 %v2691
    %3835 = vmatpush1.bf16.msra.mxu0 %v2690
    %3836 = vmatprep.subr.bf16.mxu0 %v2695
    %3837 = vmatpush1.bf16.msra.mxu0 %v2694
    %3838 = vmatprep.mubr.bf16.mxu0 %v299
    %3839 = vmatmul.mubr.bf16.gmra.mrb[0].mxu0 %v298
    %v3840 = vpop.f32.mrb[0].mxu0
    %v3841 = vadd.f32 %v3728, %v3840
    %v3842 = vpop.f32.mrb[0].mxu0
    %v3843 = vadd.f32 %v3730, %v3842
    %v3844 = vpop.f32.mrb[0].mxu0
    %v3845 = vadd.f32 %v3732, %v3844
    %v3846 = vpop.f32.mrb[0].mxu0
    %v3847 = vadd.f32 %v3734, %v3846
    %3848 = vmatprep.mubr.bf16.mxu0 %v315
    %3849 = vmatmul.mubr.bf16.gmra.mrb[0].mxu0 %v314
    %v3850 = vpop.f32.mrb[0].mxu0
    %v3851 = vadd.f32 %v3738, %v3850
    %v3852 = vpop.f32.mrb[0].mxu0
    %v3853 = vadd.f32 %v3740, %v3852
    %v3854 = vpop.f32.mrb[0].mxu0
    %v3855 = vadd.f32 %v3742, %v3854
    %v3856 = vpop.f32.mrb[0].mxu0
    %v3857 = vadd.f32 %v3744, %v3856
    %3858 = vmatprep.mubr.bf16.mxu0 %v331
    %3859 = vmatmul.mubr.bf16.gmra.mrb[0].mxu0 %v330
    %v3860 = vpop.f32.mrb[0].mxu0
    %v3861 = vadd.f32 %v3748, %v3860
    %v3862 = vpop.f32.mrb[0].mxu0
    %v3863 = vadd.f32 %v3750, %v3862
    %v3864 = vpop.f32.mrb[0].mxu0
    %v3865 = vadd.f32 %v3752, %v3864
    %v3866 = vpop.f32.mrb[0].mxu0
    %v3867 = vadd.f32 %v3754, %v3866
    %3868 = vmatprep.mubr.bf16.mxu0 %v347
    %3869 = vmatmul.mubr.bf16.gmra.mrb[0].mxu0 %v346
    %v3870 = vpop.f32.mrb[0].mxu0
    %v3871 = vadd.f32 %v3758, %v3870
    %v3872 = vpop.f32.mrb[0].mxu0
    %v3873 = vadd.f32 %v3760, %v3872
    %v3874 = vpop.f32.mrb[0].mxu0
    %v3875 = vadd.f32 %v3762, %v3874
    %v3876 = vpop.f32.mrb[0].mxu0
    %v3877 = vadd.f32 %v3764, %v3876
    %3878 = vmatprep.mubr.bf16.mxu0 %v363
    %3879 = vmatmul.mubr.bf16.gmra.mrb[0].mxu0 %v362
    %v3880 = vpop.f32.mrb[0].mxu0
    %v3881 = vadd.f32 %v3768, %v3880
    %v3882 = vpop.f32.mrb[0].mxu0
    %v3883 = vadd.f32 %v3770, %v3882
    %v3884 = vpop.f32.mrb[0].mxu0
    %v3885 = vadd.f32 %v3772, %v3884
    %v3886 = vpop.f32.mrb[0].mxu0
    %v3887 = vadd.f32 %v3774, %v3886
    %3888 = vmatprep.mubr.bf16.mxu0 %v379
    %3889 = vmatmul.mubr.bf16.gmra.mrb[0].mxu0 %v378
    %v3890 = vpop.f32.mrb[0].mxu0
    %v3891 = vadd.f32 %v3778, %v3890
    %v3892 = vpop.f32.mrb[0].mxu0
    %v3893 = vadd.f32 %v3780, %v3892
    %v3894 = vpop.f32.mrb[0].mxu0
    %v3895 = vadd.f32 %v3782, %v3894
    %v3896 = vpop.f32.mrb[0].mxu0
    %v3897 = vadd.f32 %v3784, %v3896
    %3898 = vmatprep.mubr.bf16.mxu0 %v395
    %3899 = vmatmul.mubr.bf16.gmra.mrb[0].mxu0 %v394
    %v3900 = vpop.f32.mrb[0].mxu0
    %v3901 = vadd.f32 %v3788, %v3900
    %v3902 = vpop.f32.mrb[0].mxu0
    %v3903 = vadd.f32 %v3790, %v3902
    %v3904 = vpop.f32.mrb[0].mxu0
    %v3905 = vadd.f32 %v3792, %v3904
    %v3906 = vpop.f32.mrb[0].mxu0
    %v3907 = vadd.f32 %v3794, %v3906
    %3908 = vmatprep.mubr.bf16.mxu0 %v411
    %3909 = vmatmul.mubr.bf16.gmra.mrb[0].mxu0 %v410
    %v3910 = vpop.f32.mrb[0].mxu0
    %v3911 = vadd.f32 %v3798, %v3910
    %v3912 = vpop.f32.mrb[0].mxu0
    %v3913 = vadd.f32 %v3800, %v3912
    %v3914 = vpop.f32.mrb[0].mxu0
    %v3915 = vadd.f32 %v3802, %v3914
    %v3916 = vpop.f32.mrb[0].mxu0
    %v3917 = vadd.f32 %v3804, %v3916
    %3918 = vdwg.mxu0
    %3919 = vmatprep.subr.bf16.mxu0 %v2699
    %3920 = vmatpush1.bf16.msra.mxu0 %v2698
    %3921 = vmatprep.subr.bf16.mxu0 %v2703
    %3922 = vmatpush1.bf16.msra.mxu0 %v2702
    %3923 = vmatprep.subr.bf16.mxu0 %v2707
    %3924 = vmatpush1.bf16.msra.mxu0 %v2706
    %3925 = vmatprep.subr.bf16.mxu0 %v2711
    %3926 = vmatpush1.bf16.msra.mxu0 %v2710
    %3927 = vmatprep.subr.bf16.mxu0 %v2715
    %3928 = vmatpush1.bf16.msra.mxu0 %v2714
    %3929 = vmatprep.subr.bf16.mxu0 %v2719
    %3930 = vmatpush1.bf16.msra.mxu0 %v2718
    %3931 = vmatprep.subr.bf16.mxu0 %v2723
    %3932 = vmatpush1.bf16.msra.mxu0 %v2722
    %3933 = vmatprep.subr.bf16.mxu0 %v2727
    %3934 = vmatpush1.bf16.msra.mxu0 %v2726
    %3935 = vmatprep.subr.bf16.mxu0 %v2731
    %3936 = vmatpush1.bf16.msra.mxu0 %v2730
    %3937 = vmatprep.subr.bf16.mxu0 %v2735
    %3938 = vmatpush1.bf16.msra.mxu0 %v2734
    %3939 = vmatprep.subr.bf16.mxu0 %v2739
    %3940 = vmatpush1.bf16.msra.mxu0 %v2738
    %3941 = vmatprep.subr.bf16.mxu0 %v2743
    %3942 = vmatpush1.bf16.msra.mxu0 %v2742
    %3943 = vmatprep.subr.bf16.mxu0 %v2747
    %3944 = vmatpush1.bf16.msra.mxu0 %v2746
    %3945 = vmatprep.subr.bf16.mxu0 %v2751
    %3946 = vmatpush1.bf16.msra.mxu0 %v2750
    %3947 = vmatprep.subr.bf16.mxu0 %v2755
    %3948 = vmatpush1.bf16.msra.mxu0 %v2754
    %3949 = vmatprep.subr.bf16.mxu0 %v2759
    %3950 = vmatpush1.bf16.msra.mxu0 %v2758
    %3951 = vmatprep.mubr.bf16.mxu0 %v301
    %3952 = vmatmul.mubr.bf16.gmra.mrb[0].mxu0 %v300
    %v3953 = vpop.f32.mrb[0].mxu0
    %v3954 = vadd.f32 %v3841, %v3953
    %v3955 = vpop.f32.mrb[0].mxu0
    %v3956 = vadd.f32 %v3843, %v3955
    %v3957 = vpop.f32.mrb[0].mxu0
    %v3958 = vadd.f32 %v3845, %v3957
    %v3959 = vpop.f32.mrb[0].mxu0
    %v3960 = vadd.f32 %v3847, %v3959
    %3961 = vmatprep.mubr.bf16.mxu0 %v317
    %3962 = vmatmul.mubr.bf16.gmra.mrb[0].mxu0 %v316
    %v3963 = vpop.f32.mrb[0].mxu0
    %v3964 = vadd.f32 %v3851, %v3963
    %v3965 = vpop.f32.mrb[0].mxu0
    %v3966 = vadd.f32 %v3853, %v3965
    %v3967 = vpop.f32.mrb[0].mxu0
    %v3968 = vadd.f32 %v3855, %v3967
    %v3969 = vpop.f32.mrb[0].mxu0
    %v3970 = vadd.f32 %v3857, %v3969
    %3971 = vmatprep.mubr.bf16.mxu0 %v333
    %3972 = vmatmul.mubr.bf16.gmra.mrb[0].mxu0 %v332
    %v3973 = vpop.f32.mrb[0].mxu0
    %v3974 = vadd.f32 %v3861, %v3973
    %v3975 = vpop.f32.mrb[0].mxu0
    %v3976 = vadd.f32 %v3863, %v3975
    %v3977 = vpop.f32.mrb[0].mxu0
    %v3978 = vadd.f32 %v3865, %v3977
    %v3979 = vpop.f32.mrb[0].mxu0
    %v3980 = vadd.f32 %v3867, %v3979
    %3981 = vmatprep.mubr.bf16.mxu0 %v349
    %3982 = vmatmul.mubr.bf16.gmra.mrb[0].mxu0 %v348
    %v3983 = vpop.f32.mrb[0].mxu0
    %v3984 = vadd.f32 %v3871, %v3983
    %v3985 = vpop.f32.mrb[0].mxu0
    %v3986 = vadd.f32 %v3873, %v3985
    %v3987 = vpop.f32.mrb[0].mxu0
    %v3988 = vadd.f32 %v3875, %v3987
    %v3989 = vpop.f32.mrb[0].mxu0
    %v3990 = vadd.f32 %v3877, %v3989
    %3991 = vmatprep.mubr.bf16.mxu0 %v365
    %3992 = vmatmul.mubr.bf16.gmra.mrb[0].mxu0 %v364
    %v3993 = vpop.f32.mrb[0].mxu0
    %v3994 = vadd.f32 %v3881, %v3993
    %v3995 = vpop.f32.mrb[0].mxu0
    %v3996 = vadd.f32 %v3883, %v3995
    %v3997 = vpop.f32.mrb[0].mxu0
    %v3998 = vadd.f32 %v3885, %v3997
    %v3999 = vpop.f32.mrb[0].mxu0
    %v4000 = vadd.f32 %v3887, %v3999
    %4001 = vmatprep.mubr.bf16.mxu0 %v381
    %4002 = vmatmul.mubr.bf16.gmra.mrb[0].mxu0 %v380
    %v4003 = vpop.f32.mrb[0].mxu0
    %v4004 = vadd.f32 %v3891, %v4003
    %v4005 = vpop.f32.mrb[0].mxu0
    %v4006 = vadd.f32 %v3893, %v4005
    %v4007 = vpop.f32.mrb[0].mxu0
    %v4008 = vadd.f32 %v3895, %v4007
    %v4009 = vpop.f32.mrb[0].mxu0
    %v4010 = vadd.f32 %v3897, %v4009
    %4011 = vmatprep.mubr.bf16.mxu0 %v397
    %4012 = vmatmul.mubr.bf16.gmra.mrb[0].mxu0 %v396
    %v4013 = vpop.f32.mrb[0].mxu0
    %v4014 = vadd.f32 %v3901, %v4013
    %v4015 = vpop.f32.mrb[0].mxu0
    %v4016 = vadd.f32 %v3903, %v4015
    %v4017 = vpop.f32.mrb[0].mxu0
    %v4018 = vadd.f32 %v3905, %v4017
    %v4019 = vpop.f32.mrb[0].mxu0
    %v4020 = vadd.f32 %v3907, %v4019
    %4021 = vmatprep.mubr.bf16.mxu0 %v413
    %4022 = vmatmul.mubr.bf16.gmra.mrb[0].mxu0 %v412
    %v4023 = vpop.f32.mrb[0].mxu0
    %v4024 = vadd.f32 %v3911, %v4023
    %v4025 = vpop.f32.mrb[0].mxu0
    %v4026 = vadd.f32 %v3913, %v4025
    %v4027 = vpop.f32.mrb[0].mxu0
    %v4028 = vadd.f32 %v3915, %v4027
    %v4029 = vpop.f32.mrb[0].mxu0
    %v4030 = vadd.f32 %v3917, %v4029
    %4031 = vdwg.mxu0
    %4032 = vmatprep.subr.bf16.mxu0 %v2763
    %4033 = vmatpush1.bf16.msra.mxu0 %v2762
    %4034 = vmatprep.subr.bf16.mxu0 %v2767
    %4035 = vmatpush1.bf16.msra.mxu0 %v2766
    %4036 = vmatprep.subr.bf16.mxu0 %v2771
    %4037 = vmatpush1.bf16.msra.mxu0 %v2770
    %4038 = vmatprep.subr.bf16.mxu0 %v2775
    %4039 = vmatpush1.bf16.msra.mxu0 %v2774
    %4040 = vmatprep.subr.bf16.mxu0 %v2779
    %4041 = vmatpush1.bf16.msra.mxu0 %v2778
    %4042 = vmatprep.subr.bf16.mxu0 %v2783
    %4043 = vmatpush1.bf16.msra.mxu0 %v2782
    %4044 = vmatprep.subr.bf16.mxu0 %v2787
    %4045 = vmatpush1.bf16.msra.mxu0 %v2786
    %4046 = vmatprep.subr.bf16.mxu0 %v2791
    %4047 = vmatpush1.bf16.msra.mxu0 %v2790
    %4048 = vmatprep.subr.bf16.mxu0 %v2795
    %4049 = vmatpush1.bf16.msra.mxu0 %v2794
    %4050 = vmatprep.subr.bf16.mxu0 %v2799
    %4051 = vmatpush1.bf16.msra.mxu0 %v2798
    %4052 = vmatprep.subr.bf16.mxu0 %v2803
    %4053 = vmatpush1.bf16.msra.mxu0 %v2802
    %4054 = vmatprep.subr.bf16.mxu0 %v2807
    %4055 = vmatpush1.bf16.msra.mxu0 %v2806
    %4056 = vmatprep.subr.bf16.mxu0 %v2811
    %4057 = vmatpush1.bf16.msra.mxu0 %v2810
    %4058 = vmatprep.subr.bf16.mxu0 %v2815
    %4059 = vmatpush1.bf16.msra.mxu0 %v2814
    %4060 = vmatprep.subr.bf16.mxu0 %v2819
    %4061 = vmatpush1.bf16.msra.mxu0 %v2818
    %4062 = vmatprep.subr.bf16.mxu0 %v2823
    %4063 = vmatpush1.bf16.msra.mxu0 %v2822
    %4064 = vmatprep.mubr.bf16.mxu0 %v303
    %4065 = vmatmul.mubr.bf16.gmra.mrb[0].mxu0 %v302
    %v4066 = vpop.f32.mrb[0].mxu0
    %v4067 = vadd.f32 %v3954, %v4066
    %v4068 = vpop.f32.mrb[0].mxu0
    %v4069 = vadd.f32 %v3956, %v4068
    %v4070 = vpop.f32.mrb[0].mxu0
    %v4071 = vadd.f32 %v3958, %v4070
    %v4072 = vpop.f32.mrb[0].mxu0
    %v4073 = vadd.f32 %v3960, %v4072
    %4074 = vmatprep.mubr.bf16.mxu0 %v319
    %4075 = vmatmul.mubr.bf16.gmra.mrb[0].mxu0 %v318
    %v4076 = vpop.f32.mrb[0].mxu0
    %v4077 = vadd.f32 %v3964, %v4076
    %v4078 = vpop.f32.mrb[0].mxu0
    %v4079 = vadd.f32 %v3966, %v4078
    %v4080 = vpop.f32.mrb[0].mxu0
    %v4081 = vadd.f32 %v3968, %v4080
    %v4082 = vpop.f32.mrb[0].mxu0
    %v4083 = vadd.f32 %v3970, %v4082
    %4084 = vmatprep.mubr.bf16.mxu0 %v335
    %4085 = vmatmul.mubr.bf16.gmra.mrb[0].mxu0 %v334
    %v4086 = vpop.f32.mrb[0].mxu0
    %v4087 = vadd.f32 %v3974, %v4086
    %v4088 = vpop.f32.mrb[0].mxu0
    %v4089 = vadd.f32 %v3976, %v4088
    %v4090 = vpop.f32.mrb[0].mxu0
    %v4091 = vadd.f32 %v3978, %v4090
    %v4092 = vpop.f32.mrb[0].mxu0
    %v4093 = vadd.f32 %v3980, %v4092
    %4094 = vmatprep.mubr.bf16.mxu0 %v351
    %4095 = vmatmul.mubr.bf16.gmra.mrb[0].mxu0 %v350
    %v4096 = vpop.f32.mrb[0].mxu0
    %v4097 = vadd.f32 %v3984, %v4096
    %v4098 = vpop.f32.mrb[0].mxu0
    %v4099 = vadd.f32 %v3986, %v4098
    %v4100 = vpop.f32.mrb[0].mxu0
    %v4101 = vadd.f32 %v3988, %v4100
    %v4102 = vpop.f32.mrb[0].mxu0
    %v4103 = vadd.f32 %v3990, %v4102
    %4104 = vmatprep.mubr.bf16.mxu0 %v367
    %4105 = vmatmul.mubr.bf16.gmra.mrb[0].mxu0 %v366
    %v4106 = vpop.f32.mrb[0].mxu0
    %v4107 = vadd.f32 %v3994, %v4106
    %v4108 = vpop.f32.mrb[0].mxu0
    %v4109 = vadd.f32 %v3996, %v4108
    %v4110 = vpop.f32.mrb[0].mxu0
    %v4111 = vadd.f32 %v3998, %v4110
    %v4112 = vpop.f32.mrb[0].mxu0
    %v4113 = vadd.f32 %v4000, %v4112
    %4114 = vmatprep.mubr.bf16.mxu0 %v383
    %4115 = vmatmul.mubr.bf16.gmra.mrb[0].mxu0 %v382
    %v4116 = vpop.f32.mrb[0].mxu0
    %v4117 = vadd.f32 %v4004, %v4116
    %v4118 = vpop.f32.mrb[0].mxu0
    %v4119 = vadd.f32 %v4006, %v4118
    %v4120 = vpop.f32.mrb[0].mxu0
    %v4121 = vadd.f32 %v4008, %v4120
    %v4122 = vpop.f32.mrb[0].mxu0
    %v4123 = vadd.f32 %v4010, %v4122
    %4124 = vmatprep.mubr.bf16.mxu0 %v399
    %4125 = vmatmul.mubr.bf16.gmra.mrb[0].mxu0 %v398
    %v4126 = vpop.f32.mrb[0].mxu0
    %v4127 = vadd.f32 %v4014, %v4126
    %v4128 = vpop.f32.mrb[0].mxu0
    %v4129 = vadd.f32 %v4016, %v4128
    %v4130 = vpop.f32.mrb[0].mxu0
    %v4131 = vadd.f32 %v4018, %v4130
    %v4132 = vpop.f32.mrb[0].mxu0
    %v4133 = vadd.f32 %v4020, %v4132
    %4134 = vmatprep.mubr.bf16.mxu0 %v415
    %4135 = vmatmul.mubr.bf16.gmra.mrb[0].mxu0 %v414
    %v4136 = vpop.f32.mrb[0].mxu0
    %v4137 = vadd.f32 %v4024, %v4136
    %v4138 = vpop.f32.mrb[0].mxu0
    %v4139 = vadd.f32 %v4026, %v4138
    %v4140 = vpop.f32.mrb[0].mxu0
    %v4141 = vadd.f32 %v4028, %v4140
    %v4142 = vpop.f32.mrb[0].mxu0
    %v4143 = vadd.f32 %v4030, %v4142
    %4144 = vdwg.mxu0
    %4145 = vmatprep.subr.bf16.mxu0 %v2827
    %4146 = vmatpush1.bf16.msra.mxu0 %v2826
    %4147 = vmatprep.subr.bf16.mxu0 %v2831
    %4148 = vmatpush1.bf16.msra.mxu0 %v2830
    %4149 = vmatprep.subr.bf16.mxu0 %v2835
    %4150 = vmatpush1.bf16.msra.mxu0 %v2834
    %4151 = vmatprep.subr.bf16.mxu0 %v2839
    %4152 = vmatpush1.bf16.msra.mxu0 %v2838
    %4153 = vmatprep.subr.bf16.mxu0 %v2843
    %4154 = vmatpush1.bf16.msra.mxu0 %v2842
    %4155 = vmatprep.subr.bf16.mxu0 %v2847
    %4156 = vmatpush1.bf16.msra.mxu0 %v2846
    %4157 = vmatprep.subr.bf16.mxu0 %v2851
    %4158 = vmatpush1.bf16.msra.mxu0 %v2850
    %4159 = vmatprep.subr.bf16.mxu0 %v2855
    %4160 = vmatpush1.bf16.msra.mxu0 %v2854
    %4161 = vmatprep.subr.bf16.mxu0 %v2859
    %4162 = vmatpush1.bf16.msra.mxu0 %v2858
    %4163 = vmatprep.subr.bf16.mxu0 %v2863
    %4164 = vmatpush1.bf16.msra.mxu0 %v2862
    %4165 = vmatprep.subr.bf16.mxu0 %v2867
    %4166 = vmatpush1.bf16.msra.mxu0 %v2866
    %4167 = vmatprep.subr.bf16.mxu0 %v2871
    %4168 = vmatpush1.bf16.msra.mxu0 %v2870
    %4169 = vmatprep.subr.bf16.mxu0 %v2875
    %4170 = vmatpush1.bf16.msra.mxu0 %v2874
    %4171 = vmatprep.subr.bf16.mxu0 %v2879
    %4172 = vmatpush1.bf16.msra.mxu0 %v2878
    %4173 = vmatprep.subr.bf16.mxu0 %v2883
    %4174 = vmatpush1.bf16.msra.mxu0 %v2882
    %4175 = vmatprep.subr.bf16.mxu0 %v2887
    %4176 = vmatpush1.bf16.msra.mxu0 %v2886
    %4177 = vmatprep.mubr.bf16.mxu0 %v305
    %4178 = vmatmul.mubr.bf16.gmra.mrb[0].mxu0 %v304
    %v4179 = vpop.f32.mrb[0].mxu0
    %v4180 = vadd.f32 %v4067, %v4179
    %v4181 = vpop.f32.mrb[0].mxu0
    %v4182 = vadd.f32 %v4069, %v4181
    %v4183 = vpop.f32.mrb[0].mxu0
    %v4184 = vadd.f32 %v4071, %v4183
    %v4185 = vpop.f32.mrb[0].mxu0
    %v4186 = vadd.f32 %v4073, %v4185
    %4187 = vmatprep.mubr.bf16.mxu0 %v321
    %4188 = vmatmul.mubr.bf16.gmra.mrb[0].mxu0 %v320
    %v4189 = vpop.f32.mrb[0].mxu0
    %v4190 = vadd.f32 %v4077, %v4189
    %v4191 = vpop.f32.mrb[0].mxu0
    %v4192 = vadd.f32 %v4079, %v4191
    %v4193 = vpop.f32.mrb[0].mxu0
    %v4194 = vadd.f32 %v4081, %v4193
    %v4195 = vpop.f32.mrb[0].mxu0
    %v4196 = vadd.f32 %v4083, %v4195
    %4197 = vmatprep.mubr.bf16.mxu0 %v337
    %4198 = vmatmul.mubr.bf16.gmra.mrb[0].mxu0 %v336
    %v4199 = vpop.f32.mrb[0].mxu0
    %v4200 = vadd.f32 %v4087, %v4199
    %v4201 = vpop.f32.mrb[0].mxu0
    %v4202 = vadd.f32 %v4089, %v4201
    %v4203 = vpop.f32.mrb[0].mxu0
    %v4204 = vadd.f32 %v4091, %v4203
    %v4205 = vpop.f32.mrb[0].mxu0
    %v4206 = vadd.f32 %v4093, %v4205
    %4207 = vmatprep.mubr.bf16.mxu0 %v353
    %4208 = vmatmul.mubr.bf16.gmra.mrb[0].mxu0 %v352
    %v4209 = vpop.f32.mrb[0].mxu0
    %v4210 = vadd.f32 %v4097, %v4209
    %v4211 = vpop.f32.mrb[0].mxu0
    %v4212 = vadd.f32 %v4099, %v4211
    %v4213 = vpop.f32.mrb[0].mxu0
    %v4214 = vadd.f32 %v4101, %v4213
    %v4215 = vpop.f32.mrb[0].mxu0
    %v4216 = vadd.f32 %v4103, %v4215
    %4217 = vmatprep.mubr.bf16.mxu0 %v369
    %4218 = vmatmul.mubr.bf16.gmra.mrb[0].mxu0 %v368
    %v4219 = vpop.f32.mrb[0].mxu0
    %v4220 = vadd.f32 %v4107, %v4219
    %v4221 = vpop.f32.mrb[0].mxu0
    %v4222 = vadd.f32 %v4109, %v4221
    %v4223 = vpop.f32.mrb[0].mxu0
    %v4224 = vadd.f32 %v4111, %v4223
    %v4225 = vpop.f32.mrb[0].mxu0
    %v4226 = vadd.f32 %v4113, %v4225
    %4227 = vmatprep.mubr.bf16.mxu0 %v385
    %4228 = vmatmul.mubr.bf16.gmra.mrb[0].mxu0 %v384
    %v4229 = vpop.f32.mrb[0].mxu0
    %v4230 = vadd.f32 %v4117, %v4229
    %v4231 = vpop.f32.mrb[0].mxu0
    %v4232 = vadd.f32 %v4119, %v4231
    %v4233 = vpop.f32.mrb[0].mxu0
    %v4234 = vadd.f32 %v4121, %v4233
    %v4235 = vpop.f32.mrb[0].mxu0
    %v4236 = vadd.f32 %v4123, %v4235
    %4237 = vmatprep.mubr.bf16.mxu0 %v401
    %4238 = vmatmul.mubr.bf16.gmra.mrb[0].mxu0 %v400
    %v4239 = vpop.f32.mrb[0].mxu0
    %v4240 = vadd.f32 %v4127, %v4239
    %v4241 = vpop.f32.mrb[0].mxu0
    %v4242 = vadd.f32 %v4129, %v4241
    %v4243 = vpop.f32.mrb[0].mxu0
    %v4244 = vadd.f32 %v4131, %v4243
    %v4245 = vpop.f32.mrb[0].mxu0
    %v4246 = vadd.f32 %v4133, %v4245
    %4247 = vmatprep.mubr.bf16.mxu0 %v417
    %4248 = vmatmul.mubr.bf16.gmra.mrb[0].mxu0 %v416
    %v4249 = vpop.f32.mrb[0].mxu0
    %v4250 = vadd.f32 %v4137, %v4249
    %v4251 = vpop.f32.mrb[0].mxu0
    %v4252 = vadd.f32 %v4139, %v4251
    %v4253 = vpop.f32.mrb[0].mxu0
    %v4254 = vadd.f32 %v4141, %v4253
    %v4255 = vpop.f32.mrb[0].mxu0
    %v4256 = vadd.f32 %v4143, %v4255
    %4257 = vdwg.mxu0
    %4258 = vmatprep.subr.bf16.mxu0 %v2891
    %4259 = vmatpush1.bf16.msra.mxu0 %v2890
    %4260 = vmatprep.subr.bf16.mxu0 %v2895
    %4261 = vmatpush1.bf16.msra.mxu0 %v2894
    %4262 = vmatprep.subr.bf16.mxu0 %v2899
    %4263 = vmatpush1.bf16.msra.mxu0 %v2898
    %4264 = vmatprep.subr.bf16.mxu0 %v2903
    %4265 = vmatpush1.bf16.msra.mxu0 %v2902
    %4266 = vmatprep.subr.bf16.mxu0 %v2907
    %4267 = vmatpush1.bf16.msra.mxu0 %v2906
    %4268 = vmatprep.subr.bf16.mxu0 %v2911
    %4269 = vmatpush1.bf16.msra.mxu0 %v2910
    %4270 = vmatprep.subr.bf16.mxu0 %v2915
    %4271 = vmatpush1.bf16.msra.mxu0 %v2914
    %4272 = vmatprep.subr.bf16.mxu0 %v2919
    %4273 = vmatpush1.bf16.msra.mxu0 %v2918
    %4274 = vmatprep.subr.bf16.mxu0 %v2923
    %4275 = vmatpush1.bf16.msra.mxu0 %v2922
    %4276 = vmatprep.subr.bf16.mxu0 %v2927
    %4277 = vmatpush1.bf16.msra.mxu0 %v2926
    %4278 = vmatprep.subr.bf16.mxu0 %v2931
    %4279 = vmatpush1.bf16.msra.mxu0 %v2930
    %4280 = vmatprep.subr.bf16.mxu0 %v2935
    %4281 = vmatpush1.bf16.msra.mxu0 %v2934
    %4282 = vmatprep.subr.bf16.mxu0 %v2939
    %4283 = vmatpush1.bf16.msra.mxu0 %v2938
    %4284 = vmatprep.subr.bf16.mxu0 0
    %4285 = vmatpush1.bf16.msra.mxu0 0
    %4286 = vmatprep.subr.bf16.mxu0 0
    %4287 = vmatpush1.bf16.msra.mxu0 0
    %4288 = vmatprep.subr.bf16.mxu0 0
    %4289 = vmatpush1.bf16.msra.mxu0 0
    %4290 = vmatprep.mubr.bf16.mxu0 %v3444
    %4291 = vmatmul.mubr.bf16.gmra.mrb[0].mxu0 %v306
    %v4292 = vpop.f32.mrb[0].mxu0
    %v4293 = vadd.f32 %v4180, %v4292
    %v4294 = vpop.f32.mrb[0].mxu0
    %v4295 = vadd.f32 %v4182, %v4294
    %v4296 = vpop.f32.mrb[0].mxu0
    %v4297 = vadd.f32 %v4184, %v4296
    %v4298 = vpop.f32.mrb[0].mxu0
    %v4299 = vadd.f32 %v4186, %v4298
    %4300 = vmatprep.mubr.bf16.mxu0 %v3447
    %4301 = vmatmul.mubr.bf16.gmra.mrb[0].mxu0 %v322
    %v4302 = vpop.f32.mrb[0].mxu0
    %v4303 = vadd.f32 %v4190, %v4302
    %v4304 = vpop.f32.mrb[0].mxu0
    %v4305 = vadd.f32 %v4192, %v4304
    %v4306 = vpop.f32.mrb[0].mxu0
    %v4307 = vadd.f32 %v4194, %v4306
    %v4308 = vpop.f32.mrb[0].mxu0
    %v4309 = vadd.f32 %v4196, %v4308
    %4310 = vmatprep.mubr.bf16.mxu0 %v3450
    %4311 = vmatmul.mubr.bf16.gmra.mrb[0].mxu0 %v338
    %v4312 = vpop.f32.mrb[0].mxu0
    %v4313 = vadd.f32 %v4200, %v4312
    %v4314 = vpop.f32.mrb[0].mxu0
    %v4315 = vadd.f32 %v4202, %v4314
    %v4316 = vpop.f32.mrb[0].mxu0
    %v4317 = vadd.f32 %v4204, %v4316
    %v4318 = vpop.f32.mrb[0].mxu0
    %v4319 = vadd.f32 %v4206, %v4318
    %4320 = vmatprep.mubr.bf16.mxu0 %v3453
    %4321 = vmatmul.mubr.bf16.gmra.mrb[0].mxu0 %v354
    %v4322 = vpop.f32.mrb[0].mxu0
    %v4323 = vadd.f32 %v4210, %v4322
    %v4324 = vpop.f32.mrb[0].mxu0
    %v4325 = vadd.f32 %v4212, %v4324
    %v4326 = vpop.f32.mrb[0].mxu0
    %v4327 = vadd.f32 %v4214, %v4326
    %v4328 = vpop.f32.mrb[0].mxu0
    %v4329 = vadd.f32 %v4216, %v4328
    %4330 = vmatprep.mubr.bf16.mxu0 %v3456
    %4331 = vmatmul.mubr.bf16.gmra.mrb[0].mxu0 %v370
    %v4332 = vpop.f32.mrb[0].mxu0
    %v4333 = vadd.f32 %v4220, %v4332
    %v4334 = vpop.f32.mrb[0].mxu0
    %v4335 = vadd.f32 %v4222, %v4334
    %v4336 = vpop.f32.mrb[0].mxu0
    %v4337 = vadd.f32 %v4224, %v4336
    %v4338 = vpop.f32.mrb[0].mxu0
    %v4339 = vadd.f32 %v4226, %v4338
    %4340 = vmatprep.mubr.bf16.mxu0 %v3459
    %4341 = vmatmul.mubr.bf16.gmra.mrb[0].mxu0 %v386
    %v4342 = vpop.f32.mrb[0].mxu0
    %v4343 = vadd.f32 %v4230, %v4342
    %v4344 = vpop.f32.mrb[0].mxu0
    %v4345 = vadd.f32 %v4232, %v4344
    %v4346 = vpop.f32.mrb[0].mxu0
    %v4347 = vadd.f32 %v4234, %v4346
    %v4348 = vpop.f32.mrb[0].mxu0
    %v4349 = vadd.f32 %v4236, %v4348
    %4350 = vmatprep.mubr.bf16.mxu0 %v3462
    %4351 = vmatmul.mubr.bf16.gmra.mrb[0].mxu0 %v402
    %v4352 = vpop.f32.mrb[0].mxu0
    %v4353 = vadd.f32 %v4240, %v4352
    %v4354 = vpop.f32.mrb[0].mxu0
    %v4355 = vadd.f32 %v4242, %v4354
    %v4356 = vpop.f32.mrb[0].mxu0
    %v4357 = vadd.f32 %v4244, %v4356
    %v4358 = vpop.f32.mrb[0].mxu0
    %v4359 = vadd.f32 %v4246, %v4358
    %4360 = vmatprep.mubr.bf16.mxu0 %v3465
    %4361 = vmatmul.mubr.bf16.gmra.mrb[0].mxu0 %v418
    %v4362 = vpop.f32.mrb[0].mxu0
    %v4363 = vadd.f32 %v4250, %v4362
    %v4364 = vpop.f32.mrb[0].mxu0
    %v4365 = vadd.f32 %v4252, %v4364
    %v4366 = vpop.f32.mrb[0].mxu0
    %v4367 = vadd.f32 %v4254, %v4366
    %v4368 = vpop.f32.mrb[0].mxu0
    %v4369 = vadd.f32 %v4256, %v4368
    %4370 = vdwg.mxu0
    %4371 = vmatprep.subr.bf16.mxu0 %v2445
    %4372 = vmatpush1.bf16.msra.mxu0 %v2444
    %4373 = vmatprep.subr.bf16.mxu0 %v2449
    %4374 = vmatpush1.bf16.msra.mxu0 %v2448
    %4375 = vmatprep.subr.bf16.mxu0 %v2453
    %4376 = vmatpush1.bf16.msra.mxu0 %v2452
    %4377 = vmatprep.subr.bf16.mxu0 %v2457
    %4378 = vmatpush1.bf16.msra.mxu0 %v2456
    %4379 = vmatprep.subr.bf16.mxu0 %v2461
    %4380 = vmatpush1.bf16.msra.mxu0 %v2460
    %4381 = vmatprep.subr.bf16.mxu0 %v2465
    %4382 = vmatpush1.bf16.msra.mxu0 %v2464
    %4383 = vmatprep.subr.bf16.mxu0 %v2469
    %4384 = vmatpush1.bf16.msra.mxu0 %v2468
    %4385 = vmatprep.subr.bf16.mxu0 %v2473
    %4386 = vmatpush1.bf16.msra.mxu0 %v2472
    %4387 = vmatprep.subr.bf16.mxu0 %v2477
    %4388 = vmatpush1.bf16.msra.mxu0 %v2476
    %4389 = vmatprep.subr.bf16.mxu0 %v2481
    %4390 = vmatpush1.bf16.msra.mxu0 %v2480
    %4391 = vmatprep.subr.bf16.mxu0 %v2485
    %4392 = vmatpush1.bf16.msra.mxu0 %v2484
    %4393 = vmatprep.subr.bf16.mxu0 %v2489
    %4394 = vmatpush1.bf16.msra.mxu0 %v2488
    %4395 = vmatprep.subr.bf16.mxu0 %v2493
    %4396 = vmatpush1.bf16.msra.mxu0 %v2492
    %4397 = vmatprep.subr.bf16.mxu0 %v2497
    %4398 = vmatpush1.bf16.msra.mxu0 %v2496
    %4399 = vmatprep.subr.bf16.mxu0 %v2501
    %4400 = vmatpush1.bf16.msra.mxu0 %v2500
    %4401 = vmatprep.subr.bf16.mxu0 %v2505
    %4402 = vmatpush1.bf16.msra.mxu0 %v2504
    %4403 = vmatprep.mubr.bf16.mxu0 %v293
    %4404 = vmatmul.mubr.bf16.gmra.mrb[0].mxu0 %v292
    %v4405 = vpop.f32.mrb[0].mxu0
    %v4406 = vadd.f32 %v933, %v4405
    %v4407 = vpop.f32.mrb[0].mxu0
    %v4408 = vadd.f32 %v937, %v4407
    %v4409 = vpop.f32.mrb[0].mxu0
    %v4410 = vadd.f32 %v933, %v4409
    %v4411 = vpop.f32.mrb[0].mxu0
    %v4412 = vadd.f32 %v937, %v4411
    %4413 = vmatprep.mubr.bf16.mxu0 %v309
    %4414 = vmatmul.mubr.bf16.gmra.mrb[0].mxu0 %v308
    %v4415 = vpop.f32.mrb[0].mxu0
    %v4416 = vadd.f32 %v933, %v4415
    %v4417 = vpop.f32.mrb[0].mxu0
    %v4418 = vadd.f32 %v937, %v4417
    %v4419 = vpop.f32.mrb[0].mxu0
    %v4420 = vadd.f32 %v933, %v4419
    %v4421 = vpop.f32.mrb[0].mxu0
    %v4422 = vadd.f32 %v937, %v4421
    %4423 = vmatprep.mubr.bf16.mxu0 %v325
    %4424 = vmatmul.mubr.bf16.gmra.mrb[0].mxu0 %v324
    %v4425 = vpop.f32.mrb[0].mxu0
    %v4426 = vadd.f32 %v933, %v4425
    %v4427 = vpop.f32.mrb[0].mxu0
    %v4428 = vadd.f32 %v937, %v4427
    %v4429 = vpop.f32.mrb[0].mxu0
    %v4430 = vadd.f32 %v933, %v4429
    %v4431 = vpop.f32.mrb[0].mxu0
    %v4432 = vadd.f32 %v937, %v4431
    %4433 = vmatprep.mubr.bf16.mxu0 %v341
    %4434 = vmatmul.mubr.bf16.gmra.mrb[0].mxu0 %v340
    %v4435 = vpop.f32.mrb[0].mxu0
    %v4436 = vadd.f32 %v933, %v4435
    %v4437 = vpop.f32.mrb[0].mxu0
    %v4438 = vadd.f32 %v937, %v4437
    %v4439 = vpop.f32.mrb[0].mxu0
    %v4440 = vadd.f32 %v933, %v4439
    %v4441 = vpop.f32.mrb[0].mxu0
    %v4442 = vadd.f32 %v937, %v4441
    %4443 = vmatprep.mubr.bf16.mxu0 %v357
    %4444 = vmatmul.mubr.bf16.gmra.mrb[0].mxu0 %v356
    %v4445 = vpop.f32.mrb[0].mxu0
    %v4446 = vadd.f32 %v933, %v4445
    %v4447 = vpop.f32.mrb[0].mxu0
    %v4448 = vadd.f32 %v937, %v4447
    %v4449 = vpop.f32.mrb[0].mxu0
    %v4450 = vadd.f32 %v933, %v4449
    %v4451 = vpop.f32.mrb[0].mxu0
    %v4452 = vadd.f32 %v937, %v4451
    %4453 = vmatprep.mubr.bf16.mxu0 %v373
    %4454 = vmatmul.mubr.bf16.gmra.mrb[0].mxu0 %v372
    %v4455 = vpop.f32.mrb[0].mxu0
    %v4456 = vadd.f32 %v933, %v4455
    %v4457 = vpop.f32.mrb[0].mxu0
    %v4458 = vadd.f32 %v937, %v4457
    %v4459 = vpop.f32.mrb[0].mxu0
    %v4460 = vadd.f32 %v933, %v4459
    %v4461 = vpop.f32.mrb[0].mxu0
    %v4462 = vadd.f32 %v937, %v4461
    %4463 = vmatprep.mubr.bf16.mxu0 %v389
    %4464 = vmatmul.mubr.bf16.gmra.mrb[0].mxu0 %v388
    %v4465 = vpop.f32.mrb[0].mxu0
    %v4466 = vadd.f32 %v933, %v4465
    %v4467 = vpop.f32.mrb[0].mxu0
    %v4468 = vadd.f32 %v937, %v4467
    %v4469 = vpop.f32.mrb[0].mxu0
    %v4470 = vadd.f32 %v933, %v4469
    %v4471 = vpop.f32.mrb[0].mxu0
    %v4472 = vadd.f32 %v937, %v4471
    %4473 = vmatprep.mubr.bf16.mxu0 %v405
    %4474 = vmatmul.mubr.bf16.gmra.mrb[0].mxu0 %v404
    %v4475 = vpop.f32.mrb[0].mxu0
    %v4476 = vadd.f32 %v933, %v4475
    %v4477 = vpop.f32.mrb[0].mxu0
    %v4478 = vadd.f32 %v937, %v4477
    %v4479 = vpop.f32.mrb[0].mxu0
    %v4480 = vadd.f32 %v933, %v4479
    %v4481 = vpop.f32.mrb[0].mxu0
    %v4482 = vadd.f32 %v937, %v4481
    %4483 = vdwg.mxu0
    %4484 = vmatprep.subr.bf16.mxu0 %v2509
    %4485 = vmatpush1.bf16.msra.mxu0 %v2508
    %4486 = vmatprep.subr.bf16.mxu0 %v2513
    %4487 = vmatpush1.bf16.msra.mxu0 %v2512
    %4488 = vmatprep.subr.bf16.mxu0 %v2517
    %4489 = vmatpush1.bf16.msra.mxu0 %v2516
    %4490 = vmatprep.subr.bf16.mxu0 %v2521
    %4491 = vmatpush1.bf16.msra.mxu0 %v2520
    %4492 = vmatprep.subr.bf16.mxu0 %v2525
    %4493 = vmatpush1.bf16.msra.mxu0 %v2524
    %4494 = vmatprep.subr.bf16.mxu0 %v2529
    %4495 = vmatpush1.bf16.msra.mxu0 %v2528
    %4496 = vmatprep.subr.bf16.mxu0 %v2533
    %4497 = vmatpush1.bf16.msra.mxu0 %v2532
    %4498 = vmatprep.subr.bf16.mxu0 %v2537
    %4499 = vmatpush1.bf16.msra.mxu0 %v2536
    %4500 = vmatprep.subr.bf16.mxu0 %v2541
    %4501 = vmatpush1.bf16.msra.mxu0 %v2540
    %4502 = vmatprep.subr.bf16.mxu0 %v2545
    %4503 = vmatpush1.bf16.msra.mxu0 %v2544
    %4504 = vmatprep.subr.bf16.mxu0 %v2549
    %4505 = vmatpush1.bf16.msra.mxu0 %v2548
    %4506 = vmatprep.subr.bf16.mxu0 %v2553
    %4507 = vmatpush1.bf16.msra.mxu0 %v2552
    %4508 = vmatprep.subr.bf16.mxu0 %v2557
    %4509 = vmatpush1.bf16.msra.mxu0 %v2556
    %4510 = vmatprep.subr.bf16.mxu0 %v2561
    %4511 = vmatpush1.bf16.msra.mxu0 %v2560
    %4512 = vmatprep.subr.bf16.mxu0 %v2565
    %4513 = vmatpush1.bf16.msra.mxu0 %v2564
    %4514 = vmatprep.subr.bf16.mxu0 %v2569
    %4515 = vmatpush1.bf16.msra.mxu0 %v2568
    %4516 = vmatprep.mubr.bf16.mxu0 %v295
    %4517 = vmatmul.mubr.bf16.gmra.mrb[0].mxu0 %v294
    %v4518 = vpop.f32.mrb[0].mxu0
    %v4519 = vadd.f32 %v4406, %v4518
    %v4520 = vpop.f32.mrb[0].mxu0
    %v4521 = vadd.f32 %v4408, %v4520
    %v4522 = vpop.f32.mrb[0].mxu0
    %v4523 = vadd.f32 %v4410, %v4522
    %v4524 = vpop.f32.mrb[0].mxu0
    %v4525 = vadd.f32 %v4412, %v4524
    %4526 = vmatprep.mubr.bf16.mxu0 %v311
    %4527 = vmatmul.mubr.bf16.gmra.mrb[0].mxu0 %v310
    %v4528 = vpop.f32.mrb[0].mxu0
    %v4529 = vadd.f32 %v4416, %v4528
    %v4530 = vpop.f32.mrb[0].mxu0
    %v4531 = vadd.f32 %v4418, %v4530
    %v4532 = vpop.f32.mrb[0].mxu0
    %v4533 = vadd.f32 %v4420, %v4532
    %v4534 = vpop.f32.mrb[0].mxu0
    %v4535 = vadd.f32 %v4422, %v4534
    %4536 = vmatprep.mubr.bf16.mxu0 %v327
    %4537 = vmatmul.mubr.bf16.gmra.mrb[0].mxu0 %v326
    %v4538 = vpop.f32.mrb[0].mxu0
    %v4539 = vadd.f32 %v4426, %v4538
    %v4540 = vpop.f32.mrb[0].mxu0
    %v4541 = vadd.f32 %v4428, %v4540
    %v4542 = vpop.f32.mrb[0].mxu0
    %v4543 = vadd.f32 %v4430, %v4542
    %v4544 = vpop.f32.mrb[0].mxu0
    %v4545 = vadd.f32 %v4432, %v4544
    %4546 = vmatprep.mubr.bf16.mxu0 %v343
    %4547 = vmatmul.mubr.bf16.gmra.mrb[0].mxu0 %v342
    %v4548 = vpop.f32.mrb[0].mxu0
    %v4549 = vadd.f32 %v4436, %v4548
    %v4550 = vpop.f32.mrb[0].mxu0
    %v4551 = vadd.f32 %v4438, %v4550
    %v4552 = vpop.f32.mrb[0].mxu0
    %v4553 = vadd.f32 %v4440, %v4552
    %v4554 = vpop.f32.mrb[0].mxu0
    %v4555 = vadd.f32 %v4442, %v4554
    %4556 = vmatprep.mubr.bf16.mxu0 %v359
    %4557 = vmatmul.mubr.bf16.gmra.mrb[0].mxu0 %v358
    %v4558 = vpop.f32.mrb[0].mxu0
    %v4559 = vadd.f32 %v4446, %v4558
    %v4560 = vpop.f32.mrb[0].mxu0
    %v4561 = vadd.f32 %v4448, %v4560
    %v4562 = vpop.f32.mrb[0].mxu0
    %v4563 = vadd.f32 %v4450, %v4562
    %v4564 = vpop.f32.mrb[0].mxu0
    %v4565 = vadd.f32 %v4452, %v4564
    %4566 = vmatprep.mubr.bf16.mxu0 %v375
    %4567 = vmatmul.mubr.bf16.gmra.mrb[0].mxu0 %v374
    %v4568 = vpop.f32.mrb[0].mxu0
    %v4569 = vadd.f32 %v4456, %v4568
    %v4570 = vpop.f32.mrb[0].mxu0
    %v4571 = vadd.f32 %v4458, %v4570
    %v4572 = vpop.f32.mrb[0].mxu0
    %v4573 = vadd.f32 %v4460, %v4572
    %v4574 = vpop.f32.mrb[0].mxu0
    %v4575 = vadd.f32 %v4462, %v4574
    %4576 = vmatprep.mubr.bf16.mxu0 %v391
    %4577 = vmatmul.mubr.bf16.gmra.mrb[0].mxu0 %v390
    %v4578 = vpop.f32.mrb[0].mxu0
    %v4579 = vadd.f32 %v4466, %v4578
    %v4580 = vpop.f32.mrb[0].mxu0
    %v4581 = vadd.f32 %v4468, %v4580
    %v4582 = vpop.f32.mrb[0].mxu0
    %v4583 = vadd.f32 %v4470, %v4582
    %v4584 = vpop.f32.mrb[0].mxu0
    %v4585 = vadd.f32 %v4472, %v4584
    %4586 = vmatprep.mubr.bf16.mxu0 %v407
    %4587 = vmatmul.mubr.bf16.gmra.mrb[0].mxu0 %v406
    %v4588 = vpop.f32.mrb[0].mxu0
    %v4589 = vadd.f32 %v4476, %v4588
    %v4590 = vpop.f32.mrb[0].mxu0
    %v4591 = vadd.f32 %v4478, %v4590
    %v4592 = vpop.f32.mrb[0].mxu0
    %v4593 = vadd.f32 %v4480, %v4592
    %v4594 = vpop.f32.mrb[0].mxu0
    %v4595 = vadd.f32 %v4482, %v4594
    %4596 = vdwg.mxu0
    %4597 = vmatprep.subr.bf16.mxu0 %v2573
    %4598 = vmatpush1.bf16.msra.mxu0 %v2572
    %4599 = vmatprep.subr.bf16.mxu0 %v2577
    %4600 = vmatpush1.bf16.msra.mxu0 %v2576
    %4601 = vmatprep.subr.bf16.mxu0 %v2581
    %4602 = vmatpush1.bf16.msra.mxu0 %v2580
    %4603 = vmatprep.subr.bf16.mxu0 %v2585
    %4604 = vmatpush1.bf16.msra.mxu0 %v2584
    %4605 = vmatprep.subr.bf16.mxu0 %v2589
    %4606 = vmatpush1.bf16.msra.mxu0 %v2588
    %4607 = vmatprep.subr.bf16.mxu0 %v2593
    %4608 = vmatpush1.bf16.msra.mxu0 %v2592
    %4609 = vmatprep.subr.bf16.mxu0 %v2597
    %4610 = vmatpush1.bf16.msra.mxu0 %v2596
    %4611 = vmatprep.subr.bf16.mxu0 %v2601
    %4612 = vmatpush1.bf16.msra.mxu0 %v2600
    %4613 = vmatprep.subr.bf16.mxu0 %v2605
    %4614 = vmatpush1.bf16.msra.mxu0 %v2604
    %4615 = vmatprep.subr.bf16.mxu0 %v2609
    %4616 = vmatpush1.bf16.msra.mxu0 %v2608
    %4617 = vmatprep.subr.bf16.mxu0 %v2613
    %4618 = vmatpush1.bf16.msra.mxu0 %v2612
    %4619 = vmatprep.subr.bf16.mxu0 %v2617
    %4620 = vmatpush1.bf16.msra.mxu0 %v2616
    %4621 = vmatprep.subr.bf16.mxu0 %v2621
    %4622 = vmatpush1.bf16.msra.mxu0 %v2620
    %4623 = vmatprep.subr.bf16.mxu0 %v2625
    %4624 = vmatpush1.bf16.msra.mxu0 %v2624
    %4625 = vmatprep.subr.bf16.mxu0 %v2629
    %4626 = vmatpush1.bf16.msra.mxu0 %v2628
    %4627 = vmatprep.subr.bf16.mxu0 %v2633
    %4628 = vmatpush1.bf16.msra.mxu0 %v2632
    %4629 = vmatprep.mubr.bf16.mxu0 %v297
    %4630 = vmatmul.mubr.bf16.gmra.mrb[0].mxu0 %v296
    %v4631 = vpop.f32.mrb[0].mxu0
    %v4632 = vadd.f32 %v4519, %v4631
    %v4633 = vpop.f32.mrb[0].mxu0
    %v4634 = vadd.f32 %v4521, %v4633
    %v4635 = vpop.f32.mrb[0].mxu0
    %v4636 = vadd.f32 %v4523, %v4635
    %v4637 = vpop.f32.mrb[0].mxu0
    %v4638 = vadd.f32 %v4525, %v4637
    %4639 = vmatprep.mubr.bf16.mxu0 %v313
    %4640 = vmatmul.mubr.bf16.gmra.mrb[0].mxu0 %v312
    %v4641 = vpop.f32.mrb[0].mxu0
    %v4642 = vadd.f32 %v4529, %v4641
    %v4643 = vpop.f32.mrb[0].mxu0
    %v4644 = vadd.f32 %v4531, %v4643
    %v4645 = vpop.f32.mrb[0].mxu0
    %v4646 = vadd.f32 %v4533, %v4645
    %v4647 = vpop.f32.mrb[0].mxu0
    %v4648 = vadd.f32 %v4535, %v4647
    %4649 = vmatprep.mubr.bf16.mxu0 %v329
    %4650 = vmatmul.mubr.bf16.gmra.mrb[0].mxu0 %v328
    %v4651 = vpop.f32.mrb[0].mxu0
    %v4652 = vadd.f32 %v4539, %v4651
    %v4653 = vpop.f32.mrb[0].mxu0
    %v4654 = vadd.f32 %v4541, %v4653
    %v4655 = vpop.f32.mrb[0].mxu0
    %v4656 = vadd.f32 %v4543, %v4655
    %v4657 = vpop.f32.mrb[0].mxu0
    %v4658 = vadd.f32 %v4545, %v4657
    %4659 = vmatprep.mubr.bf16.mxu0 %v345
    %4660 = vmatmul.mubr.bf16.gmra.mrb[0].mxu0 %v344
    %v4661 = vpop.f32.mrb[0].mxu0
    %v4662 = vadd.f32 %v4549, %v4661
    %v4663 = vpop.f32.mrb[0].mxu0
    %v4664 = vadd.f32 %v4551, %v4663
    %v4665 = vpop.f32.mrb[0].mxu0
    %v4666 = vadd.f32 %v4553, %v4665
    %v4667 = vpop.f32.mrb[0].mxu0
    %v4668 = vadd.f32 %v4555, %v4667
    %4669 = vmatprep.mubr.bf16.mxu0 %v361
    %4670 = vmatmul.mubr.bf16.gmra.mrb[0].mxu0 %v360
    %v4671 = vpop.f32.mrb[0].mxu0
    %v4672 = vadd.f32 %v4559, %v4671
    %v4673 = vpop.f32.mrb[0].mxu0
    %v4674 = vadd.f32 %v4561, %v4673
    %v4675 = vpop.f32.mrb[0].mxu0
    %v4676 = vadd.f32 %v4563, %v4675
    %v4677 = vpop.f32.mrb[0].mxu0
    %v4678 = vadd.f32 %v4565, %v4677
    %4679 = vmatprep.mubr.bf16.mxu0 %v377
    %4680 = vmatmul.mubr.bf16.gmra.mrb[0].mxu0 %v376
    %v4681 = vpop.f32.mrb[0].mxu0
    %v4682 = vadd.f32 %v4569, %v4681
    %v4683 = vpop.f32.mrb[0].mxu0
    %v4684 = vadd.f32 %v4571, %v4683
    %v4685 = vpop.f32.mrb[0].mxu0
    %v4686 = vadd.f32 %v4573, %v4685
    %v4687 = vpop.f32.mrb[0].mxu0
    %v4688 = vadd.f32 %v4575, %v4687
    %4689 = vmatprep.mubr.bf16.mxu0 %v393
    %4690 = vmatmul.mubr.bf16.gmra.mrb[0].mxu0 %v392
    %v4691 = vpop.f32.mrb[0].mxu0
    %v4692 = vadd.f32 %v4579, %v4691
    %v4693 = vpop.f32.mrb[0].mxu0
    %v4694 = vadd.f32 %v4581, %v4693
    %v4695 = vpop.f32.mrb[0].mxu0
    %v4696 = vadd.f32 %v4583, %v4695
    %v4697 = vpop.f32.mrb[0].mxu0
    %v4698 = vadd.f32 %v4585, %v4697
    %4699 = vmatprep.mubr.bf16.mxu0 %v409
    %4700 = vmatmul.mubr.bf16.gmra.mrb[0].mxu0 %v408
    %v4701 = vpop.f32.mrb[0].mxu0
    %v4702 = vadd.f32 %v4589, %v4701
    %v4703 = vpop.f32.mrb[0].mxu0
    %v4704 = vadd.f32 %v4591, %v4703
    %v4705 = vpop.f32.mrb[0].mxu0
    %v4706 = vadd.f32 %v4593, %v4705
    %v4707 = vpop.f32.mrb[0].mxu0
    %v4708 = vadd.f32 %v4595, %v4707
    %4709 = vdwg.mxu0
    %4710 = vmatprep.subr.bf16.mxu0 %v2637
    %4711 = vmatpush1.bf16.msra.mxu0 %v2636
    %4712 = vmatprep.subr.bf16.mxu0 %v2641
    %4713 = vmatpush1.bf16.msra.mxu0 %v2640
    %4714 = vmatprep.subr.bf16.mxu0 %v2645
    %4715 = vmatpush1.bf16.msra.mxu0 %v2644
    %4716 = vmatprep.subr.bf16.mxu0 %v2649
    %4717 = vmatpush1.bf16.msra.mxu0 %v2648
    %4718 = vmatprep.subr.bf16.mxu0 %v2653
    %4719 = vmatpush1.bf16.msra.mxu0 %v2652
    %4720 = vmatprep.subr.bf16.mxu0 %v2657
    %4721 = vmatpush1.bf16.msra.mxu0 %v2656
    %4722 = vmatprep.subr.bf16.mxu0 %v2661
    %4723 = vmatpush1.bf16.msra.mxu0 %v2660
    %4724 = vmatprep.subr.bf16.mxu0 %v2665
    %4725 = vmatpush1.bf16.msra.mxu0 %v2664
    %4726 = vmatprep.subr.bf16.mxu0 %v2669
    %4727 = vmatpush1.bf16.msra.mxu0 %v2668
    %4728 = vmatprep.subr.bf16.mxu0 %v2673
    %4729 = vmatpush1.bf16.msra.mxu0 %v2672
    %4730 = vmatprep.subr.bf16.mxu0 %v2677
    %4731 = vmatpush1.bf16.msra.mxu0 %v2676
    %4732 = vmatprep.subr.bf16.mxu0 %v2681
    %4733 = vmatpush1.bf16.msra.mxu0 %v2680
    %4734 = vmatprep.subr.bf16.mxu0 %v2685
    %4735 = vmatpush1.bf16.msra.mxu0 %v2684
    %4736 = vmatprep.subr.bf16.mxu0 %v2689
    %4737 = vmatpush1.bf16.msra.mxu0 %v2688
    %4738 = vmatprep.subr.bf16.mxu0 %v2693
    %4739 = vmatpush1.bf16.msra.mxu0 %v2692
    %4740 = vmatprep.subr.bf16.mxu0 %v2697
    %4741 = vmatpush1.bf16.msra.mxu0 %v2696
    %4742 = vmatprep.mubr.bf16.mxu0 %v299
    %4743 = vmatmul.mubr.bf16.gmra.mrb[0].mxu0 %v298
    %v4744 = vpop.f32.mrb[0].mxu0
    %v4745 = vadd.f32 %v4632, %v4744
    %v4746 = vpop.f32.mrb[0].mxu0
    %v4747 = vadd.f32 %v4634, %v4746
    %v4748 = vpop.f32.mrb[0].mxu0
    %v4749 = vadd.f32 %v4636, %v4748
    %v4750 = vpop.f32.mrb[0].mxu0
    %v4751 = vadd.f32 %v4638, %v4750
    %4752 = vmatprep.mubr.bf16.mxu0 %v315
    %4753 = vmatmul.mubr.bf16.gmra.mrb[0].mxu0 %v314
    %v4754 = vpop.f32.mrb[0].mxu0
    %v4755 = vadd.f32 %v4642, %v4754
    %v4756 = vpop.f32.mrb[0].mxu0
    %v4757 = vadd.f32 %v4644, %v4756
    %v4758 = vpop.f32.mrb[0].mxu0
    %v4759 = vadd.f32 %v4646, %v4758
    %v4760 = vpop.f32.mrb[0].mxu0
    %v4761 = vadd.f32 %v4648, %v4760
    %4762 = vmatprep.mubr.bf16.mxu0 %v331
    %4763 = vmatmul.mubr.bf16.gmra.mrb[0].mxu0 %v330
    %v4764 = vpop.f32.mrb[0].mxu0
    %v4765 = vadd.f32 %v4652, %v4764
    %v4766 = vpop.f32.mrb[0].mxu0
    %v4767 = vadd.f32 %v4654, %v4766
    %v4768 = vpop.f32.mrb[0].mxu0
    %v4769 = vadd.f32 %v4656, %v4768
    %v4770 = vpop.f32.mrb[0].mxu0
    %v4771 = vadd.f32 %v4658, %v4770
    %4772 = vmatprep.mubr.bf16.mxu0 %v347
    %4773 = vmatmul.mubr.bf16.gmra.mrb[0].mxu0 %v346
    %v4774 = vpop.f32.mrb[0].mxu0
    %v4775 = vadd.f32 %v4662, %v4774
    %v4776 = vpop.f32.mrb[0].mxu0
    %v4777 = vadd.f32 %v4664, %v4776
    %v4778 = vpop.f32.mrb[0].mxu0
    %v4779 = vadd.f32 %v4666, %v4778
    %v4780 = vpop.f32.mrb[0].mxu0
    %v4781 = vadd.f32 %v4668, %v4780
    %4782 = vmatprep.mubr.bf16.mxu0 %v363
    %4783 = vmatmul.mubr.bf16.gmra.mrb[0].mxu0 %v362
    %v4784 = vpop.f32.mrb[0].mxu0
    %v4785 = vadd.f32 %v4672, %v4784
    %v4786 = vpop.f32.mrb[0].mxu0
    %v4787 = vadd.f32 %v4674, %v4786
    %v4788 = vpop.f32.mrb[0].mxu0
    %v4789 = vadd.f32 %v4676, %v4788
    %v4790 = vpop.f32.mrb[0].mxu0
    %v4791 = vadd.f32 %v4678, %v4790
    %4792 = vmatprep.mubr.bf16.mxu0 %v379
    %4793 = vmatmul.mubr.bf16.gmra.mrb[0].mxu0 %v378
    %v4794 = vpop.f32.mrb[0].mxu0
    %v4795 = vadd.f32 %v4682, %v4794
    %v4796 = vpop.f32.mrb[0].mxu0
    %v4797 = vadd.f32 %v4684, %v4796
    %v4798 = vpop.f32.mrb[0].mxu0
    %v4799 = vadd.f32 %v4686, %v4798
    %v4800 = vpop.f32.mrb[0].mxu0
    %v4801 = vadd.f32 %v4688, %v4800
    %4802 = vmatprep.mubr.bf16.mxu0 %v395
    %4803 = vmatmul.mubr.bf16.gmra.mrb[0].mxu0 %v394
    %v4804 = vpop.f32.mrb[0].mxu0
    %v4805 = vadd.f32 %v4692, %v4804
    %v4806 = vpop.f32.mrb[0].mxu0
    %v4807 = vadd.f32 %v4694, %v4806
    %v4808 = vpop.f32.mrb[0].mxu0
    %v4809 = vadd.f32 %v4696, %v4808
    %v4810 = vpop.f32.mrb[0].mxu0
    %v4811 = vadd.f32 %v4698, %v4810
    %4812 = vmatprep.mubr.bf16.mxu0 %v411
    %4813 = vmatmul.mubr.bf16.gmra.mrb[0].mxu0 %v410
    %v4814 = vpop.f32.mrb[0].mxu0
    %v4815 = vadd.f32 %v4702, %v4814
    %v4816 = vpop.f32.mrb[0].mxu0
    %v4817 = vadd.f32 %v4704, %v4816
    %v4818 = vpop.f32.mrb[0].mxu0
    %v4819 = vadd.f32 %v4706, %v4818
    %v4820 = vpop.f32.mrb[0].mxu0
    %v4821 = vadd.f32 %v4708, %v4820
    %4822 = vdwg.mxu0
    %4823 = vmatprep.subr.bf16.mxu0 %v2701
    %4824 = vmatpush1.bf16.msra.mxu0 %v2700
    %4825 = vmatprep.subr.bf16.mxu0 %v2705
    %4826 = vmatpush1.bf16.msra.mxu0 %v2704
    %4827 = vmatprep.subr.bf16.mxu0 %v2709
    %4828 = vmatpush1.bf16.msra.mxu0 %v2708
    %4829 = vmatprep.subr.bf16.mxu0 %v2713
    %4830 = vmatpush1.bf16.msra.mxu0 %v2712
    %4831 = vmatprep.subr.bf16.mxu0 %v2717
    %4832 = vmatpush1.bf16.msra.mxu0 %v2716
    %4833 = vmatprep.subr.bf16.mxu0 %v2721
    %4834 = vmatpush1.bf16.msra.mxu0 %v2720
    %4835 = vmatprep.subr.bf16.mxu0 %v2725
    %4836 = vmatpush1.bf16.msra.mxu0 %v2724
    %4837 = vmatprep.subr.bf16.mxu0 %v2729
    %4838 = vmatpush1.bf16.msra.mxu0 %v2728
    %4839 = vmatprep.subr.bf16.mxu0 %v2733
    %4840 = vmatpush1.bf16.msra.mxu0 %v2732
    %4841 = vmatprep.subr.bf16.mxu0 %v2737
    %4842 = vmatpush1.bf16.msra.mxu0 %v2736
    %4843 = vmatprep.subr.bf16.mxu0 %v2741
    %4844 = vmatpush1.bf16.msra.mxu0 %v2740
    %4845 = vmatprep.subr.bf16.mxu0 %v2745
    %4846 = vmatpush1.bf16.msra.mxu0 %v2744
    %4847 = vmatprep.subr.bf16.mxu0 %v2749
    %4848 = vmatpush1.bf16.msra.mxu0 %v2748
    %4849 = vmatprep.subr.bf16.mxu0 %v2753
    %4850 = vmatpush1.bf16.msra.mxu0 %v2752
    %4851 = vmatprep.subr.bf16.mxu0 %v2757
    %4852 = vmatpush1.bf16.msra.mxu0 %v2756
    %4853 = vmatprep.subr.bf16.mxu0 %v2761
    %4854 = vmatpush1.bf16.msra.mxu0 %v2760
    %4855 = vmatprep.mubr.bf16.mxu0 %v301
    %4856 = vmatmul.mubr.bf16.gmra.mrb[0].mxu0 %v300
    %v4857 = vpop.f32.mrb[0].mxu0
    %v4858 = vadd.f32 %v4745, %v4857
    %v4859 = vpop.f32.mrb[0].mxu0
    %v4860 = vadd.f32 %v4747, %v4859
    %v4861 = vpop.f32.mrb[0].mxu0
    %v4862 = vadd.f32 %v4749, %v4861
    %v4863 = vpop.f32.mrb[0].mxu0
    %v4864 = vadd.f32 %v4751, %v4863
    %4865 = vmatprep.mubr.bf16.mxu0 %v317
    %4866 = vmatmul.mubr.bf16.gmra.mrb[0].mxu0 %v316
    %v4867 = vpop.f32.mrb[0].mxu0
    %v4868 = vadd.f32 %v4755, %v4867
    %v4869 = vpop.f32.mrb[0].mxu0
    %v4870 = vadd.f32 %v4757, %v4869
    %v4871 = vpop.f32.mrb[0].mxu0
    %v4872 = vadd.f32 %v4759, %v4871
    %v4873 = vpop.f32.mrb[0].mxu0
    %v4874 = vadd.f32 %v4761, %v4873
    %4875 = vmatprep.mubr.bf16.mxu0 %v333
    %4876 = vmatmul.mubr.bf16.gmra.mrb[0].mxu0 %v332
    %v4877 = vpop.f32.mrb[0].mxu0
    %v4878 = vadd.f32 %v4765, %v4877
    %v4879 = vpop.f32.mrb[0].mxu0
    %v4880 = vadd.f32 %v4767, %v4879
    %v4881 = vpop.f32.mrb[0].mxu0
    %v4882 = vadd.f32 %v4769, %v4881
    %v4883 = vpop.f32.mrb[0].mxu0
    %v4884 = vadd.f32 %v4771, %v4883
    %4885 = vmatprep.mubr.bf16.mxu0 %v349
    %4886 = vmatmul.mubr.bf16.gmra.mrb[0].mxu0 %v348
    %v4887 = vpop.f32.mrb[0].mxu0
    %v4888 = vadd.f32 %v4775, %v4887
    %v4889 = vpop.f32.mrb[0].mxu0
    %v4890 = vadd.f32 %v4777, %v4889
    %v4891 = vpop.f32.mrb[0].mxu0
    %v4892 = vadd.f32 %v4779, %v4891
    %v4893 = vpop.f32.mrb[0].mxu0
    %v4894 = vadd.f32 %v4781, %v4893
    %4895 = vmatprep.mubr.bf16.mxu0 %v365
    %4896 = vmatmul.mubr.bf16.gmra.mrb[0].mxu0 %v364
    %v4897 = vpop.f32.mrb[0].mxu0
    %v4898 = vadd.f32 %v4785, %v4897
    %v4899 = vpop.f32.mrb[0].mxu0
    %v4900 = vadd.f32 %v4787, %v4899
    %v4901 = vpop.f32.mrb[0].mxu0
    %v4902 = vadd.f32 %v4789, %v4901
    %v4903 = vpop.f32.mrb[0].mxu0
    %v4904 = vadd.f32 %v4791, %v4903
    %4905 = vmatprep.mubr.bf16.mxu0 %v381
    %4906 = vmatmul.mubr.bf16.gmra.mrb[0].mxu0 %v380
    %v4907 = vpop.f32.mrb[0].mxu0
    %v4908 = vadd.f32 %v4795, %v4907
    %v4909 = vpop.f32.mrb[0].mxu0
    %v4910 = vadd.f32 %v4797, %v4909
    %v4911 = vpop.f32.mrb[0].mxu0
    %v4912 = vadd.f32 %v4799, %v4911
    %v4913 = vpop.f32.mrb[0].mxu0
    %v4914 = vadd.f32 %v4801, %v4913
    %4915 = vmatprep.mubr.bf16.mxu0 %v397
    %4916 = vmatmul.mubr.bf16.gmra.mrb[0].mxu0 %v396
    %v4917 = vpop.f32.mrb[0].mxu0
    %v4918 = vadd.f32 %v4805, %v4917
    %v4919 = vpop.f32.mrb[0].mxu0
    %v4920 = vadd.f32 %v4807, %v4919
    %v4921 = vpop.f32.mrb[0].mxu0
    %v4922 = vadd.f32 %v4809, %v4921
    %v4923 = vpop.f32.mrb[0].mxu0
    %v4924 = vadd.f32 %v4811, %v4923
    %4925 = vmatprep.mubr.bf16.mxu0 %v413
    %4926 = vmatmul.mubr.bf16.gmra.mrb[0].mxu0 %v412
    %v4927 = vpop.f32.mrb[0].mxu0
    %v4928 = vadd.f32 %v4815, %v4927
    %v4929 = vpop.f32.mrb[0].mxu0
    %v4930 = vadd.f32 %v4817, %v4929
    %v4931 = vpop.f32.mrb[0].mxu0
    %v4932 = vadd.f32 %v4819, %v4931
    %v4933 = vpop.f32.mrb[0].mxu0
    %v4934 = vadd.f32 %v4821, %v4933
    %4935 = vdwg.mxu0
    %4936 = vmatprep.subr.bf16.mxu0 %v2765
    %4937 = vmatpush1.bf16.msra.mxu0 %v2764
    %4938 = vmatprep.subr.bf16.mxu0 %v2769
    %4939 = vmatpush1.bf16.msra.mxu0 %v2768
    %4940 = vmatprep.subr.bf16.mxu0 %v2773
    %4941 = vmatpush1.bf16.msra.mxu0 %v2772
    %4942 = vmatprep.subr.bf16.mxu0 %v2777
    %4943 = vmatpush1.bf16.msra.mxu0 %v2776
    %4944 = vmatprep.subr.bf16.mxu0 %v2781
    %4945 = vmatpush1.bf16.msra.mxu0 %v2780
    %4946 = vmatprep.subr.bf16.mxu0 %v2785
    %4947 = vmatpush1.bf16.msra.mxu0 %v2784
    %4948 = vmatprep.subr.bf16.mxu0 %v2789
    %4949 = vmatpush1.bf16.msra.mxu0 %v2788
    %4950 = vmatprep.subr.bf16.mxu0 %v2793
    %4951 = vmatpush1.bf16.msra.mxu0 %v2792
    %4952 = vmatprep.subr.bf16.mxu0 %v2797
    %4953 = vmatpush1.bf16.msra.mxu0 %v2796
    %4954 = vmatprep.subr.bf16.mxu0 %v2801
    %4955 = vmatpush1.bf16.msra.mxu0 %v2800
    %4956 = vmatprep.subr.bf16.mxu0 %v2805
    %4957 = vmatpush1.bf16.msra.mxu0 %v2804
    %4958 = vmatprep.subr.bf16.mxu0 %v2809
    %4959 = vmatpush1.bf16.msra.mxu0 %v2808
    %4960 = vmatprep.subr.bf16.mxu0 %v2813
    %4961 = vmatpush1.bf16.msra.mxu0 %v2812
    %4962 = vmatprep.subr.bf16.mxu0 %v2817
    %4963 = vmatpush1.bf16.msra.mxu0 %v2816
    %4964 = vmatprep.subr.bf16.mxu0 %v2821
    %4965 = vmatpush1.bf16.msra.mxu0 %v2820
    %4966 = vmatprep.subr.bf16.mxu0 %v2825
    %4967 = vmatpush1.bf16.msra.mxu0 %v2824
    %4968 = vmatprep.mubr.bf16.mxu0 %v303
    %4969 = vmatmul.mubr.bf16.gmra.mrb[0].mxu0 %v302
    %v4970 = vpop.f32.mrb[0].mxu0
    %v4971 = vadd.f32 %v4858, %v4970
    %v4972 = vpop.f32.mrb[0].mxu0
    %v4973 = vadd.f32 %v4860, %v4972
    %v4974 = vpop.f32.mrb[0].mxu0
    %v4975 = vadd.f32 %v4862, %v4974
    %v4976 = vpop.f32.mrb[0].mxu0
    %v4977 = vadd.f32 %v4864, %v4976
    %4978 = vmatprep.mubr.bf16.mxu0 %v319
    %4979 = vmatmul.mubr.bf16.gmra.mrb[0].mxu0 %v318
    %v4980 = vpop.f32.mrb[0].mxu0
    %v4981 = vadd.f32 %v4868, %v4980
    %v4982 = vpop.f32.mrb[0].mxu0
    %v4983 = vadd.f32 %v4870, %v4982
    %v4984 = vpop.f32.mrb[0].mxu0
    %v4985 = vadd.f32 %v4872, %v4984
    %v4986 = vpop.f32.mrb[0].mxu0
    %v4987 = vadd.f32 %v4874, %v4986
    %4988 = vmatprep.mubr.bf16.mxu0 %v335
    %4989 = vmatmul.mubr.bf16.gmra.mrb[0].mxu0 %v334
    %v4990 = vpop.f32.mrb[0].mxu0
    %v4991 = vadd.f32 %v4878, %v4990
    %v4992 = vpop.f32.mrb[0].mxu0
    %v4993 = vadd.f32 %v4880, %v4992
    %v4994 = vpop.f32.mrb[0].mxu0
    %v4995 = vadd.f32 %v4882, %v4994
    %v4996 = vpop.f32.mrb[0].mxu0
    %v4997 = vadd.f32 %v4884, %v4996
    %4998 = vmatprep.mubr.bf16.mxu0 %v351
    %4999 = vmatmul.mubr.bf16.gmra.mrb[0].mxu0 %v350
    %v5000 = vpop.f32.mrb[0].mxu0
    %v5001 = vadd.f32 %v4888, %v5000
    %v5002 = vpop.f32.mrb[0].mxu0
    %v5003 = vadd.f32 %v4890, %v5002
    %v5004 = vpop.f32.mrb[0].mxu0
    %v5005 = vadd.f32 %v4892, %v5004
    %v5006 = vpop.f32.mrb[0].mxu0
    %v5007 = vadd.f32 %v4894, %v5006
    %5008 = vmatprep.mubr.bf16.mxu0 %v367
    %5009 = vmatmul.mubr.bf16.gmra.mrb[0].mxu0 %v366
    %v5010 = vpop.f32.mrb[0].mxu0
    %v5011 = vadd.f32 %v4898, %v5010
    %v5012 = vpop.f32.mrb[0].mxu0
    %v5013 = vadd.f32 %v4900, %v5012
    %v5014 = vpop.f32.mrb[0].mxu0
    %v5015 = vadd.f32 %v4902, %v5014
    %v5016 = vpop.f32.mrb[0].mxu0
    %v5017 = vadd.f32 %v4904, %v5016
    %5018 = vmatprep.mubr.bf16.mxu0 %v383
    %5019 = vmatmul.mubr.bf16.gmra.mrb[0].mxu0 %v382
    %v5020 = vpop.f32.mrb[0].mxu0
    %v5021 = vadd.f32 %v4908, %v5020
    %v5022 = vpop.f32.mrb[0].mxu0
    %v5023 = vadd.f32 %v4910, %v5022
    %v5024 = vpop.f32.mrb[0].mxu0
    %v5025 = vadd.f32 %v4912, %v5024
    %v5026 = vpop.f32.mrb[0].mxu0
    %v5027 = vadd.f32 %v4914, %v5026
    %5028 = vmatprep.mubr.bf16.mxu0 %v399
    %5029 = vmatmul.mubr.bf16.gmra.mrb[0].mxu0 %v398
    %v5030 = vpop.f32.mrb[0].mxu0
    %v5031 = vadd.f32 %v4918, %v5030
    %v5032 = vpop.f32.mrb[0].mxu0
    %v5033 = vadd.f32 %v4920, %v5032
    %v5034 = vpop.f32.mrb[0].mxu0
    %v5035 = vadd.f32 %v4922, %v5034
    %v5036 = vpop.f32.mrb[0].mxu0
    %v5037 = vadd.f32 %v4924, %v5036
    %5038 = vmatprep.mubr.bf16.mxu0 %v415
    %5039 = vmatmul.mubr.bf16.gmra.mrb[0].mxu0 %v414
    %v5040 = vpop.f32.mrb[0].mxu0
    %v5041 = vadd.f32 %v4928, %v5040
    %v5042 = vpop.f32.mrb[0].mxu0
    %v5043 = vadd.f32 %v4930, %v5042
    %v5044 = vpop.f32.mrb[0].mxu0
    %v5045 = vadd.f32 %v4932, %v5044
    %v5046 = vpop.f32.mrb[0].mxu0
    %v5047 = vadd.f32 %v4934, %v5046
    %5048 = vdwg.mxu0
    %5049 = vmatprep.subr.bf16.mxu0 %v2829
    %5050 = vmatpush1.bf16.msra.mxu0 %v2828
    %5051 = vmatprep.subr.bf16.mxu0 %v2833
    %5052 = vmatpush1.bf16.msra.mxu0 %v2832
    %5053 = vmatprep.subr.bf16.mxu0 %v2837
    %5054 = vmatpush1.bf16.msra.mxu0 %v2836
    %5055 = vmatprep.subr.bf16.mxu0 %v2841
    %5056 = vmatpush1.bf16.msra.mxu0 %v2840
    %5057 = vmatprep.subr.bf16.mxu0 %v2845
    %5058 = vmatpush1.bf16.msra.mxu0 %v2844
    %5059 = vmatprep.subr.bf16.mxu0 %v2849
    %5060 = vmatpush1.bf16.msra.mxu0 %v2848
    %5061 = vmatprep.subr.bf16.mxu0 %v2853
    %5062 = vmatpush1.bf16.msra.mxu0 %v2852
    %5063 = vmatprep.subr.bf16.mxu0 %v2857
    %5064 = vmatpush1.bf16.msra.mxu0 %v2856
    %5065 = vmatprep.subr.bf16.mxu0 %v2861
    %5066 = vmatpush1.bf16.msra.mxu0 %v2860
    %5067 = vmatprep.subr.bf16.mxu0 %v2865
    %5068 = vmatpush1.bf16.msra.mxu0 %v2864
    %5069 = vmatprep.subr.bf16.mxu0 %v2869
    %5070 = vmatpush1.bf16.msra.mxu0 %v2868
    %5071 = vmatprep.subr.bf16.mxu0 %v2873
    %5072 = vmatpush1.bf16.msra.mxu0 %v2872
    %5073 = vmatprep.subr.bf16.mxu0 %v2877
    %5074 = vmatpush1.bf16.msra.mxu0 %v2876
    %5075 = vmatprep.subr.bf16.mxu0 %v2881
    %5076 = vmatpush1.bf16.msra.mxu0 %v2880
    %5077 = vmatprep.subr.bf16.mxu0 %v2885
    %5078 = vmatpush1.bf16.msra.mxu0 %v2884
    %5079 = vmatprep.subr.bf16.mxu0 %v2889
    %5080 = vmatpush1.bf16.msra.mxu0 %v2888
    %5081 = vmatprep.mubr.bf16.mxu0 %v305
    %5082 = vmatmul.mubr.bf16.gmra.mrb[0].mxu0 %v304
    %v5083 = vpop.f32.mrb[0].mxu0
    %v5084 = vadd.f32 %v4971, %v5083
    %v5085 = vpop.f32.mrb[0].mxu0
    %v5086 = vadd.f32 %v4973, %v5085
    %v5087 = vpop.f32.mrb[0].mxu0
    %v5088 = vadd.f32 %v4975, %v5087
    %v5089 = vpop.f32.mrb[0].mxu0
    %v5090 = vadd.f32 %v4977, %v5089
    %5091 = vmatprep.mubr.bf16.mxu0 %v321
    %5092 = vmatmul.mubr.bf16.gmra.mrb[0].mxu0 %v320
    %v5093 = vpop.f32.mrb[0].mxu0
    %v5094 = vadd.f32 %v4981, %v5093
    %v5095 = vpop.f32.mrb[0].mxu0
    %v5096 = vadd.f32 %v4983, %v5095
    %v5097 = vpop.f32.mrb[0].mxu0
    %v5098 = vadd.f32 %v4985, %v5097
    %v5099 = vpop.f32.mrb[0].mxu0
    %v5100 = vadd.f32 %v4987, %v5099
    %5101 = vmatprep.mubr.bf16.mxu0 %v337
    %5102 = vmatmul.mubr.bf16.gmra.mrb[0].mxu0 %v336
    %v5103 = vpop.f32.mrb[0].mxu0
    %v5104 = vadd.f32 %v4991, %v5103
    %v5105 = vpop.f32.mrb[0].mxu0
    %v5106 = vadd.f32 %v4993, %v5105
    %v5107 = vpop.f32.mrb[0].mxu0
    %v5108 = vadd.f32 %v4995, %v5107
    %v5109 = vpop.f32.mrb[0].mxu0
    %v5110 = vadd.f32 %v4997, %v5109
    %5111 = vmatprep.mubr.bf16.mxu0 %v353
    %5112 = vmatmul.mubr.bf16.gmra.mrb[0].mxu0 %v352
    %v5113 = vpop.f32.mrb[0].mxu0
    %v5114 = vadd.f32 %v5001, %v5113
    %v5115 = vpop.f32.mrb[0].mxu0
    %v5116 = vadd.f32 %v5003, %v5115
    %v5117 = vpop.f32.mrb[0].mxu0
    %v5118 = vadd.f32 %v5005, %v5117
    %v5119 = vpop.f32.mrb[0].mxu0
    %v5120 = vadd.f32 %v5007, %v5119
    %5121 = vmatprep.mubr.bf16.mxu0 %v369
    %5122 = vmatmul.mubr.bf16.gmra.mrb[0].mxu0 %v368
    %v5123 = vpop.f32.mrb[0].mxu0
    %v5124 = vadd.f32 %v5011, %v5123
    %v5125 = vpop.f32.mrb[0].mxu0
    %v5126 = vadd.f32 %v5013, %v5125
    %v5127 = vpop.f32.mrb[0].mxu0
    %v5128 = vadd.f32 %v5015, %v5127
    %v5129 = vpop.f32.mrb[0].mxu0
    %v5130 = vadd.f32 %v5017, %v5129
    %5131 = vmatprep.mubr.bf16.mxu0 %v385
    %5132 = vmatmul.mubr.bf16.gmra.mrb[0].mxu0 %v384
    %v5133 = vpop.f32.mrb[0].mxu0
    %v5134 = vadd.f32 %v5021, %v5133
    %v5135 = vpop.f32.mrb[0].mxu0
    %v5136 = vadd.f32 %v5023, %v5135
    %v5137 = vpop.f32.mrb[0].mxu0
    %v5138 = vadd.f32 %v5025, %v5137
    %v5139 = vpop.f32.mrb[0].mxu0
    %v5140 = vadd.f32 %v5027, %v5139
    %5141 = vmatprep.mubr.bf16.mxu0 %v401
    %5142 = vmatmul.mubr.bf16.gmra.mrb[0].mxu0 %v400
    %v5143 = vpop.f32.mrb[0].mxu0
    %v5144 = vadd.f32 %v5031, %v5143
    %v5145 = vpop.f32.mrb[0].mxu0
    %v5146 = vadd.f32 %v5033, %v5145
    %v5147 = vpop.f32.mrb[0].mxu0
    %v5148 = vadd.f32 %v5035, %v5147
    %v5149 = vpop.f32.mrb[0].mxu0
    %v5150 = vadd.f32 %v5037, %v5149
    %5151 = vmatprep.mubr.bf16.mxu0 %v417
    %5152 = vmatmul.mubr.bf16.gmra.mrb[0].mxu0 %v416
    %v5153 = vpop.f32.mrb[0].mxu0
    %v5154 = vadd.f32 %v5041, %v5153
    %v5155 = vpop.f32.mrb[0].mxu0
    %v5156 = vadd.f32 %v5043, %v5155
    %v5157 = vpop.f32.mrb[0].mxu0
    %v5158 = vadd.f32 %v5045, %v5157
    %v5159 = vpop.f32.mrb[0].mxu0
    %v5160 = vadd.f32 %v5047, %v5159
    %5161 = vdwg.mxu0
    %5162 = vmatprep.subr.bf16.mxu0 %v2893
    %5163 = vmatpush1.bf16.msra.mxu0 %v2892
    %5164 = vmatprep.subr.bf16.mxu0 %v2897
    %5165 = vmatpush1.bf16.msra.mxu0 %v2896
    %5166 = vmatprep.subr.bf16.mxu0 %v2901
    %5167 = vmatpush1.bf16.msra.mxu0 %v2900
    %5168 = vmatprep.subr.bf16.mxu0 %v2905
    %5169 = vmatpush1.bf16.msra.mxu0 %v2904
    %5170 = vmatprep.subr.bf16.mxu0 %v2909
    %5171 = vmatpush1.bf16.msra.mxu0 %v2908
    %5172 = vmatprep.subr.bf16.mxu0 %v2913
    %5173 = vmatpush1.bf16.msra.mxu0 %v2912
    %5174 = vmatprep.subr.bf16.mxu0 %v2917
    %5175 = vmatpush1.bf16.msra.mxu0 %v2916
    %5176 = vmatprep.subr.bf16.mxu0 %v2921
    %5177 = vmatpush1.bf16.msra.mxu0 %v2920
    %5178 = vmatprep.subr.bf16.mxu0 %v2925
    %5179 = vmatpush1.bf16.msra.mxu0 %v2924
    %5180 = vmatprep.subr.bf16.mxu0 %v2929
    %5181 = vmatpush1.bf16.msra.mxu0 %v2928
    %5182 = vmatprep.subr.bf16.mxu0 %v2933
    %5183 = vmatpush1.bf16.msra.mxu0 %v2932
    %5184 = vmatprep.subr.bf16.mxu0 %v2937
    %5185 = vmatpush1.bf16.msra.mxu0 %v2936
    %5186 = vmatprep.subr.bf16.mxu0 %v2941
    %5187 = vmatpush1.bf16.msra.mxu0 %v2940
    %5188 = vmatprep.subr.bf16.mxu0 0
    %5189 = vmatpush1.bf16.msra.mxu0 0
    %5190 = vmatprep.subr.bf16.mxu0 0
    %5191 = vmatpush1.bf16.msra.mxu0 0
    %5192 = vmatprep.subr.bf16.mxu0 0
    %5193 = vmatpush1.bf16.msra.mxu0 0
    %5194 = vmatprep.mubr.bf16.mxu0 %v3444
    %5195 = vmatmul.mubr.bf16.gmra.mrb[0].mxu0 %v306
    %v5196 = vpop.f32.mrb[0].mxu0
    %v5197 = vadd.f32 %v5084, %v5196
    %v5198 = vpop.f32.mrb[0].mxu0
    %v5199 = vadd.f32 %v5086, %v5198
    %v5200 = vpop.f32.mrb[0].mxu0
    %v5201 = vadd.f32 %v5088, %v5200
    %v5202 = vpop.f32.mrb[0].mxu0
    %v5203 = vadd.f32 %v5090, %v5202
    %5204 = vmatprep.mubr.bf16.mxu0 %v3447
    %5205 = vmatmul.mubr.bf16.gmra.mrb[0].mxu0 %v322
    %v5206 = vpop.f32.mrb[0].mxu0
    %v5207 = vadd.f32 %v5094, %v5206
    %v5208 = vpop.f32.mrb[0].mxu0
    %v5209 = vadd.f32 %v5096, %v5208
    %v5210 = vpop.f32.mrb[0].mxu0
    %v5211 = vadd.f32 %v5098, %v5210
    %v5212 = vpop.f32.mrb[0].mxu0
    %v5213 = vadd.f32 %v5100, %v5212
    %5214 = vmatprep.mubr.bf16.mxu0 %v3450
    %5215 = vmatmul.mubr.bf16.gmra.mrb[0].mxu0 %v338
    %v5216 = vpop.f32.mrb[0].mxu0
    %v5217 = vadd.f32 %v5104, %v5216
    %v5218 = vpop.f32.mrb[0].mxu0
    %v5219 = vadd.f32 %v5106, %v5218
    %v5220 = vpop.f32.mrb[0].mxu0
    %v5221 = vadd.f32 %v5108, %v5220
    %v5222 = vpop.f32.mrb[0].mxu0
    %v5223 = vadd.f32 %v5110, %v5222
    %5224 = vmatprep.mubr.bf16.mxu0 %v3453
    %5225 = vmatmul.mubr.bf16.gmra.mrb[0].mxu0 %v354
    %v5226 = vpop.f32.mrb[0].mxu0
    %v5227 = vadd.f32 %v5114, %v5226
    %v5228 = vpop.f32.mrb[0].mxu0
    %v5229 = vadd.f32 %v5116, %v5228
    %v5230 = vpop.f32.mrb[0].mxu0
    %v5231 = vadd.f32 %v5118, %v5230
    %v5232 = vpop.f32.mrb[0].mxu0
    %v5233 = vadd.f32 %v5120, %v5232
    %5234 = vmatprep.mubr.bf16.mxu0 %v3456
    %5235 = vmatmul.mubr.bf16.gmra.mrb[0].mxu0 %v370
    %v5236 = vpop.f32.mrb[0].mxu0
    %v5237 = vadd.f32 %v5124, %v5236
    %v5238 = vpop.f32.mrb[0].mxu0
    %v5239 = vadd.f32 %v5126, %v5238
    %v5240 = vpop.f32.mrb[0].mxu0
    %v5241 = vadd.f32 %v5128, %v5240
    %v5242 = vpop.f32.mrb[0].mxu0
    %v5243 = vadd.f32 %v5130, %v5242
    %5244 = vmatprep.mubr.bf16.mxu0 %v3459
    %5245 = vmatmul.mubr.bf16.gmra.mrb[0].mxu0 %v386
    %v5246 = vpop.f32.mrb[0].mxu0
    %v5247 = vadd.f32 %v5134, %v5246
    %v5248 = vpop.f32.mrb[0].mxu0
    %v5249 = vadd.f32 %v5136, %v5248
    %v5250 = vpop.f32.mrb[0].mxu0
    %v5251 = vadd.f32 %v5138, %v5250
    %v5252 = vpop.f32.mrb[0].mxu0
    %v5253 = vadd.f32 %v5140, %v5252
    %5254 = vmatprep.mubr.bf16.mxu0 %v3462
    %5255 = vmatmul.mubr.bf16.gmra.mrb[0].mxu0 %v402
    %v5256 = vpop.f32.mrb[0].mxu0
    %v5257 = vadd.f32 %v5144, %v5256
    %v5258 = vpop.f32.mrb[0].mxu0
    %v5259 = vadd.f32 %v5146, %v5258
    %v5260 = vpop.f32.mrb[0].mxu0
    %v5261 = vadd.f32 %v5148, %v5260
    %v5262 = vpop.f32.mrb[0].mxu0
    %v5263 = vadd.f32 %v5150, %v5262
    %5264 = vmatprep.mubr.bf16.mxu0 %v3465
    %5265 = vmatmul.mubr.bf16.gmra.mrb[0].mxu0 %v418
    %v5266 = vpop.f32.mrb[0].mxu0
    %v5267 = vadd.f32 %v5154, %v5266
    %v5268 = vpop.f32.mrb[0].mxu0
    %v5269 = vadd.f32 %v5156, %v5268
    %v5270 = vpop.f32.mrb[0].mxu0
    %v5271 = vadd.f32 %v5158, %v5270
    %v5272 = vpop.f32.mrb[0].mxu0
    %v5273 = vadd.f32 %v5160, %v5272
    %5274 = vdwg.mxu0
    %v5275 = vmax.f32 %v4293, 0.0
    %v5276 = vmax.f32 %v4295, 0.0
    %v5277 = vmax.f32 %v5197, 0.0
    %v5278 = vmax.f32 %v5199, 0.0
    %v5279 = vmax.f32 %v4297, 0.0
    %v5280 = vmax.f32 %v4299, 0.0
    %v5281 = vmax.f32 %v5201, 0.0
    %v5282 = vmax.f32 %v5203, 0.0
    %v5283 = vmax.f32 %v4303, 0.0
    %v5284 = vmax.f32 %v4305, 0.0
    %v5285 = vmax.f32 %v5207, 0.0
    %v5286 = vmax.f32 %v5209, 0.0
    %v5287 = vmax.f32 %v4307, 0.0
    %v5288 = vmax.f32 %v4309, 0.0
    %v5289 = vmax.f32 %v5211, 0.0
    %v5290 = vmax.f32 %v5213, 0.0
    %v5291 = vmax.f32 %v4313, 0.0
    %v5292 = vmax.f32 %v4315, 0.0
    %v5293 = vmax.f32 %v5217, 0.0
    %v5294 = vmax.f32 %v5219, 0.0
    %v5295 = vmax.f32 %v4317, 0.0
    %v5296 = vmax.f32 %v4319, 0.0
    %v5297 = vmax.f32 %v5221, 0.0
    %v5298 = vmax.f32 %v5223, 0.0
    %v5299 = vmax.f32 %v4323, 0.0
    %v5300 = vmax.f32 %v4325, 0.0
    %v5301 = vmax.f32 %v5227, 0.0
    %v5302 = vmax.f32 %v5229, 0.0
    %v5303 = vmax.f32 %v4327, 0.0
    %v5304 = vmax.f32 %v4329, 0.0
    %v5305 = vmax.f32 %v5231, 0.0
    %v5306 = vmax.f32 %v5233, 0.0
    %v5307 = vmax.f32 %v4333, 0.0
    %v5308 = vmax.f32 %v4335, 0.0
    %v5309 = vmax.f32 %v5237, 0.0
    %v5310 = vmax.f32 %v5239, 0.0
    %v5311 = vmax.f32 %v4337, 0.0
    %v5312 = vmax.f32 %v4339, 0.0
    %v5313 = vmax.f32 %v5241, 0.0
    %v5314 = vmax.f32 %v5243, 0.0
    %v5315 = vmax.f32 %v4343, 0.0
    %v5316 = vmax.f32 %v4345, 0.0
    %v5317 = vmax.f32 %v5247, 0.0
    %v5318 = vmax.f32 %v5249, 0.0
    %v5319 = vmax.f32 %v4347, 0.0
    %v5320 = vmax.f32 %v4349, 0.0
    %v5321 = vmax.f32 %v5251, 0.0
    %v5322 = vmax.f32 %v5253, 0.0
    %v5323 = vmax.f32 %v4353, 0.0
    %v5324 = vmax.f32 %v4355, 0.0
    %v5325 = vmax.f32 %v5257, 0.0
    %v5326 = vmax.f32 %v5259, 0.0
    %v5327 = vmax.f32 %v4357, 0.0
    %v5328 = vmax.f32 %v4359, 0.0
    %v5329 = vmax.f32 %v5261, 0.0
    %v5330 = vmax.f32 %v5263, 0.0
    %v5331 = vmax.f32 %v4363, 0.0
    %v5332 = vmax.f32 %v4365, 0.0
    %v5333 = vmax.f32 %v5267, 0.0
    %v5334 = vmax.f32 %v5269, 0.0
    %v5335 = vmax.f32 %v4367, 0.0
    %v5336 = vmax.f32 %v4369, 0.0
    %v5337 = vmax.f32 %v5271, 0.0
    %v5338 = vmax.f32 %v5273, 0.0
    %v5339 = vpack.c.bf16 %v5279, %v5275
    %v5340 = vpack.c.bf16 %v5280, %v5276
    %v5341 = vpack.c.bf16 %v5281, %v5277
    %v5342 = vpack.c.bf16 %v5282, %v5278
    %v5343 = vpack.c.bf16 %v5287, %v5283
    %v5344 = vpack.c.bf16 %v5288, %v5284
    %v5345 = vpack.c.bf16 %v5289, %v5285
    %v5346 = vpack.c.bf16 %v5290, %v5286
    %v5347 = vpack.c.bf16 %v5295, %v5291
    %v5348 = vpack.c.bf16 %v5296, %v5292
    %v5349 = vpack.c.bf16 %v5297, %v5293
    %v5350 = vpack.c.bf16 %v5298, %v5294
    %v5351 = vpack.c.bf16 %v5303, %v5299
    %v5352 = vpack.c.bf16 %v5304, %v5300
    %v5353 = vpack.c.bf16 %v5305, %v5301
    %v5354 = vpack.c.bf16 %v5306, %v5302
    %v5355 = vpack.c.bf16 %v5311, %v5307
    %v5356 = vpack.c.bf16 %v5312, %v5308
    %v5357 = vpack.c.bf16 %v5313, %v5309
    %v5358 = vpack.c.bf16 %v5314, %v5310
    %v5359 = vpack.c.bf16 %v5319, %v5315
    %v5360 = vpack.c.bf16 %v5320, %v5316
    %v5361 = vpack.c.bf16 %v5321, %v5317
    %v5362 = vpack.c.bf16 %v5322, %v5318
    %v5363 = vpack.c.bf16 %v5327, %v5323
    %v5364 = vpack.c.bf16 %v5328, %v5324
    %v5365 = vpack.c.bf16 %v5329, %v5325
    %v5366 = vpack.c.bf16 %v5330, %v5326
    %v5367 = vpack.c.bf16 %v5335, %v5331
    %v5368 = vpack.c.bf16 %v5336, %v5332
    %v5369 = vpack.c.bf16 %v5337, %v5333
    %v5370 = vpack.c.bf16 %v5338, %v5334
    %v5371 = vld [vmem:[%s3] sm:$0xff]
    %v5372 = vld [vmem:[%s3 + $0x8] sm:$0xff]
    %v5373 = vld [vmem:[%s3 + $0x10] sm:$0xff]
    %v5374 = vld [vmem:[%s3 + $0x18] sm:$0xff]
    %v5375 = vld [vmem:[%s3 + $0x20] sm:$0xff]
    %v5376 = vld [vmem:[%s3 + $0x28] sm:$0xff]
    %v5377 = vld [vmem:[%s3 + $0x30] sm:$0xff]
    %v5378 = vld [vmem:[%s3 + $0x38] sm:$0xff]
    %v5379 = vld [vmem:[%s3 + $0x40] sm:$0xff]
    %v5380 = vld [vmem:[%s3 + $0x48] sm:$0xff]
    %v5381 = vld [vmem:[%s3 + $0x50] sm:$0xff]
    %v5382 = vld [vmem:[%s3 + $0x58] sm:$0xff]
    %v5383 = vld [vmem:[%s3 + $0x60] sm:$0xff]
    %v5384 = vld [vmem:[%s3 + $0x68] sm:$0xff]
    %v5385 = vld [vmem:[%s3 + $0x70] sm:$0xff]
    %v5386 = vld [vmem:[%s3 + $0x78] sm:$0xff]
    %v5387 = vld [vmem:[%s3 + $0x80] sm:$0xff]
    %v5388 = vld [vmem:[%s3 + $0x88] sm:$0xff]
    %v5389 = vld [vmem:[%s3 + $0x90] sm:$0xff]
    %v5390 = vld [vmem:[%s3 + $0x98] sm:$0xff]
    %v5391 = vld [vmem:[%s3 + $0xa0] sm:$0xff]
    %v5392 = vld [vmem:[%s3 + $0xa8] sm:$0xff]
    %v5393 = vld [vmem:[%s3 + $0xb0] sm:$0xff]
    %v5394 = vld [vmem:[%s3 + $0xb8] sm:$0xff]
    %v5395 = vld [vmem:[%s3 + $0xc0] sm:$0xff]
    %v5396 = vld [vmem:[%s3 + $0xc8] sm:$0xff]
    %v5397 = vld [vmem:[%s3 + $0xd0] sm:$0xff]
    %v5398 = vld [vmem:[%s3 + $0xd8] sm:$0xff]
    %v5399 = vld [vmem:[%s3 + $0xe0] sm:$0xff]
    %v5400 = vld [vmem:[%s3 + $0xe8] sm:$0xff]
    %v5401 = vld [vmem:[%s3 + $0xf0] sm:$0xff]
    %v5402 = vld [vmem:[%s3 + $0xf8] sm:$0xff]
    %v5403 = vld [vmem:[%s3 + $0x100] sm:$0xff]
    %v5404 = vld [vmem:[%s3 + $0x108] sm:$0xff]
    %v5405 = vld [vmem:[%s3 + $0x110] sm:$0xff]
    %v5406 = vld [vmem:[%s3 + $0x118] sm:$0xff]
    %v5407 = vld [vmem:[%s3 + $0x120] sm:$0xff]
    %v5408 = vld [vmem:[%s3 + $0x128] sm:$0xff]
    %v5409 = vld [vmem:[%s3 + $0x130] sm:$0xff]
    %v5410 = vld [vmem:[%s3 + $0x138] sm:$0xff]
    %v5411 = vld [vmem:[%s3 + $0x140] sm:$0xff]
    %v5412 = vld [vmem:[%s3 + $0x148] sm:$0xff]
    %v5413 = vld [vmem:[%s3 + $0x150] sm:$0xff]
    %v5414 = vld [vmem:[%s3 + $0x158] sm:$0xff]
    %v5415 = vld [vmem:[%s3 + $0x160] sm:$0xff]
    %v5416 = vld [vmem:[%s3 + $0x168] sm:$0xff]
    %v5417 = vld [vmem:[%s3 + $0x170] sm:$0xff]
    %v5418 = vld [vmem:[%s3 + $0x178] sm:$0xff]
    %v5419 = vld [vmem:[%s3 + $0x180] sm:$0xff]
    %v5420 = vld [vmem:[%s3 + $0x188] sm:$0xff]
    %v5421 = vld [vmem:[%s3 + $0x190] sm:$0xff]
    %v5422 = vld [vmem:[%s3 + $0x198] sm:$0xff]
    %v5423 = vld [vmem:[%s3 + $0x1a0] sm:$0xff]
    %v5424 = vld [vmem:[%s3 + $0x1a8] sm:$0xff]
    %v5425 = vld [vmem:[%s3 + $0x1b0] sm:$0xff]
    %v5426 = vld [vmem:[%s3 + $0x1b8] sm:$0xff]
    %v5427 = vld [vmem:[%s3 + $0x1c0] sm:$0xff]
    %v5428 = vld [vmem:[%s3 + $0x1c8] sm:$0xff]
    %v5429 = vld [vmem:[%s3 + $0x1d0] sm:$0xff]
    %v5430 = vld [vmem:[%s3 + $0x1d8] sm:$0xff]
    %v5431 = vld [vmem:[%s3 + $0x1e0] sm:$0xff]
    %v5432 = vld [vmem:[%s3 + $0x1e8] sm:$0xff]
    %v5433 = vld [vmem:[%s3 + $0x1f0] sm:$0xff]
    %v5434 = vld [vmem:[%s3 + $0x1f8] sm:$0xff]
    %v5435 = vld [vmem:[%s3 + $0x200] sm:$0xff]
    %v5436 = vld [vmem:[%s3 + $0x208] sm:$0xff]
    %v5437 = vld [vmem:[%s3 + $0x210] sm:$0xff]
    %v5438 = vld [vmem:[%s3 + $0x218] sm:$0xff]
    %v5439 = vld [vmem:[%s3 + $0x220] sm:$0xff]
    %v5440 = vld [vmem:[%s3 + $0x228] sm:$0xff]
    %v5441 = vld [vmem:[%s3 + $0x230] sm:$0xff]
    %v5442 = vld [vmem:[%s3 + $0x238] sm:$0xff]
    %v5443 = vld [vmem:[%s3 + $0x240] sm:$0xff]
    %v5444 = vld [vmem:[%s3 + $0x248] sm:$0xff]
    %v5445 = vld [vmem:[%s3 + $0x250] sm:$0xff]
    %v5446 = vld [vmem:[%s3 + $0x258] sm:$0xff]
    %v5447 = vld [vmem:[%s3 + $0x260] sm:$0xff]
    %v5448 = vld [vmem:[%s3 + $0x268] sm:$0xff]
    %v5449 = vld [vmem:[%s3 + $0x270] sm:$0xff]
    %v5450 = vld [vmem:[%s3 + $0x278] sm:$0xff]
    %v5451 = vld [vmem:[%s3 + $0x280] sm:$0xff]
    %v5452 = vld [vmem:[%s3 + $0x288] sm:$0xff]
    %v5453 = vld [vmem:[%s3 + $0x290] sm:$0xff]
    %v5454 = vld [vmem:[%s3 + $0x298] sm:$0xff]
    %v5455 = vld [vmem:[%s3 + $0x2a0] sm:$0xff]
    %v5456 = vld [vmem:[%s3 + $0x2a8] sm:$0xff]
    %v5457 = vld [vmem:[%s3 + $0x2b0] sm:$0xff]
    %v5458 = vld [vmem:[%s3 + $0x2b8] sm:$0xff]
    %v5459 = vld [vmem:[%s3 + $0x2c0] sm:$0xff]
    %v5460 = vld [vmem:[%s3 + $0x2c8] sm:$0xff]
    %v5461 = vld [vmem:[%s3 + $0x2d0] sm:$0xff]
    %v5462 = vld [vmem:[%s3 + $0x2d8] sm:$0xff]
    %v5463 = vld [vmem:[%s3 + $0x2e0] sm:$0xff]
    %v5464 = vld [vmem:[%s3 + $0x2e8] sm:$0xff]
    %v5465 = vld [vmem:[%s3 + $0x2f0] sm:$0xff]
    %v5466 = vld [vmem:[%s3 + $0x2f8] sm:$0xff]
    %v5467 = vld [vmem:[%s3 + $0x300] sm:$0xff]
    %v5468 = vld [vmem:[%s3 + $0x308] sm:$0xff]
    %v5469 = vld [vmem:[%s3 + $0x310] sm:$0xff]
    %v5470 = vld [vmem:[%s3 + $0x318] sm:$0xff]
    %v5471 = vld [vmem:[%s4] sm:$0xf]
    %v5473 = vlaneseq
    %v5474 = vshrl.u32 %v5473, 7
    %v5475 = vsub.s32 0, %v5474
    %v5476 = vrot.slane %v5471, %v5475
    %v5477 = vlaneseq
    %v5478 = vshrl.u32 %v5477, 7
    %v5479 = vsub.s32 1, %v5478
    %v5480 = vrot.slane %v5471, %v5479
    %v5481 = vlaneseq
    %v5482 = vshrl.u32 %v5481, 7
    %v5483 = vsub.s32 2, %v5482
    %v5484 = vrot.slane %v5471, %v5483
    %v5485 = vlaneseq
    %v5486 = vshrl.u32 %v5485, 7
    %v5487 = vsub.s32 3, %v5486
    %v5488 = vrot.slane %v5471, %v5487
    %v5593 = vunpack.c.l.b16 %v5371
    %v5594 = vunpack.c.h.b16 %v5371
    %v5595 = vunpack.c.l.b16 %v5372
    %v5596 = vunpack.c.h.b16 %v5372
    %v5597 = vunpack.c.l.b16 %v5373
    %v5598 = vunpack.c.h.b16 %v5373
    %v5599 = vunpack.c.l.b16 %v5374
    %v5600 = vunpack.c.h.b16 %v5374
    %v5601 = vunpack.c.l.b16 %v5375
    %v5602 = vunpack.c.h.b16 %v5375
    %v5603 = vunpack.c.l.b16 %v5376
    %v5604 = vunpack.c.h.b16 %v5376
    %v5605 = vunpack.c.l.b16 %v5377
    %v5606 = vunpack.c.h.b16 %v5377
    %v5607 = vunpack.c.l.b16 %v5378
    %v5608 = vunpack.c.h.b16 %v5378
    %v5609 = vunpack.c.l.b16 %v5379
    %v5610 = vunpack.c.h.b16 %v5379
    %v5611 = vunpack.c.l.b16 %v5380
    %v5612 = vunpack.c.h.b16 %v5380
    %v5613 = vunpack.c.l.b16 %v5381
    %v5614 = vunpack.c.h.b16 %v5381
    %v5615 = vunpack.c.l.b16 %v5382
    %v5616 = vunpack.c.h.b16 %v5382
    %v5617 = vunpack.c.l.b16 %v5383
    %v5618 = vunpack.c.h.b16 %v5383
    %v5619 = vunpack.c.l.b16 %v5384
    %v5620 = vunpack.c.h.b16 %v5384
    %v5621 = vunpack.c.l.b16 %v5385
    %v5622 = vunpack.c.h.b16 %v5385
    %v5623 = vunpack.c.l.b16 %v5386
    %v5624 = vunpack.c.h.b16 %v5386
    %v5625 = vunpack.c.l.b16 %v5387
    %v5626 = vunpack.c.h.b16 %v5387
    %v5627 = vunpack.c.l.b16 %v5388
    %v5628 = vunpack.c.h.b16 %v5388
    %v5629 = vunpack.c.l.b16 %v5389
    %v5630 = vunpack.c.h.b16 %v5389
    %v5631 = vunpack.c.l.b16 %v5390
    %v5632 = vunpack.c.h.b16 %v5390
    %v5633 = vunpack.c.l.b16 %v5391
    %v5634 = vunpack.c.h.b16 %v5391
    %v5635 = vunpack.c.l.b16 %v5392
    %v5636 = vunpack.c.h.b16 %v5392
    %v5637 = vunpack.c.l.b16 %v5393
    %v5638 = vunpack.c.h.b16 %v5393
    %v5639 = vunpack.c.l.b16 %v5394
    %v5640 = vunpack.c.h.b16 %v5394
    %v5641 = vunpack.c.l.b16 %v5395
    %v5642 = vunpack.c.h.b16 %v5395
    %v5643 = vunpack.c.l.b16 %v5396
    %v5644 = vunpack.c.h.b16 %v5396
    %v5645 = vunpack.c.l.b16 %v5397
    %v5646 = vunpack.c.h.b16 %v5397
    %v5647 = vunpack.c.l.b16 %v5398
    %v5648 = vunpack.c.h.b16 %v5398
    %v5649 = vunpack.c.l.b16 %v5399
    %v5650 = vunpack.c.h.b16 %v5399
    %v5651 = vunpack.c.l.b16 %v5400
    %v5652 = vunpack.c.h.b16 %v5400
    %v5653 = vunpack.c.l.b16 %v5401
    %v5654 = vunpack.c.h.b16 %v5401
    %v5655 = vunpack.c.l.b16 %v5402
    %v5656 = vunpack.c.h.b16 %v5402
    %v5657 = vunpack.c.l.b16 %v5403
    %v5658 = vunpack.c.h.b16 %v5403
    %v5659 = vunpack.c.l.b16 %v5404
    %v5660 = vunpack.c.h.b16 %v5404
    %v5661 = vunpack.c.l.b16 %v5405
    %v5662 = vunpack.c.h.b16 %v5405
    %v5663 = vunpack.c.l.b16 %v5406
    %v5664 = vunpack.c.h.b16 %v5406
    %v5665 = vunpack.c.l.b16 %v5407
    %v5666 = vunpack.c.h.b16 %v5407
    %v5667 = vunpack.c.l.b16 %v5408
    %v5668 = vunpack.c.h.b16 %v5408
    %v5669 = vunpack.c.l.b16 %v5409
    %v5670 = vunpack.c.h.b16 %v5409
    %v5671 = vunpack.c.l.b16 %v5410
    %v5672 = vunpack.c.h.b16 %v5410
    %v5673 = vunpack.c.l.b16 %v5411
    %v5674 = vunpack.c.h.b16 %v5411
    %v5675 = vunpack.c.l.b16 %v5412
    %v5676 = vunpack.c.h.b16 %v5412
    %v5677 = vunpack.c.l.b16 %v5413
    %v5678 = vunpack.c.h.b16 %v5413
    %v5679 = vunpack.c.l.b16 %v5414
    %v5680 = vunpack.c.h.b16 %v5414
    %v5681 = vunpack.c.l.b16 %v5415
    %v5682 = vunpack.c.h.b16 %v5415
    %v5683 = vunpack.c.l.b16 %v5416
    %v5684 = vunpack.c.h.b16 %v5416
    %v5685 = vunpack.c.l.b16 %v5417
    %v5686 = vunpack.c.h.b16 %v5417
    %v5687 = vunpack.c.l.b16 %v5418
    %v5688 = vunpack.c.h.b16 %v5418
    %v5689 = vunpack.c.l.b16 %v5419
    %v5690 = vunpack.c.h.b16 %v5419
    %v5691 = vunpack.c.l.b16 %v5420
    %v5692 = vunpack.c.h.b16 %v5420
    %v5693 = vunpack.c.l.b16 %v5421
    %v5694 = vunpack.c.h.b16 %v5421
    %v5695 = vunpack.c.l.b16 %v5422
    %v5696 = vunpack.c.h.b16 %v5422
    %v5697 = vunpack.c.l.b16 %v5423
    %v5698 = vunpack.c.h.b16 %v5423
    %v5699 = vunpack.c.l.b16 %v5424
    %v5700 = vunpack.c.h.b16 %v5424
    %v5701 = vunpack.c.l.b16 %v5425
    %v5702 = vunpack.c.h.b16 %v5425
    %v5703 = vunpack.c.l.b16 %v5426
    %v5704 = vunpack.c.h.b16 %v5426
    %v5705 = vunpack.c.l.b16 %v5427
    %v5706 = vunpack.c.h.b16 %v5427
    %v5707 = vunpack.c.l.b16 %v5428
    %v5708 = vunpack.c.h.b16 %v5428
    %v5709 = vunpack.c.l.b16 %v5429
    %v5710 = vunpack.c.h.b16 %v5429
    %v5711 = vunpack.c.l.b16 %v5430
    %v5712 = vunpack.c.h.b16 %v5430
    %v5713 = vunpack.c.l.b16 %v5431
    %v5714 = vunpack.c.h.b16 %v5431
    %v5715 = vunpack.c.l.b16 %v5432
    %v5716 = vunpack.c.h.b16 %v5432
    %v5717 = vunpack.c.l.b16 %v5433
    %v5718 = vunpack.c.h.b16 %v5433
    %v5719 = vunpack.c.l.b16 %v5434
    %v5720 = vunpack.c.h.b16 %v5434
    %v5721 = vunpack.c.l.b16 %v5435
    %v5722 = vunpack.c.h.b16 %v5435
    %v5723 = vunpack.c.l.b16 %v5436
    %v5724 = vunpack.c.h.b16 %v5436
    %v5725 = vunpack.c.l.b16 %v5437
    %v5726 = vunpack.c.h.b16 %v5437
    %v5727 = vunpack.c.l.b16 %v5438
    %v5728 = vunpack.c.h.b16 %v5438
    %v5729 = vunpack.c.l.b16 %v5439
    %v5730 = vunpack.c.h.b16 %v5439
    %v5731 = vunpack.c.l.b16 %v5440
    %v5732 = vunpack.c.h.b16 %v5440
    %v5733 = vunpack.c.l.b16 %v5441
    %v5734 = vunpack.c.h.b16 %v5441
    %v5735 = vunpack.c.l.b16 %v5442
    %v5736 = vunpack.c.h.b16 %v5442
    %v5737 = vunpack.c.l.b16 %v5443
    %v5738 = vunpack.c.h.b16 %v5443
    %v5739 = vunpack.c.l.b16 %v5444
    %v5740 = vunpack.c.h.b16 %v5444
    %v5741 = vunpack.c.l.b16 %v5445
    %v5742 = vunpack.c.h.b16 %v5445
    %v5743 = vunpack.c.l.b16 %v5446
    %v5744 = vunpack.c.h.b16 %v5446
    %v5745 = vunpack.c.l.b16 %v5447
    %v5746 = vunpack.c.h.b16 %v5447
    %v5747 = vunpack.c.l.b16 %v5448
    %v5748 = vunpack.c.h.b16 %v5448
    %v5749 = vunpack.c.l.b16 %v5449
    %v5750 = vunpack.c.h.b16 %v5449
    %v5751 = vunpack.c.l.b16 %v5450
    %v5752 = vunpack.c.h.b16 %v5450
    %v5753 = vunpack.c.l.b16 %v5451
    %v5754 = vunpack.c.h.b16 %v5451
    %v5755 = vunpack.c.l.b16 %v5452
    %v5756 = vunpack.c.h.b16 %v5452
    %v5757 = vunpack.c.l.b16 %v5453
    %v5758 = vunpack.c.h.b16 %v5453
    %v5759 = vunpack.c.l.b16 %v5454
    %v5760 = vunpack.c.h.b16 %v5454
    %v5761 = vunpack.c.l.b16 %v5455
    %v5762 = vunpack.c.h.b16 %v5455
    %v5763 = vunpack.c.l.b16 %v5456
    %v5764 = vunpack.c.h.b16 %v5456
    %v5765 = vunpack.c.l.b16 %v5457
    %v5766 = vunpack.c.h.b16 %v5457
    %v5767 = vunpack.c.l.b16 %v5458
    %v5768 = vunpack.c.h.b16 %v5458
    %v5769 = vunpack.c.l.b16 %v5459
    %v5770 = vunpack.c.h.b16 %v5459
    %v5771 = vunpack.c.l.b16 %v5460
    %v5772 = vunpack.c.h.b16 %v5460
    %v5773 = vunpack.c.l.b16 %v5461
    %v5774 = vunpack.c.h.b16 %v5461
    %v5775 = vunpack.c.l.b16 %v5462
    %v5776 = vunpack.c.h.b16 %v5462
    %v5777 = vunpack.c.l.b16 %v5463
    %v5778 = vunpack.c.h.b16 %v5463
    %v5779 = vunpack.c.l.b16 %v5464
    %v5780 = vunpack.c.h.b16 %v5464
    %v5781 = vunpack.c.l.b16 %v5465
    %v5782 = vunpack.c.h.b16 %v5465
    %v5783 = vunpack.c.l.b16 %v5466
    %v5784 = vunpack.c.h.b16 %v5466
    %v5785 = vunpack.c.l.b16 %v5467
    %v5786 = vunpack.c.h.b16 %v5467
    %v5787 = vunpack.c.l.b16 %v5468
    %v5788 = vunpack.c.h.b16 %v5468
    %v5789 = vunpack.c.l.b16 %v5469
    %v5790 = vunpack.c.h.b16 %v5469
    %v5791 = vunpack.c.l.b16 %v5470
    %v5792 = vunpack.c.h.b16 %v5470
    %v5793 = vpack.c.b16 %v5597, %v5593
    %v5794 = vpack.c.b16 %v5598, %v5594
    %v5795 = vpack.c.b16 %v5599, %v5595
    %v5796 = vpack.c.b16 %v5600, %v5596
    %v5797 = vpack.c.b16 %v5605, %v5601
    %v5798 = vpack.c.b16 %v5606, %v5602
    %v5799 = vpack.c.b16 %v5607, %v5603
    %v5800 = vpack.c.b16 %v5608, %v5604
    %v5801 = vpack.c.b16 %v5613, %v5609
    %v5802 = vpack.c.b16 %v5614, %v5610
    %v5803 = vpack.c.b16 %v5615, %v5611
    %v5804 = vpack.c.b16 %v5616, %v5612
    %v5805 = vpack.c.b16 %v5621, %v5617
    %v5806 = vpack.c.b16 %v5622, %v5618
    %v5807 = vpack.c.b16 %v5623, %v5619
    %v5808 = vpack.c.b16 %v5624, %v5620
    %v5809 = vpack.c.b16 %v5629, %v5625
    %v5810 = vpack.c.b16 %v5630, %v5626
    %v5811 = vpack.c.b16 %v5631, %v5627
    %v5812 = vpack.c.b16 %v5632, %v5628
    %v5813 = vpack.c.b16 %v5637, %v5633
    %v5814 = vpack.c.b16 %v5638, %v5634
    %v5815 = vpack.c.b16 %v5639, %v5635
    %v5816 = vpack.c.b16 %v5640, %v5636
    %v5817 = vpack.c.b16 %v5645, %v5641
    %v5818 = vpack.c.b16 %v5646, %v5642
    %v5819 = vpack.c.b16 %v5647, %v5643
    %v5820 = vpack.c.b16 %v5648, %v5644
    %v5821 = vpack.c.b16 %v5653, %v5649
    %v5822 = vpack.c.b16 %v5654, %v5650
    %v5823 = vpack.c.b16 %v5655, %v5651
    %v5824 = vpack.c.b16 %v5656, %v5652
    %v5825 = vpack.c.b16 %v5661, %v5657
    %v5826 = vpack.c.b16 %v5662, %v5658
    %v5827 = vpack.c.b16 %v5663, %v5659
    %v5828 = vpack.c.b16 %v5664, %v5660
    %v5829 = vpack.c.b16 %v5669, %v5665
    %v5830 = vpack.c.b16 %v5670, %v5666
    %v5831 = vpack.c.b16 %v5671, %v5667
    %v5832 = vpack.c.b16 %v5672, %v5668
    %v5833 = vpack.c.b16 %v5677, %v5673
    %v5834 = vpack.c.b16 %v5678, %v5674
    %v5835 = vpack.c.b16 %v5679, %v5675
    %v5836 = vpack.c.b16 %v5680, %v5676
    %v5837 = vpack.c.b16 %v5685, %v5681
    %v5838 = vpack.c.b16 %v5686, %v5682
    %v5839 = vpack.c.b16 %v5687, %v5683
    %v5840 = vpack.c.b16 %v5688, %v5684
    %v5841 = vpack.c.b16 %v5693, %v5689
    %v5842 = vpack.c.b16 %v5694, %v5690
    %v5843 = vpack.c.b16 %v5695, %v5691
    %v5844 = vpack.c.b16 %v5696, %v5692
    %v5845 = vpack.c.b16 %v5701, %v5697
    %v5846 = vpack.c.b16 %v5702, %v5698
    %v5847 = vpack.c.b16 %v5703, %v5699
    %v5848 = vpack.c.b16 %v5704, %v5700
    %v5849 = vpack.c.b16 %v5709, %v5705
    %v5850 = vpack.c.b16 %v5710, %v5706
    %v5851 = vpack.c.b16 %v5711, %v5707
    %v5852 = vpack.c.b16 %v5712, %v5708
    %v5853 = vpack.c.b16 %v5717, %v5713
    %v5854 = vpack.c.b16 %v5718, %v5714
    %v5855 = vpack.c.b16 %v5719, %v5715
    %v5856 = vpack.c.b16 %v5720, %v5716
    %v5857 = vpack.c.b16 %v5725, %v5721
    %v5858 = vpack.c.b16 %v5726, %v5722
    %v5859 = vpack.c.b16 %v5727, %v5723
    %v5860 = vpack.c.b16 %v5728, %v5724
    %v5861 = vpack.c.b16 %v5733, %v5729
    %v5862 = vpack.c.b16 %v5734, %v5730
    %v5863 = vpack.c.b16 %v5735, %v5731
    %v5864 = vpack.c.b16 %v5736, %v5732
    %v5865 = vpack.c.b16 %v5741, %v5737
    %v5866 = vpack.c.b16 %v5742, %v5738
    %v5867 = vpack.c.b16 %v5743, %v5739
    %v5868 = vpack.c.b16 %v5744, %v5740
    %v5869 = vpack.c.b16 %v5749, %v5745
    %v5870 = vpack.c.b16 %v5750, %v5746
    %v5871 = vpack.c.b16 %v5751, %v5747
    %v5872 = vpack.c.b16 %v5752, %v5748
    %v5873 = vpack.c.b16 %v5757, %v5753
    %v5874 = vpack.c.b16 %v5758, %v5754
    %v5875 = vpack.c.b16 %v5759, %v5755
    %v5876 = vpack.c.b16 %v5760, %v5756
    %v5877 = vpack.c.b16 %v5765, %v5761
    %v5878 = vpack.c.b16 %v5766, %v5762
    %v5879 = vpack.c.b16 %v5767, %v5763
    %v5880 = vpack.c.b16 %v5768, %v5764
    %v5881 = vpack.c.b16 %v5773, %v5769
    %v5882 = vpack.c.b16 %v5774, %v5770
    %v5883 = vpack.c.b16 %v5775, %v5771
    %v5884 = vpack.c.b16 %v5776, %v5772
    %v5885 = vpack.c.b16 %v5781, %v5777
    %v5886 = vpack.c.b16 %v5782, %v5778
    %v5887 = vpack.c.b16 %v5783, %v5779
    %v5888 = vpack.c.b16 %v5784, %v5780
    %v5889 = vpack.c.b16 %v5789, %v5785
    %v5890 = vpack.c.b16 %v5790, %v5786
    %v5891 = vpack.c.b16 %v5791, %v5787
    %v5892 = vpack.c.b16 %v5792, %v5788
    %vm5993 = vcmask 130048
    %v5995 = vsel %vm5993, %v5342, 0
    %v5998 = vsel %vm5993, %v5346, 0
    %v6001 = vsel %vm5993, %v5350, 0
    %v6004 = vsel %vm5993, %v5354, 0
    %v6007 = vsel %vm5993, %v5358, 0
    %v6010 = vsel %vm5993, %v5362, 0
    %v6013 = vsel %vm5993, %v5366, 0
    %v6016 = vsel %vm5993, %v5370, 0
    %6018 = vmatprep.subr.bf16.mxu0 %v5794
    %6019 = vmatpush1.bf16.msra.mxu0 %v5793
    %6020 = vmatprep.subr.bf16.mxu0 %v5798
    %6021 = vmatpush1.bf16.msra.mxu0 %v5797
    %6022 = vmatprep.subr.bf16.mxu0 %v5802
    %6023 = vmatpush1.bf16.msra.mxu0 %v5801
    %6024 = vmatprep.subr.bf16.mxu0 %v5806
    %6025 = vmatpush1.bf16.msra.mxu0 %v5805
    %6026 = vmatprep.subr.bf16.mxu0 %v5810
    %6027 = vmatpush1.bf16.msra.mxu0 %v5809
    %6028 = vmatprep.subr.bf16.mxu0 %v5814
    %6029 = vmatpush1.bf16.msra.mxu0 %v5813
    %6030 = vmatprep.subr.bf16.mxu0 %v5818
    %6031 = vmatpush1.bf16.msra.mxu0 %v5817
    %6032 = vmatprep.subr.bf16.mxu0 %v5822
    %6033 = vmatpush1.bf16.msra.mxu0 %v5821
    %6034 = vmatprep.subr.bf16.mxu0 %v5826
    %6035 = vmatpush1.bf16.msra.mxu0 %v5825
    %6036 = vmatprep.subr.bf16.mxu0 %v5830
    %6037 = vmatpush1.bf16.msra.mxu0 %v5829
    %6038 = vmatprep.subr.bf16.mxu0 %v5834
    %6039 = vmatpush1.bf16.msra.mxu0 %v5833
    %6040 = vmatprep.subr.bf16.mxu0 %v5838
    %6041 = vmatpush1.bf16.msra.mxu0 %v5837
    %6042 = vmatprep.subr.bf16.mxu0 %v5842
    %6043 = vmatpush1.bf16.msra.mxu0 %v5841
    %6044 = vmatprep.subr.bf16.mxu0 %v5846
    %6045 = vmatpush1.bf16.msra.mxu0 %v5845
    %6046 = vmatprep.subr.bf16.mxu0 %v5850
    %6047 = vmatpush1.bf16.msra.mxu0 %v5849
    %6048 = vmatprep.subr.bf16.mxu0 %v5854
    %6049 = vmatpush1.bf16.msra.mxu0 %v5853
    %6050 = vmatprep.mubr.bf16.mxu0 %v5340
    %6051 = vmatmul.mubr.bf16.gmra.mrb[0].mxu0 %v5339
    %v6052 = vpop.f32.mrb[0].mxu0
    %v6053 = vadd.f32 %v5476, %v6052
    %v6054 = vpop.f32.mrb[0].mxu0
    %v6055 = vadd.f32 %v5480, %v6054
    %v6056 = vpop.f32.mrb[0].mxu0
    %v6057 = vadd.f32 %v5476, %v6056
    %v6058 = vpop.f32.mrb[0].mxu0
    %v6059 = vadd.f32 %v5480, %v6058
    %6060 = vmatprep.mubr.bf16.mxu0 %v5344
    %6061 = vmatmul.mubr.bf16.gmra.mrb[0].mxu0 %v5343
    %v6062 = vpop.f32.mrb[0].mxu0
    %v6063 = vadd.f32 %v5476, %v6062
    %v6064 = vpop.f32.mrb[0].mxu0
    %v6065 = vadd.f32 %v5480, %v6064
    %v6066 = vpop.f32.mrb[0].mxu0
    %v6067 = vadd.f32 %v5476, %v6066
    %v6068 = vpop.f32.mrb[0].mxu0
    %v6069 = vadd.f32 %v5480, %v6068
    %6070 = vmatprep.mubr.bf16.mxu0 %v5348
    %6071 = vmatmul.mubr.bf16.gmra.mrb[0].mxu0 %v5347
    %v6072 = vpop.f32.mrb[0].mxu0
    %v6073 = vadd.f32 %v5476, %v6072
    %v6074 = vpop.f32.mrb[0].mxu0
    %v6075 = vadd.f32 %v5480, %v6074
    %v6076 = vpop.f32.mrb[0].mxu0
    %v6077 = vadd.f32 %v5476, %v6076
    %v6078 = vpop.f32.mrb[0].mxu0
    %v6079 = vadd.f32 %v5480, %v6078
    %6080 = vmatprep.mubr.bf16.mxu0 %v5352
    %6081 = vmatmul.mubr.bf16.gmra.mrb[0].mxu0 %v5351
    %v6082 = vpop.f32.mrb[0].mxu0
    %v6083 = vadd.f32 %v5476, %v6082
    %v6084 = vpop.f32.mrb[0].mxu0
    %v6085 = vadd.f32 %v5480, %v6084
    %v6086 = vpop.f32.mrb[0].mxu0
    %v6087 = vadd.f32 %v5476, %v6086
    %v6088 = vpop.f32.mrb[0].mxu0
    %v6089 = vadd.f32 %v5480, %v6088
    %6090 = vmatprep.mubr.bf16.mxu0 %v5356
    %6091 = vmatmul.mubr.bf16.gmra.mrb[0].mxu0 %v5355
    %v6092 = vpop.f32.mrb[0].mxu0
    %v6093 = vadd.f32 %v5476, %v6092
    %v6094 = vpop.f32.mrb[0].mxu0
    %v6095 = vadd.f32 %v5480, %v6094
    %v6096 = vpop.f32.mrb[0].mxu0
    %v6097 = vadd.f32 %v5476, %v6096
    %v6098 = vpop.f32.mrb[0].mxu0
    %v6099 = vadd.f32 %v5480, %v6098
    %6100 = vmatprep.mubr.bf16.mxu0 %v5360
    %6101 = vmatmul.mubr.bf16.gmra.mrb[0].mxu0 %v5359
    %v6102 = vpop.f32.mrb[0].mxu0
    %v6103 = vadd.f32 %v5476, %v6102
    %v6104 = vpop.f32.mrb[0].mxu0
    %v6105 = vadd.f32 %v5480, %v6104
    %v6106 = vpop.f32.mrb[0].mxu0
    %v6107 = vadd.f32 %v5476, %v6106
    %v6108 = vpop.f32.mrb[0].mxu0
    %v6109 = vadd.f32 %v5480, %v6108
    %6110 = vmatprep.mubr.bf16.mxu0 %v5364
    %6111 = vmatmul.mubr.bf16.gmra.mrb[0].mxu0 %v5363
    %v6112 = vpop.f32.mrb[0].mxu0
    %v6113 = vadd.f32 %v5476, %v6112
    %v6114 = vpop.f32.mrb[0].mxu0
    %v6115 = vadd.f32 %v5480, %v6114
    %v6116 = vpop.f32.mrb[0].mxu0
    %v6117 = vadd.f32 %v5476, %v6116
    %v6118 = vpop.f32.mrb[0].mxu0
    %v6119 = vadd.f32 %v5480, %v6118
    %6120 = vmatprep.mubr.bf16.mxu0 %v5368
    %6121 = vmatmul.mubr.bf16.gmra.mrb[0].mxu0 %v5367
    %v6122 = vpop.f32.mrb[0].mxu0
    %v6123 = vadd.f32 %v5476, %v6122
    %v6124 = vpop.f32.mrb[0].mxu0
    %v6125 = vadd.f32 %v5480, %v6124
    %v6126 = vpop.f32.mrb[0].mxu0
    %v6127 = vadd.f32 %v5476, %v6126
    %v6128 = vpop.f32.mrb[0].mxu0
    %v6129 = vadd.f32 %v5480, %v6128
    %6130 = vdwg.mxu0
    %6131 = vmatprep.subr.bf16.mxu0 %v5858
    %6132 = vmatpush1.bf16.msra.mxu0 %v5857
    %6133 = vmatprep.subr.bf16.mxu0 %v5862
    %6134 = vmatpush1.bf16.msra.mxu0 %v5861
    %6135 = vmatprep.subr.bf16.mxu0 %v5866
    %6136 = vmatpush1.bf16.msra.mxu0 %v5865
    %6137 = vmatprep.subr.bf16.mxu0 %v5870
    %6138 = vmatpush1.bf16.msra.mxu0 %v5869
    %6139 = vmatprep.subr.bf16.mxu0 %v5874
    %6140 = vmatpush1.bf16.msra.mxu0 %v5873
    %6141 = vmatprep.subr.bf16.mxu0 %v5878
    %6142 = vmatpush1.bf16.msra.mxu0 %v5877
    %6143 = vmatprep.subr.bf16.mxu0 %v5882
    %6144 = vmatpush1.bf16.msra.mxu0 %v5881
    %6145 = vmatprep.subr.bf16.mxu0 %v5886
    %6146 = vmatpush1.bf16.msra.mxu0 %v5885
    %6147 = vmatprep.subr.bf16.mxu0 %v5890
    %6148 = vmatpush1.bf16.msra.mxu0 %v5889
    %6149 = vmatprep.subr.bf16.mxu0 0
    %6150 = vmatpush1.bf16.msra.mxu0 0
    %6151 = vmatprep.subr.bf16.mxu0 0
    %6152 = vmatpush1.bf16.msra.mxu0 0
    %6153 = vmatprep.subr.bf16.mxu0 0
    %6154 = vmatpush1.bf16.msra.mxu0 0
    %6155 = vmatprep.subr.bf16.mxu0 0
    %6156 = vmatpush1.bf16.msra.mxu0 0
    %6157 = vmatprep.subr.bf16.mxu0 0
    %6158 = vmatpush1.bf16.msra.mxu0 0
    %6159 = vmatprep.subr.bf16.mxu0 0
    %6160 = vmatpush1.bf16.msra.mxu0 0
    %6161 = vmatprep.subr.bf16.mxu0 0
    %6162 = vmatpush1.bf16.msra.mxu0 0
    %6163 = vmatprep.mubr.bf16.mxu0 %v5995
    %6164 = vmatmul.mubr.bf16.gmra.mrb[0].mxu0 %v5341
    %v6165 = vpop.f32.mrb[0].mxu0
    %v6166 = vadd.f32 %v6053, %v6165
    %v6167 = vpop.f32.mrb[0].mxu0
    %v6168 = vadd.f32 %v6055, %v6167
    %v6169 = vpop.f32.mrb[0].mxu0
    %v6170 = vadd.f32 %v6057, %v6169
    %v6171 = vpop.f32.mrb[0].mxu0
    %v6172 = vadd.f32 %v6059, %v6171
    %6173 = vmatprep.mubr.bf16.mxu0 %v5998
    %6174 = vmatmul.mubr.bf16.gmra.mrb[0].mxu0 %v5345
    %v6175 = vpop.f32.mrb[0].mxu0
    %v6176 = vadd.f32 %v6063, %v6175
    %v6177 = vpop.f32.mrb[0].mxu0
    %v6178 = vadd.f32 %v6065, %v6177
    %v6179 = vpop.f32.mrb[0].mxu0
    %v6180 = vadd.f32 %v6067, %v6179
    %v6181 = vpop.f32.mrb[0].mxu0
    %v6182 = vadd.f32 %v6069, %v6181
    %6183 = vmatprep.mubr.bf16.mxu0 %v6001
    %6184 = vmatmul.mubr.bf16.gmra.mrb[0].mxu0 %v5349
    %v6185 = vpop.f32.mrb[0].mxu0
    %v6186 = vadd.f32 %v6073, %v6185
    %v6187 = vpop.f32.mrb[0].mxu0
    %v6188 = vadd.f32 %v6075, %v6187
    %v6189 = vpop.f32.mrb[0].mxu0
    %v6190 = vadd.f32 %v6077, %v6189
    %v6191 = vpop.f32.mrb[0].mxu0
    %v6192 = vadd.f32 %v6079, %v6191
    %6193 = vmatprep.mubr.bf16.mxu0 %v6004
    %6194 = vmatmul.mubr.bf16.gmra.mrb[0].mxu0 %v5353
    %v6195 = vpop.f32.mrb[0].mxu0
    %v6196 = vadd.f32 %v6083, %v6195
    %v6197 = vpop.f32.mrb[0].mxu0
    %v6198 = vadd.f32 %v6085, %v6197
    %v6199 = vpop.f32.mrb[0].mxu0
    %v6200 = vadd.f32 %v6087, %v6199
    %v6201 = vpop.f32.mrb[0].mxu0
    %v6202 = vadd.f32 %v6089, %v6201
    %6203 = vmatprep.mubr.bf16.mxu0 %v6007
    %6204 = vmatmul.mubr.bf16.gmra.mrb[0].mxu0 %v5357
    %v6205 = vpop.f32.mrb[0].mxu0
    %v6206 = vadd.f32 %v6093, %v6205
    %v6207 = vpop.f32.mrb[0].mxu0
    %v6208 = vadd.f32 %v6095, %v6207
    %v6209 = vpop.f32.mrb[0].mxu0
    %v6210 = vadd.f32 %v6097, %v6209
    %v6211 = vpop.f32.mrb[0].mxu0
    %v6212 = vadd.f32 %v6099, %v6211
    %6213 = vmatprep.mubr.bf16.mxu0 %v6010
    %6214 = vmatmul.mubr.bf16.gmra.mrb[0].mxu0 %v5361
    %v6215 = vpop.f32.mrb[0].mxu0
    %v6216 = vadd.f32 %v6103, %v6215
    %v6217 = vpop.f32.mrb[0].mxu0
    %v6218 = vadd.f32 %v6105, %v6217
    %v6219 = vpop.f32.mrb[0].mxu0
    %v6220 = vadd.f32 %v6107, %v6219
    %v6221 = vpop.f32.mrb[0].mxu0
    %v6222 = vadd.f32 %v6109, %v6221
    %6223 = vmatprep.mubr.bf16.mxu0 %v6013
    %6224 = vmatmul.mubr.bf16.gmra.mrb[0].mxu0 %v5365
    %v6225 = vpop.f32.mrb[0].mxu0
    %v6226 = vadd.f32 %v6113, %v6225
    %v6227 = vpop.f32.mrb[0].mxu0
    %v6228 = vadd.f32 %v6115, %v6227
    %v6229 = vpop.f32.mrb[0].mxu0
    %v6230 = vadd.f32 %v6117, %v6229
    %v6231 = vpop.f32.mrb[0].mxu0
    %v6232 = vadd.f32 %v6119, %v6231
    %6233 = vmatprep.mubr.bf16.mxu0 %v6016
    %6234 = vmatmul.mubr.bf16.gmra.mrb[0].mxu0 %v5369
    %v6235 = vpop.f32.mrb[0].mxu0
    %v6236 = vadd.f32 %v6123, %v6235
    %v6237 = vpop.f32.mrb[0].mxu0
    %v6238 = vadd.f32 %v6125, %v6237
    %v6239 = vpop.f32.mrb[0].mxu0
    %v6240 = vadd.f32 %v6127, %v6239
    %v6241 = vpop.f32.mrb[0].mxu0
    %v6242 = vadd.f32 %v6129, %v6241
    %6243 = vdwg.mxu0
    %6244 = vmatprep.subr.bf16.mxu0 %v5796
    %6245 = vmatpush1.bf16.msra.mxu0 %v5795
    %6246 = vmatprep.subr.bf16.mxu0 %v5800
    %6247 = vmatpush1.bf16.msra.mxu0 %v5799
    %6248 = vmatprep.subr.bf16.mxu0 %v5804
    %6249 = vmatpush1.bf16.msra.mxu0 %v5803
    %6250 = vmatprep.subr.bf16.mxu0 %v5808
    %6251 = vmatpush1.bf16.msra.mxu0 %v5807
    %6252 = vmatprep.subr.bf16.mxu0 %v5812
    %6253 = vmatpush1.bf16.msra.mxu0 %v5811
    %6254 = vmatprep.subr.bf16.mxu0 %v5816
    %6255 = vmatpush1.bf16.msra.mxu0 %v5815
    %6256 = vmatprep.subr.bf16.mxu0 %v5820
    %6257 = vmatpush1.bf16.msra.mxu0 %v5819
    %6258 = vmatprep.subr.bf16.mxu0 %v5824
    %6259 = vmatpush1.bf16.msra.mxu0 %v5823
    %6260 = vmatprep.subr.bf16.mxu0 %v5828
    %6261 = vmatpush1.bf16.msra.mxu0 %v5827
    %6262 = vmatprep.subr.bf16.mxu0 %v5832
    %6263 = vmatpush1.bf16.msra.mxu0 %v5831
    %6264 = vmatprep.subr.bf16.mxu0 %v5836
    %6265 = vmatpush1.bf16.msra.mxu0 %v5835
    %6266 = vmatprep.subr.bf16.mxu0 %v5840
    %6267 = vmatpush1.bf16.msra.mxu0 %v5839
    %6268 = vmatprep.subr.bf16.mxu0 %v5844
    %6269 = vmatpush1.bf16.msra.mxu0 %v5843
    %6270 = vmatprep.subr.bf16.mxu0 %v5848
    %6271 = vmatpush1.bf16.msra.mxu0 %v5847
    %6272 = vmatprep.subr.bf16.mxu0 %v5852
    %6273 = vmatpush1.bf16.msra.mxu0 %v5851
    %6274 = vmatprep.subr.bf16.mxu0 %v5856
    %6275 = vmatpush1.bf16.msra.mxu0 %v5855
    %6276 = vmatprep.mubr.bf16.mxu0 %v5340
    %6277 = vmatmul.mubr.bf16.gmra.mrb[0].mxu0 %v5339
    %v6278 = vpop.f32.mrb[0].mxu0
    %v6279 = vadd.f32 %v5484, %v6278
    %v6280 = vpop.f32.mrb[0].mxu0
    %v6281 = vadd.f32 %v5488, %v6280
    %v6282 = vpop.f32.mrb[0].mxu0
    %v6283 = vadd.f32 %v5484, %v6282
    %v6284 = vpop.f32.mrb[0].mxu0
    %v6285 = vadd.f32 %v5488, %v6284
    %6286 = vmatprep.mubr.bf16.mxu0 %v5344
    %6287 = vmatmul.mubr.bf16.gmra.mrb[0].mxu0 %v5343
    %v6288 = vpop.f32.mrb[0].mxu0
    %v6289 = vadd.f32 %v5484, %v6288
    %v6290 = vpop.f32.mrb[0].mxu0
    %v6291 = vadd.f32 %v5488, %v6290
    %v6292 = vpop.f32.mrb[0].mxu0
    %v6293 = vadd.f32 %v5484, %v6292
    %v6294 = vpop.f32.mrb[0].mxu0
    %v6295 = vadd.f32 %v5488, %v6294
    %6296 = vmatprep.mubr.bf16.mxu0 %v5348
    %6297 = vmatmul.mubr.bf16.gmra.mrb[0].mxu0 %v5347
    %v6298 = vpop.f32.mrb[0].mxu0
    %v6299 = vadd.f32 %v5484, %v6298
    %v6300 = vpop.f32.mrb[0].mxu0
    %v6301 = vadd.f32 %v5488, %v6300
    %v6302 = vpop.f32.mrb[0].mxu0
    %v6303 = vadd.f32 %v5484, %v6302
    %v6304 = vpop.f32.mrb[0].mxu0
    %v6305 = vadd.f32 %v5488, %v6304
    %6306 = vmatprep.mubr.bf16.mxu0 %v5352
    %6307 = vmatmul.mubr.bf16.gmra.mrb[0].mxu0 %v5351
    %v6308 = vpop.f32.mrb[0].mxu0
    %v6309 = vadd.f32 %v5484, %v6308
    %v6310 = vpop.f32.mrb[0].mxu0
    %v6311 = vadd.f32 %v5488, %v6310
    %v6312 = vpop.f32.mrb[0].mxu0
    %v6313 = vadd.f32 %v5484, %v6312
    %v6314 = vpop.f32.mrb[0].mxu0
    %v6315 = vadd.f32 %v5488, %v6314
    %6316 = vmatprep.mubr.bf16.mxu0 %v5356
    %6317 = vmatmul.mubr.bf16.gmra.mrb[0].mxu0 %v5355
    %v6318 = vpop.f32.mrb[0].mxu0
    %v6319 = vadd.f32 %v5484, %v6318
    %v6320 = vpop.f32.mrb[0].mxu0
    %v6321 = vadd.f32 %v5488, %v6320
    %v6322 = vpop.f32.mrb[0].mxu0
    %v6323 = vadd.f32 %v5484, %v6322
    %v6324 = vpop.f32.mrb[0].mxu0
    %v6325 = vadd.f32 %v5488, %v6324
    %6326 = vmatprep.mubr.bf16.mxu0 %v5360
    %6327 = vmatmul.mubr.bf16.gmra.mrb[0].mxu0 %v5359
    %v6328 = vpop.f32.mrb[0].mxu0
    %v6329 = vadd.f32 %v5484, %v6328
    %v6330 = vpop.f32.mrb[0].mxu0
    %v6331 = vadd.f32 %v5488, %v6330
    %v6332 = vpop.f32.mrb[0].mxu0
    %v6333 = vadd.f32 %v5484, %v6332
    %v6334 = vpop.f32.mrb[0].mxu0
    %v6335 = vadd.f32 %v5488, %v6334
    %6336 = vmatprep.mubr.bf16.mxu0 %v5364
    %6337 = vmatmul.mubr.bf16.gmra.mrb[0].mxu0 %v5363
    %v6338 = vpop.f32.mrb[0].mxu0
    %v6339 = vadd.f32 %v5484, %v6338
    %v6340 = vpop.f32.mrb[0].mxu0
    %v6341 = vadd.f32 %v5488, %v6340
    %v6342 = vpop.f32.mrb[0].mxu0
    %v6343 = vadd.f32 %v5484, %v6342
    %v6344 = vpop.f32.mrb[0].mxu0
    %v6345 = vadd.f32 %v5488, %v6344
    %6346 = vmatprep.mubr.bf16.mxu0 %v5368
    %6347 = vmatmul.mubr.bf16.gmra.mrb[0].mxu0 %v5367
    %v6348 = vpop.f32.mrb[0].mxu0
    %v6349 = vadd.f32 %v5484, %v6348
    %v6350 = vpop.f32.mrb[0].mxu0
    %v6351 = vadd.f32 %v5488, %v6350
    %v6352 = vpop.f32.mrb[0].mxu0
    %v6353 = vadd.f32 %v5484, %v6352
    %v6354 = vpop.f32.mrb[0].mxu0
    %v6355 = vadd.f32 %v5488, %v6354
    %6356 = vdwg.mxu0
    %6357 = vmatprep.subr.bf16.mxu0 %v5860
    %6358 = vmatpush1.bf16.msra.mxu0 %v5859
    %6359 = vmatprep.subr.bf16.mxu0 %v5864
    %6360 = vmatpush1.bf16.msra.mxu0 %v5863
    %6361 = vmatprep.subr.bf16.mxu0 %v5868
    %6362 = vmatpush1.bf16.msra.mxu0 %v5867
    %6363 = vmatprep.subr.bf16.mxu0 %v5872
    %6364 = vmatpush1.bf16.msra.mxu0 %v5871
    %6365 = vmatprep.subr.bf16.mxu0 %v5876
    %6366 = vmatpush1.bf16.msra.mxu0 %v5875
    %6367 = vmatprep.subr.bf16.mxu0 %v5880
    %6368 = vmatpush1.bf16.msra.mxu0 %v5879
    %6369 = vmatprep.subr.bf16.mxu0 %v5884
    %6370 = vmatpush1.bf16.msra.mxu0 %v5883
    %6371 = vmatprep.subr.bf16.mxu0 %v5888
    %6372 = vmatpush1.bf16.msra.mxu0 %v5887
    %6373 = vmatprep.subr.bf16.mxu0 %v5892
    %6374 = vmatpush1.bf16.msra.mxu0 %v5891
    %6375 = vmatprep.subr.bf16.mxu0 0
    %6376 = vmatpush1.bf16.msra.mxu0 0
    %6377 = vmatprep.subr.bf16.mxu0 0
    %6378 = vmatpush1.bf16.msra.mxu0 0
    %6379 = vmatprep.subr.bf16.mxu0 0
    %6380 = vmatpush1.bf16.msra.mxu0 0
    %6381 = vmatprep.subr.bf16.mxu0 0
    %6382 = vmatpush1.bf16.msra.mxu0 0
    %6383 = vmatprep.subr.bf16.mxu0 0
    %6384 = vmatpush1.bf16.msra.mxu0 0
    %6385 = vmatprep.subr.bf16.mxu0 0
    %6386 = vmatpush1.bf16.msra.mxu0 0
    %6387 = vmatprep.subr.bf16.mxu0 0
    %6388 = vmatpush1.bf16.msra.mxu0 0
    %6389 = vmatprep.mubr.bf16.mxu0 %v5995
    %6390 = vmatmul.mubr.bf16.gmra.mrb[0].mxu0 %v5341
    %v6391 = vpop.f32.mrb[0].mxu0
    %v6392 = vadd.f32 %v6279, %v6391
    %v6393 = vpop.f32.mrb[0].mxu0
    %v6394 = vadd.f32 %v6281, %v6393
    %v6395 = vpop.f32.mrb[0].mxu0
    %v6396 = vadd.f32 %v6283, %v6395
    %v6397 = vpop.f32.mrb[0].mxu0
    %v6398 = vadd.f32 %v6285, %v6397
    %6399 = vmatprep.mubr.bf16.mxu0 %v5998
    %6400 = vmatmul.mubr.bf16.gmra.mrb[0].mxu0 %v5345
    %v6401 = vpop.f32.mrb[0].mxu0
    %v6402 = vadd.f32 %v6289, %v6401
    %v6403 = vpop.f32.mrb[0].mxu0
    %v6404 = vadd.f32 %v6291, %v6403
    %v6405 = vpop.f32.mrb[0].mxu0
    %v6406 = vadd.f32 %v6293, %v6405
    %v6407 = vpop.f32.mrb[0].mxu0
    %v6408 = vadd.f32 %v6295, %v6407
    %6409 = vmatprep.mubr.bf16.mxu0 %v6001
    %6410 = vmatmul.mubr.bf16.gmra.mrb[0].mxu0 %v5349
    %v6411 = vpop.f32.mrb[0].mxu0
    %v6412 = vadd.f32 %v6299, %v6411
    %v6413 = vpop.f32.mrb[0].mxu0
    %v6414 = vadd.f32 %v6301, %v6413
    %v6415 = vpop.f32.mrb[0].mxu0
    %v6416 = vadd.f32 %v6303, %v6415
    %v6417 = vpop.f32.mrb[0].mxu0
    %v6418 = vadd.f32 %v6305, %v6417
    %6419 = vmatprep.mubr.bf16.mxu0 %v6004
    %6420 = vmatmul.mubr.bf16.gmra.mrb[0].mxu0 %v5353
    %v6421 = vpop.f32.mrb[0].mxu0
    %v6422 = vadd.f32 %v6309, %v6421
    %v6423 = vpop.f32.mrb[0].mxu0
    %v6424 = vadd.f32 %v6311, %v6423
    %v6425 = vpop.f32.mrb[0].mxu0
    %v6426 = vadd.f32 %v6313, %v6425
    %v6427 = vpop.f32.mrb[0].mxu0
    %v6428 = vadd.f32 %v6315, %v6427
    %6429 = vmatprep.mubr.bf16.mxu0 %v6007
    %6430 = vmatmul.mubr.bf16.gmra.mrb[0].mxu0 %v5357
    %v6431 = vpop.f32.mrb[0].mxu0
    %v6432 = vadd.f32 %v6319, %v6431
    %v6433 = vpop.f32.mrb[0].mxu0
    %v6434 = vadd.f32 %v6321, %v6433
    %v6435 = vpop.f32.mrb[0].mxu0
    %v6436 = vadd.f32 %v6323, %v6435
    %v6437 = vpop.f32.mrb[0].mxu0
    %v6438 = vadd.f32 %v6325, %v6437
    %6439 = vmatprep.mubr.bf16.mxu0 %v6010
    %6440 = vmatmul.mubr.bf16.gmra.mrb[0].mxu0 %v5361
    %v6441 = vpop.f32.mrb[0].mxu0
    %v6442 = vadd.f32 %v6329, %v6441
    %v6443 = vpop.f32.mrb[0].mxu0
    %v6444 = vadd.f32 %v6331, %v6443
    %v6445 = vpop.f32.mrb[0].mxu0
    %v6446 = vadd.f32 %v6333, %v6445
    %v6447 = vpop.f32.mrb[0].mxu0
    %v6448 = vadd.f32 %v6335, %v6447
    %6449 = vmatprep.mubr.bf16.mxu0 %v6013
    %6450 = vmatmul.mubr.bf16.gmra.mrb[0].mxu0 %v5365
    %v6451 = vpop.f32.mrb[0].mxu0
    %v6452 = vadd.f32 %v6339, %v6451
    %v6453 = vpop.f32.mrb[0].mxu0
    %v6454 = vadd.f32 %v6341, %v6453
    %v6455 = vpop.f32.mrb[0].mxu0
    %v6456 = vadd.f32 %v6343, %v6455
    %v6457 = vpop.f32.mrb[0].mxu0
    %v6458 = vadd.f32 %v6345, %v6457
    %6459 = vmatprep.mubr.bf16.mxu0 %v6016
    %6460 = vmatmul.mubr.bf16.gmra.mrb[0].mxu0 %v5369
    %v6461 = vpop.f32.mrb[0].mxu0
    %v6462 = vadd.f32 %v6349, %v6461
    %v6463 = vpop.f32.mrb[0].mxu0
    %v6464 = vadd.f32 %v6351, %v6463
    %v6465 = vpop.f32.mrb[0].mxu0
    %v6466 = vadd.f32 %v6353, %v6465
    %v6467 = vpop.f32.mrb[0].mxu0
    %v6468 = vadd.f32 %v6355, %v6467
    %6469 = vdwg.mxu0
    %v6470 = vmax.f32 %v6166, 0.0
    %v6471 = vmax.f32 %v6168, 0.0
    %v6472 = vmax.f32 %v6392, 0.0
    %v6473 = vmax.f32 %v6394, 0.0
    %v6474 = vmax.f32 %v6170, 0.0
    %v6475 = vmax.f32 %v6172, 0.0
    %v6476 = vmax.f32 %v6396, 0.0
    %v6477 = vmax.f32 %v6398, 0.0
    %v6478 = vmax.f32 %v6176, 0.0
    %v6479 = vmax.f32 %v6178, 0.0
    %v6480 = vmax.f32 %v6402, 0.0
    %v6481 = vmax.f32 %v6404, 0.0
    %v6482 = vmax.f32 %v6180, 0.0
    %v6483 = vmax.f32 %v6182, 0.0
    %v6484 = vmax.f32 %v6406, 0.0
    %v6485 = vmax.f32 %v6408, 0.0
    %v6486 = vmax.f32 %v6186, 0.0
    %v6487 = vmax.f32 %v6188, 0.0
    %v6488 = vmax.f32 %v6412, 0.0
    %v6489 = vmax.f32 %v6414, 0.0
    %v6490 = vmax.f32 %v6190, 0.0
    %v6491 = vmax.f32 %v6192, 0.0
    %v6492 = vmax.f32 %v6416, 0.0
    %v6493 = vmax.f32 %v6418, 0.0
    %v6494 = vmax.f32 %v6196, 0.0
    %v6495 = vmax.f32 %v6198, 0.0
    %v6496 = vmax.f32 %v6422, 0.0
    %v6497 = vmax.f32 %v6424, 0.0
    %v6498 = vmax.f32 %v6200, 0.0
    %v6499 = vmax.f32 %v6202, 0.0
    %v6500 = vmax.f32 %v6426, 0.0
    %v6501 = vmax.f32 %v6428, 0.0
    %v6502 = vmax.f32 %v6206, 0.0
    %v6503 = vmax.f32 %v6208, 0.0
    %v6504 = vmax.f32 %v6432, 0.0
    %v6505 = vmax.f32 %v6434, 0.0
    %v6506 = vmax.f32 %v6210, 0.0
    %v6507 = vmax.f32 %v6212, 0.0
    %v6508 = vmax.f32 %v6436, 0.0
    %v6509 = vmax.f32 %v6438, 0.0
    %v6510 = vmax.f32 %v6216, 0.0
    %v6511 = vmax.f32 %v6218, 0.0
    %v6512 = vmax.f32 %v6442, 0.0
    %v6513 = vmax.f32 %v6444, 0.0
    %v6514 = vmax.f32 %v6220, 0.0
    %v6515 = vmax.f32 %v6222, 0.0
    %v6516 = vmax.f32 %v6446, 0.0
    %v6517 = vmax.f32 %v6448, 0.0
    %v6518 = vmax.f32 %v6226, 0.0
    %v6519 = vmax.f32 %v6228, 0.0
    %v6520 = vmax.f32 %v6452, 0.0
    %v6521 = vmax.f32 %v6454, 0.0
    %v6522 = vmax.f32 %v6230, 0.0
    %v6523 = vmax.f32 %v6232, 0.0
    %v6524 = vmax.f32 %v6456, 0.0
    %v6525 = vmax.f32 %v6458, 0.0
    %v6526 = vmax.f32 %v6236, 0.0
    %v6527 = vmax.f32 %v6238, 0.0
    %v6528 = vmax.f32 %v6462, 0.0
    %v6529 = vmax.f32 %v6464, 0.0
    %v6530 = vmax.f32 %v6240, 0.0
    %v6531 = vmax.f32 %v6242, 0.0
    %v6532 = vmax.f32 %v6466, 0.0
    %v6533 = vmax.f32 %v6468, 0.0
    %v6534 = vpack.c.bf16 %v6474, %v6470
    %v6535 = vpack.c.bf16 %v6475, %v6471
    %v6536 = vpack.c.bf16 %v6476, %v6472
    %v6537 = vpack.c.bf16 %v6477, %v6473
    %v6538 = vpack.c.bf16 %v6482, %v6478
    %v6539 = vpack.c.bf16 %v6483, %v6479
    %v6540 = vpack.c.bf16 %v6484, %v6480
    %v6541 = vpack.c.bf16 %v6485, %v6481
    %v6542 = vpack.c.bf16 %v6490, %v6486
    %v6543 = vpack.c.bf16 %v6491, %v6487
    %v6544 = vpack.c.bf16 %v6492, %v6488
    %v6545 = vpack.c.bf16 %v6493, %v6489
    %v6546 = vpack.c.bf16 %v6498, %v6494
    %v6547 = vpack.c.bf16 %v6499, %v6495
    %v6548 = vpack.c.bf16 %v6500, %v6496
    %v6549 = vpack.c.bf16 %v6501, %v6497
    %v6550 = vpack.c.bf16 %v6506, %v6502
    %v6551 = vpack.c.bf16 %v6507, %v6503
    %v6552 = vpack.c.bf16 %v6508, %v6504
    %v6553 = vpack.c.bf16 %v6509, %v6505
    %v6554 = vpack.c.bf16 %v6514, %v6510
    %v6555 = vpack.c.bf16 %v6515, %v6511
    %v6556 = vpack.c.bf16 %v6516, %v6512
    %v6557 = vpack.c.bf16 %v6517, %v6513
    %v6558 = vpack.c.bf16 %v6522, %v6518
    %v6559 = vpack.c.bf16 %v6523, %v6519
    %v6560 = vpack.c.bf16 %v6524, %v6520
    %v6561 = vpack.c.bf16 %v6525, %v6521
    %v6562 = vpack.c.bf16 %v6530, %v6526
    %v6563 = vpack.c.bf16 %v6531, %v6527
    %v6564 = vpack.c.bf16 %v6532, %v6528
    %v6565 = vpack.c.bf16 %v6533, %v6529
    %v6566 = vld [vmem:[%s5] sm:$0xf]
    %v6567 = vld [vmem:[%s5 + $0x4] sm:$0xf]
    %v6568 = vld [vmem:[%s5 + $0x8] sm:$0xf]
    %v6569 = vld [vmem:[%s5 + $0xc] sm:$0xf]
    %v6570 = vld [vmem:[%s5 + $0x10] sm:$0xf]
    %v6571 = vld [vmem:[%s5 + $0x14] sm:$0xf]
    %v6572 = vld [vmem:[%s5 + $0x18] sm:$0xf]
    %v6573 = vld [vmem:[%s5 + $0x1c] sm:$0xf]
    %v6574 = vld [vmem:[%s5 + $0x20] sm:$0xf]
    %v6575 = vld [vmem:[%s5 + $0x24] sm:$0xf]
    %v6576 = vld [vmem:[%s5 + $0x28] sm:$0xf]
    %v6577 = vld [vmem:[%s5 + $0x2c] sm:$0xf]
    %v6578 = vld [vmem:[%s5 + $0x30] sm:$0xf]
    %v6579 = vld [vmem:[%s5 + $0x34] sm:$0xf]
    %v6580 = vld [vmem:[%s5 + $0x38] sm:$0xf]
    %v6581 = vld [vmem:[%s5 + $0x3c] sm:$0xf]
    %v6582 = vld [vmem:[%s5 + $0x40] sm:$0xf]
    %v6583 = vld [vmem:[%s5 + $0x44] sm:$0xf]
    %v6584 = vld [vmem:[%s5 + $0x48] sm:$0xf]
    %v6585 = vld [vmem:[%s5 + $0x4c] sm:$0xf]
    %v6586 = vld [vmem:[%s5 + $0x50] sm:$0xf]
    %v6587 = vld [vmem:[%s5 + $0x54] sm:$0xf]
    %v6588 = vld [vmem:[%s5 + $0x58] sm:$0xf]
    %v6589 = vld [vmem:[%s5 + $0x5c] sm:$0xf]
    %v6590 = vld [vmem:[%s5 + $0x60] sm:$0xf]
    %v6591 = vld [vmem:[%s5 + $0x64] sm:$0xf]
    %v6592 = vld [vmem:[%s5 + $0x68] sm:$0xf]
    %v6593 = vld [vmem:[%s5 + $0x6c] sm:$0xf]
    %v6594 = vld [vmem:[%s5 + $0x70] sm:$0xf]
    %v6595 = vld [vmem:[%s5 + $0x74] sm:$0xf]
    %v6596 = vld [vmem:[%s5 + $0x78] sm:$0xf]
    %v6597 = vld [vmem:[%s5 + $0x7c] sm:$0xf]
    %v6598 = vld [vmem:[%s5 + $0x80] sm:$0xf]
    %v6599 = vld [vmem:[%s5 + $0x84] sm:$0xf]
    %v6600 = vld [vmem:[%s5 + $0x88] sm:$0xf]
    %v6601 = vld [vmem:[%s5 + $0x8c] sm:$0xf]
    %v6602 = vld [vmem:[%s5 + $0x90] sm:$0xf]
    %v6603 = vld [vmem:[%s5 + $0x94] sm:$0xf]
    %v6604 = vld [vmem:[%s5 + $0x98] sm:$0xf]
    %v6605 = vld [vmem:[%s5 + $0x9c] sm:$0xf]
    %v6606 = vld [vmem:[%s5 + $0xa0] sm:$0xf]
    %v6607 = vld [vmem:[%s5 + $0xa4] sm:$0xf]
    %v6608 = vld [vmem:[%s5 + $0xa8] sm:$0xf]
    %v6609 = vld [vmem:[%s5 + $0xac] sm:$0xf]
    %v6610 = vld [vmem:[%s5 + $0xb0] sm:$0xf]
    %v6611 = vld [vmem:[%s5 + $0xb4] sm:$0xf]
    %v6612 = vld [vmem:[%s5 + $0xb8] sm:$0xf]
    %v6613 = vld [vmem:[%s5 + $0xbc] sm:$0xf]
    %v6614 = vld [vmem:[%s5 + $0xc0] sm:$0xf]
    %v6615 = vld [vmem:[%s5 + $0xc4] sm:$0xf]
    %v6616 = vld [vmem:[%s6] sm:$0x1]
    %v6618 = vlaneseq
    %v6619 = vshrl.u32 %v6618, 7
    %v6620 = vsub.s32 0, %v6619
    %v6621 = vrot.slane %v6616, %v6620
    %v6673 = vunpack.c.l.b16 %v6566
    %v6674 = vunpack.c.l.b16 %v6567
    %v6675 = vunpack.c.l.b16 %v6568
    %v6676 = vunpack.c.l.b16 %v6569
    %v6677 = vunpack.c.l.b16 %v6570
    %v6678 = vunpack.c.l.b16 %v6571
    %v6679 = vunpack.c.l.b16 %v6572
    %v6680 = vunpack.c.l.b16 %v6573
    %v6681 = vunpack.c.l.b16 %v6574
    %v6682 = vunpack.c.l.b16 %v6575
    %v6683 = vunpack.c.l.b16 %v6576
    %v6684 = vunpack.c.l.b16 %v6577
    %v6685 = vunpack.c.l.b16 %v6578
    %v6686 = vunpack.c.l.b16 %v6579
    %v6687 = vunpack.c.l.b16 %v6580
    %v6688 = vunpack.c.l.b16 %v6581
    %v6689 = vunpack.c.l.b16 %v6582
    %v6690 = vunpack.c.l.b16 %v6583
    %v6691 = vunpack.c.l.b16 %v6584
    %v6692 = vunpack.c.l.b16 %v6585
    %v6693 = vunpack.c.l.b16 %v6586
    %v6694 = vunpack.c.l.b16 %v6587
    %v6695 = vunpack.c.l.b16 %v6588
    %v6696 = vunpack.c.l.b16 %v6589
    %v6697 = vunpack.c.l.b16 %v6590
    %v6698 = vunpack.c.l.b16 %v6591
    %v6699 = vunpack.c.l.b16 %v6592
    %v6700 = vunpack.c.l.b16 %v6593
    %v6701 = vunpack.c.l.b16 %v6594
    %v6702 = vunpack.c.l.b16 %v6595
    %v6703 = vunpack.c.l.b16 %v6596
    %v6704 = vunpack.c.l.b16 %v6597
    %v6705 = vunpack.c.l.b16 %v6598
    %v6706 = vunpack.c.l.b16 %v6599
    %v6707 = vunpack.c.l.b16 %v6600
    %v6708 = vunpack.c.l.b16 %v6601
    %v6709 = vunpack.c.l.b16 %v6602
    %v6710 = vunpack.c.l.b16 %v6603
    %v6711 = vunpack.c.l.b16 %v6604
    %v6712 = vunpack.c.l.b16 %v6605
    %v6713 = vunpack.c.l.b16 %v6606
    %v6714 = vunpack.c.l.b16 %v6607
    %v6715 = vunpack.c.l.b16 %v6608
    %v6716 = vunpack.c.l.b16 %v6609
    %v6717 = vunpack.c.l.b16 %v6610
    %v6718 = vunpack.c.l.b16 %v6611
    %v6719 = vunpack.c.l.b16 %v6612
    %v6720 = vunpack.c.l.b16 %v6613
    %v6721 = vunpack.c.l.b16 %v6614
    %v6722 = vunpack.c.l.b16 %v6615
    %v6723 = vpack.c.b16 %v6674, %v6673
    %v6724 = vpack.c.b16 %v6676, %v6675
    %v6725 = vpack.c.b16 %v6678, %v6677
    %v6726 = vpack.c.b16 %v6680, %v6679
    %v6727 = vpack.c.b16 %v6682, %v6681
    %v6728 = vpack.c.b16 %v6684, %v6683
    %v6729 = vpack.c.b16 %v6686, %v6685
    %v6730 = vpack.c.b16 %v6688, %v6687
    %v6731 = vpack.c.b16 %v6690, %v6689
    %v6732 = vpack.c.b16 %v6692, %v6691
    %v6733 = vpack.c.b16 %v6694, %v6693
    %v6734 = vpack.c.b16 %v6696, %v6695
    %v6735 = vpack.c.b16 %v6698, %v6697
    %v6736 = vpack.c.b16 %v6700, %v6699
    %v6737 = vpack.c.b16 %v6702, %v6701
    %v6738 = vpack.c.b16 %v6704, %v6703
    %v6739 = vpack.c.b16 %v6706, %v6705
    %v6740 = vpack.c.b16 %v6708, %v6707
    %v6741 = vpack.c.b16 %v6710, %v6709
    %v6742 = vpack.c.b16 %v6712, %v6711
    %v6743 = vpack.c.b16 %v6714, %v6713
    %v6744 = vpack.c.b16 %v6716, %v6715
    %v6745 = vpack.c.b16 %v6718, %v6717
    %v6746 = vpack.c.b16 %v6720, %v6719
    %v6747 = vpack.c.b16 %v6722, %v6721
    %v6774 = vsel %vm5993, %v6537, 0
    %v6777 = vsel %vm5993, %v6541, 0
    %v6780 = vsel %vm5993, %v6545, 0
    %v6783 = vsel %vm5993, %v6549, 0
    %v6786 = vsel %vm5993, %v6553, 0
    %v6789 = vsel %vm5993, %v6557, 0
    %v6792 = vsel %vm5993, %v6561, 0
    %v6795 = vsel %vm5993, %v6565, 0
    %6797 = vmatprep.subr.bf16.mxu0 0
    %6798 = vmatpush1.bf16.msra.mxu0 %v6723
    %6799 = vmatprep.subr.bf16.mxu0 0
    %6800 = vmatpush1.bf16.msra.mxu0 %v6724
    %6801 = vmatprep.subr.bf16.mxu0 0
    %6802 = vmatpush1.bf16.msra.mxu0 %v6725
    %6803 = vmatprep.subr.bf16.mxu0 0
    %6804 = vmatpush1.bf16.msra.mxu0 %v6726
    %6805 = vmatprep.subr.bf16.mxu0 0
    %6806 = vmatpush1.bf16.msra.mxu0 %v6727
    %6807 = vmatprep.subr.bf16.mxu0 0
    %6808 = vmatpush1.bf16.msra.mxu0 %v6728
    %6809 = vmatprep.subr.bf16.mxu0 0
    %6810 = vmatpush1.bf16.msra.mxu0 %v6729
    %6811 = vmatprep.subr.bf16.mxu0 0
    %6812 = vmatpush1.bf16.msra.mxu0 %v6730
    %6813 = vmatprep.subr.bf16.mxu0 0
    %6814 = vmatpush1.bf16.msra.mxu0 %v6731
    %6815 = vmatprep.subr.bf16.mxu0 0
    %6816 = vmatpush1.bf16.msra.mxu0 %v6732
    %6817 = vmatprep.subr.bf16.mxu0 0
    %6818 = vmatpush1.bf16.msra.mxu0 %v6733
    %6819 = vmatprep.subr.bf16.mxu0 0
    %6820 = vmatpush1.bf16.msra.mxu0 %v6734
    %6821 = vmatprep.subr.bf16.mxu0 0
    %6822 = vmatpush1.bf16.msra.mxu0 %v6735
    %6823 = vmatprep.subr.bf16.mxu0 0
    %6824 = vmatpush1.bf16.msra.mxu0 %v6736
    %6825 = vmatprep.subr.bf16.mxu0 0
    %6826 = vmatpush1.bf16.msra.mxu0 %v6737
    %6827 = vmatprep.subr.bf16.mxu0 0
    %6828 = vmatpush1.bf16.msra.mxu0 %v6738
    %6829 = vmatprep.mubr.bf16.mxu0 %v6535
    %6830 = vmatmul.mubr.bf16.gmra.mrb[0].mxu0 %v6534
    %v6831 = vpop.f32.mrb[0].mxu0
    %v6832 = vadd.f32 %v6621, %v6831
    %v6833 = vpop.f32.mrb[0].mxu0
    %v6834 = vpop.f32.mrb[0].mxu0
    %v6835 = vadd.f32 %v6621, %v6834
    %v6836 = vpop.f32.mrb[0].mxu0
    %6837 = vmatprep.mubr.bf16.mxu0 %v6539
    %6838 = vmatmul.mubr.bf16.gmra.mrb[0].mxu0 %v6538
    %v6839 = vpop.f32.mrb[0].mxu0
    %v6840 = vadd.f32 %v6621, %v6839
    %v6841 = vpop.f32.mrb[0].mxu0
    %v6842 = vpop.f32.mrb[0].mxu0
    %v6843 = vadd.f32 %v6621, %v6842
    %v6844 = vpop.f32.mrb[0].mxu0
    %6845 = vmatprep.mubr.bf16.mxu0 %v6543
    %6846 = vmatmul.mubr.bf16.gmra.mrb[0].mxu0 %v6542
    %v6847 = vpop.f32.mrb[0].mxu0
    %v6848 = vadd.f32 %v6621, %v6847
    %v6849 = vpop.f32.mrb[0].mxu0
    %v6850 = vpop.f32.mrb[0].mxu0
    %v6851 = vadd.f32 %v6621, %v6850
    %v6852 = vpop.f32.mrb[0].mxu0
    %6853 = vmatprep.mubr.bf16.mxu0 %v6547
    %6854 = vmatmul.mubr.bf16.gmra.mrb[0].mxu0 %v6546
    %v6855 = vpop.f32.mrb[0].mxu0
    %v6856 = vadd.f32 %v6621, %v6855
    %v6857 = vpop.f32.mrb[0].mxu0
    %v6858 = vpop.f32.mrb[0].mxu0
    %v6859 = vadd.f32 %v6621, %v6858
    %v6860 = vpop.f32.mrb[0].mxu0
    %6861 = vmatprep.mubr.bf16.mxu0 %v6551
    %6862 = vmatmul.mubr.bf16.gmra.mrb[0].mxu0 %v6550
    %v6863 = vpop.f32.mrb[0].mxu0
    %v6864 = vadd.f32 %v6621, %v6863
    %v6865 = vpop.f32.mrb[0].mxu0
    %v6866 = vpop.f32.mrb[0].mxu0
    %v6867 = vadd.f32 %v6621, %v6866
    %v6868 = vpop.f32.mrb[0].mxu0
    %6869 = vmatprep.mubr.bf16.mxu0 %v6555
    %6870 = vmatmul.mubr.bf16.gmra.mrb[0].mxu0 %v6554
    %v6871 = vpop.f32.mrb[0].mxu0
    %v6872 = vadd.f32 %v6621, %v6871
    %v6873 = vpop.f32.mrb[0].mxu0
    %v6874 = vpop.f32.mrb[0].mxu0
    %v6875 = vadd.f32 %v6621, %v6874
    %v6876 = vpop.f32.mrb[0].mxu0
    %6877 = vmatprep.mubr.bf16.mxu0 %v6559
    %6878 = vmatmul.mubr.bf16.gmra.mrb[0].mxu0 %v6558
    %v6879 = vpop.f32.mrb[0].mxu0
    %v6880 = vadd.f32 %v6621, %v6879
    %v6881 = vpop.f32.mrb[0].mxu0
    %v6882 = vpop.f32.mrb[0].mxu0
    %v6883 = vadd.f32 %v6621, %v6882
    %v6884 = vpop.f32.mrb[0].mxu0
    %6885 = vmatprep.mubr.bf16.mxu0 %v6563
    %6886 = vmatmul.mubr.bf16.gmra.mrb[0].mxu0 %v6562
    %v6887 = vpop.f32.mrb[0].mxu0
    %v6888 = vadd.f32 %v6621, %v6887
    %v6889 = vpop.f32.mrb[0].mxu0
    %v6890 = vpop.f32.mrb[0].mxu0
    %v6891 = vadd.f32 %v6621, %v6890
    %v6892 = vpop.f32.mrb[0].mxu0
    %6893 = vdwg.mxu0
    %6894 = vmatprep.subr.bf16.mxu0 0
    %6895 = vmatpush1.bf16.msra.mxu0 %v6739
    %6896 = vmatprep.subr.bf16.mxu0 0
    %6897 = vmatpush1.bf16.msra.mxu0 %v6740
    %6898 = vmatprep.subr.bf16.mxu0 0
    %6899 = vmatpush1.bf16.msra.mxu0 %v6741
    %6900 = vmatprep.subr.bf16.mxu0 0
    %6901 = vmatpush1.bf16.msra.mxu0 %v6742
    %6902 = vmatprep.subr.bf16.mxu0 0
    %6903 = vmatpush1.bf16.msra.mxu0 %v6743
    %6904 = vmatprep.subr.bf16.mxu0 0
    %6905 = vmatpush1.bf16.msra.mxu0 %v6744
    %6906 = vmatprep.subr.bf16.mxu0 0
    %6907 = vmatpush1.bf16.msra.mxu0 %v6745
    %6908 = vmatprep.subr.bf16.mxu0 0
    %6909 = vmatpush1.bf16.msra.mxu0 %v6746
    %6910 = vmatprep.subr.bf16.mxu0 0
    %6911 = vmatpush1.bf16.msra.mxu0 %v6747
    %6912 = vmatprep.subr.bf16.mxu0 0
    %6913 = vmatpush1.bf16.msra.mxu0 0
    %6914 = vmatprep.subr.bf16.mxu0 0
    %6915 = vmatpush1.bf16.msra.mxu0 0
    %6916 = vmatprep.subr.bf16.mxu0 0
    %6917 = vmatpush1.bf16.msra.mxu0 0
    %6918 = vmatprep.subr.bf16.mxu0 0
    %6919 = vmatpush1.bf16.msra.mxu0 0
    %6920 = vmatprep.subr.bf16.mxu0 0
    %6921 = vmatpush1.bf16.msra.mxu0 0
    %6922 = vmatprep.subr.bf16.mxu0 0
    %6923 = vmatpush1.bf16.msra.mxu0 0
    %6924 = vmatprep.subr.bf16.mxu0 0
    %6925 = vmatpush1.bf16.msra.mxu0 0
    %6926 = vmatprep.mubr.bf16.mxu0 %v6774
    %6927 = vmatmul.mubr.bf16.gmra.mrb[0].mxu0 %v6536
    %v6928 = vpop.f32.mrb[0].mxu0
    %v6929 = vadd.f32 %v6832, %v6928
    %v6930 = vpop.f32.mrb[0].mxu0
    %v6931 = vpop.f32.mrb[0].mxu0
    %v6932 = vadd.f32 %v6835, %v6931
    %v6933 = vpop.f32.mrb[0].mxu0
    %6934 = vmatprep.mubr.bf16.mxu0 %v6777
    %6935 = vmatmul.mubr.bf16.gmra.mrb[0].mxu0 %v6540
    %v6936 = vpop.f32.mrb[0].mxu0
    %v6937 = vadd.f32 %v6840, %v6936
    %v6938 = vpop.f32.mrb[0].mxu0
    %v6939 = vpop.f32.mrb[0].mxu0
    %v6940 = vadd.f32 %v6843, %v6939
    %v6941 = vpop.f32.mrb[0].mxu0
    %6942 = vmatprep.mubr.bf16.mxu0 %v6780
    %6943 = vmatmul.mubr.bf16.gmra.mrb[0].mxu0 %v6544
    %v6944 = vpop.f32.mrb[0].mxu0
    %v6945 = vadd.f32 %v6848, %v6944
    %v6946 = vpop.f32.mrb[0].mxu0
    %v6947 = vpop.f32.mrb[0].mxu0
    %v6948 = vadd.f32 %v6851, %v6947
    %v6949 = vpop.f32.mrb[0].mxu0
    %6950 = vmatprep.mubr.bf16.mxu0 %v6783
    %6951 = vmatmul.mubr.bf16.gmra.mrb[0].mxu0 %v6548
    %v6952 = vpop.f32.mrb[0].mxu0
    %v6953 = vadd.f32 %v6856, %v6952
    %v6954 = vpop.f32.mrb[0].mxu0
    %v6955 = vpop.f32.mrb[0].mxu0
    %v6956 = vadd.f32 %v6859, %v6955
    %v6957 = vpop.f32.mrb[0].mxu0
    %6958 = vmatprep.mubr.bf16.mxu0 %v6786
    %6959 = vmatmul.mubr.bf16.gmra.mrb[0].mxu0 %v6552
    %v6960 = vpop.f32.mrb[0].mxu0
    %v6961 = vadd.f32 %v6864, %v6960
    %v6962 = vpop.f32.mrb[0].mxu0
    %v6963 = vpop.f32.mrb[0].mxu0
    %v6964 = vadd.f32 %v6867, %v6963
    %v6965 = vpop.f32.mrb[0].mxu0
    %6966 = vmatprep.mubr.bf16.mxu0 %v6789
    %6967 = vmatmul.mubr.bf16.gmra.mrb[0].mxu0 %v6556
    %v6968 = vpop.f32.mrb[0].mxu0
    %v6969 = vadd.f32 %v6872, %v6968
    %v6970 = vpop.f32.mrb[0].mxu0
    %v6971 = vpop.f32.mrb[0].mxu0
    %v6972 = vadd.f32 %v6875, %v6971
    %v6973 = vpop.f32.mrb[0].mxu0
    %6974 = vmatprep.mubr.bf16.mxu0 %v6792
    %6975 = vmatmul.mubr.bf16.gmra.mrb[0].mxu0 %v6560
    %v6976 = vpop.f32.mrb[0].mxu0
    %v6977 = vadd.f32 %v6880, %v6976
    %v6978 = vpop.f32.mrb[0].mxu0
    %v6979 = vpop.f32.mrb[0].mxu0
    %v6980 = vadd.f32 %v6883, %v6979
    %v6981 = vpop.f32.mrb[0].mxu0
    %6982 = vmatprep.mubr.bf16.mxu0 %v6795
    %6983 = vmatmul.mubr.bf16.gmra.mrb[0].mxu0 %v6564
    %v6984 = vpop.f32.mrb[0].mxu0
    %v6985 = vadd.f32 %v6888, %v6984
    %v6986 = vpop.f32.mrb[0].mxu0
    %v6987 = vpop.f32.mrb[0].mxu0
    %v6988 = vadd.f32 %v6891, %v6987
    %v6989 = vpop.f32.mrb[0].mxu0
    %6990 = vdwg.mxu0
    %v6991 = vmax.f32 %v6929, 0.0
    %v6992 = vmax.f32 %v6932, 0.0
    %v6993 = vmax.f32 %v6937, 0.0
    %v6994 = vmax.f32 %v6940, 0.0
    %v6995 = vmax.f32 %v6945, 0.0
    %v6996 = vmax.f32 %v6948, 0.0
    %v6997 = vmax.f32 %v6953, 0.0
    %v6998 = vmax.f32 %v6956, 0.0
    %v6999 = vmax.f32 %v6961, 0.0
    %v7000 = vmax.f32 %v6964, 0.0
    %v7001 = vmax.f32 %v6969, 0.0
    %v7002 = vmax.f32 %v6972, 0.0
    %v7003 = vmax.f32 %v6977, 0.0
    %v7004 = vmax.f32 %v6980, 0.0
    %v7005 = vmax.f32 %v6985, 0.0
    %v7006 = vmax.f32 %v6988, 0.0
    %v7007 = vld [vmem:[%s7] sm:$0x1]
    %v7009 = vlaneseq
    %v7010 = vshrl.u32 %v7009, 7
    %v7011 = vsub.s32 0, %v7010
    %v7012 = vrot.slane %v7007, %v7011
    %v7014 = vmul.f32 %v6991, %v7012
    %v7015 = vmul.f32 %v6992, %v7012
    %v7016 = vmul.f32 %v6993, %v7012
    %v7017 = vmul.f32 %v6994, %v7012
    %v7018 = vmul.f32 %v6995, %v7012
    %v7019 = vmul.f32 %v6996, %v7012
    %v7020 = vmul.f32 %v6997, %v7012
    %v7021 = vmul.f32 %v6998, %v7012
    %v7022 = vmul.f32 %v6999, %v7012
    %v7023 = vmul.f32 %v7000, %v7012
    %v7024 = vmul.f32 %v7001, %v7012
    %v7025 = vmul.f32 %v7002, %v7012
    %v7026 = vmul.f32 %v7003, %v7012
    %v7027 = vmul.f32 %v7004, %v7012
    %v7028 = vmul.f32 %v7005, %v7012
    %v7029 = vmul.f32 %v7006, %v7012
    %vm7030 = vcmask 203776
    %v7031 = vsel %vm7030, %v7014, 0.0
    %7032 = vadd.xlane.f32.xlu0 %v7031
    %v7033 = vpop.xlane.xlu0 %7032
    %v7034 = vsel %vm7030, %v7015, 0.0
    %7035 = vadd.xlane.f32.xlu0 %v7034
    %v7036 = vpop.xlane.xlu0 %7035
    %v7037 = vsel %vm7030, %v7016, 0.0
    %7038 = vadd.xlane.f32.xlu0 %v7037
    %v7039 = vpop.xlane.xlu0 %7038
    %v7040 = vsel %vm7030, %v7017, 0.0
    %7041 = vadd.xlane.f32.xlu0 %v7040
    %v7042 = vpop.xlane.xlu0 %7041
    %v7043 = vsel %vm7030, %v7018, 0.0
    %7044 = vadd.xlane.f32.xlu0 %v7043
    %v7045 = vpop.xlane.xlu0 %7044
    %v7046 = vsel %vm7030, %v7019, 0.0
    %7047 = vadd.xlane.f32.xlu0 %v7046
    %v7048 = vpop.xlane.xlu0 %7047
    %v7049 = vsel %vm7030, %v7020, 0.0
    %7050 = vadd.xlane.f32.xlu0 %v7049
    %v7051 = vpop.xlane.xlu0 %7050
    %v7052 = vsel %vm7030, %v7021, 0.0
    %7053 = vadd.xlane.f32.xlu0 %v7052
    %v7054 = vpop.xlane.xlu0 %7053
    %v7055 = vsel %vm7030, %v7022, 0.0
    %7056 = vadd.xlane.f32.xlu0 %v7055
    %v7057 = vpop.xlane.xlu0 %7056
    %v7058 = vsel %vm7030, %v7023, 0.0
    %7059 = vadd.xlane.f32.xlu0 %v7058
    %v7060 = vpop.xlane.xlu0 %7059
    %v7061 = vsel %vm7030, %v7024, 0.0
    %7062 = vadd.xlane.f32.xlu0 %v7061
    %v7063 = vpop.xlane.xlu0 %7062
    %v7064 = vsel %vm7030, %v7025, 0.0
    %7065 = vadd.xlane.f32.xlu0 %v7064
    %v7066 = vpop.xlane.xlu0 %7065
    %v7067 = vsel %vm7030, %v7026, 0.0
    %7068 = vadd.xlane.f32.xlu0 %v7067
    %v7069 = vpop.xlane.xlu0 %7068
    %v7070 = vsel %vm7030, %v7027, 0.0
    %7071 = vadd.xlane.f32.xlu0 %v7070
    %v7072 = vpop.xlane.xlu0 %7071
    %v7073 = vsel %vm7030, %v7028, 0.0
    %7074 = vadd.xlane.f32.xlu0 %v7073
    %v7075 = vpop.xlane.xlu0 %7074
    %v7076 = vsel %vm7030, %v7029, 0.0
    %7077 = vadd.xlane.f32.xlu0 %v7076
    %v7078 = vpop.xlane.xlu0 %7077
    %v7079 = vld [vmem:[#allocation2] sm:$0x1]
    %7081 = vset.pattern.permute.xlu0 0
    %7082 = vperm.xlu0 %7081, %v7079
    %v7083 = vpop.permute.xlu0 %7082
    %v7085 = vlaneseq
    %v7086 = vshrl.u32 %v7085, 7
    %v7087 = vsub.s32 0, %v7086
    %v7088 = vrot.slane %v7083, %v7087
    %v7089 = vadd.f32 %v7033, %v7088
    %v7090 = vadd.f32 %v7036, %v7088
    %v7091 = vadd.f32 %v7039, %v7088
    %v7092 = vadd.f32 %v7042, %v7088
    %v7093 = vadd.f32 %v7045, %v7088
    %v7094 = vadd.f32 %v7048, %v7088
    %v7095 = vadd.f32 %v7051, %v7088
    %v7096 = vadd.f32 %v7054, %v7088
    %v7097 = vadd.f32 %v7057, %v7088
    %v7098 = vadd.f32 %v7060, %v7088
    %v7099 = vadd.f32 %v7063, %v7088
    %v7100 = vadd.f32 %v7066, %v7088
    %v7101 = vadd.f32 %v7069, %v7088
    %v7102 = vadd.f32 %v7072, %v7088
    %v7103 = vadd.f32 %v7075, %v7088
    %v7104 = vadd.f32 %v7078, %v7088
    %v7121 = vlaneseq
    %v7122 = vand.u32 %v7121, 127
    %v7123 = vlaneseq
    %v7124 = vshrl.u32 %v7123, 7
    %v7125 = vsub.s32 %v7122, %v7124
    %v7126 = vrot.slane %v7089, %v7125
    %v7127 = vadd.s32 %v7122, 4294967288
    %v7128 = vlaneseq
    %v7129 = vshrl.u32 %v7128, 7
    %v7130 = vsub.s32 %v7127, %v7129
    %v7131 = vrot.slane %v7090, %v7130
    %vm7132 = vcmask 130112
    %v7133 = vsel %vm7132, %v7131, %v7126
    %v7134 = vadd.s32 %v7122, 4294967280
    %v7135 = vlaneseq
    %v7136 = vshrl.u32 %v7135, 7
    %v7137 = vsub.s32 %v7134, %v7136
    %v7138 = vrot.slane %v7091, %v7137
    %vm7139 = vcmask 195712
    %v7140 = vsel %vm7139, %v7138, %v7133
    %v7141 = vadd.s32 %v7122, 4294967272
    %v7142 = vlaneseq
    %v7143 = vshrl.u32 %v7142, 7
    %v7144 = vsub.s32 %v7141, %v7143
    %v7145 = vrot.slane %v7092, %v7144
    %vm7146 = vcmask 261312
    %v7147 = vsel %vm7146, %v7145, %v7140
    %v7148 = vadd.s32 %v7122, 4294967264
    %v7149 = vlaneseq
    %v7150 = vshrl.u32 %v7149, 7
    %v7151 = vsub.s32 %v7148, %v7150
    %v7152 = vrot.slane %v7093, %v7151
    %vm7153 = vcmask 326912
    %v7154 = vsel %vm7153, %v7152, %v7147
    %v7155 = vadd.s32 %v7122, 4294967256
    %v7156 = vlaneseq
    %v7157 = vshrl.u32 %v7156, 7
    %v7158 = vsub.s32 %v7155, %v7157
    %v7159 = vrot.slane %v7094, %v7158
    %vm7160 = vcmask 392512
    %v7161 = vsel %vm7160, %v7159, %v7154
    %v7162 = vadd.s32 %v7122, 4294967248
    %v7163 = vlaneseq
    %v7164 = vshrl.u32 %v7163, 7
    %v7165 = vsub.s32 %v7162, %v7164
    %v7166 = vrot.slane %v7095, %v7165
    %vm7167 = vcmask 458112
    %v7168 = vsel %vm7167, %v7166, %v7161
    %v7169 = vadd.s32 %v7122, 4294967240
    %v7170 = vlaneseq
    %v7171 = vshrl.u32 %v7170, 7
    %v7172 = vsub.s32 %v7169, %v7171
    %v7173 = vrot.slane %v7096, %v7172
    %vm7174 = vcmask 523712
    %v7175 = vsel %vm7174, %v7173, %v7168
    %v7176 = vadd.s32 %v7122, 4294967232
    %v7177 = vlaneseq
    %v7178 = vshrl.u32 %v7177, 7
    %v7179 = vsub.s32 %v7176, %v7178
    %v7180 = vrot.slane %v7097, %v7179
    %vm7181 = vcmask 589312
    %v7182 = vsel %vm7181, %v7180, %v7175
    %v7183 = vadd.s32 %v7122, 4294967224
    %v7184 = vlaneseq
    %v7185 = vshrl.u32 %v7184, 7
    %v7186 = vsub.s32 %v7183, %v7185
    %v7187 = vrot.slane %v7098, %v7186
    %vm7188 = vcmask 654912
    %v7189 = vsel %vm7188, %v7187, %v7182
    %v7190 = vadd.s32 %v7122, 4294967216
    %v7191 = vlaneseq
    %v7192 = vshrl.u32 %v7191, 7
    %v7193 = vsub.s32 %v7190, %v7192
    %v7194 = vrot.slane %v7099, %v7193
    %vm7195 = vcmask 720512
    %v7196 = vsel %vm7195, %v7194, %v7189
    %v7197 = vadd.s32 %v7122, 4294967208
    %v7198 = vlaneseq
    %v7199 = vshrl.u32 %v7198, 7
    %v7200 = vsub.s32 %v7197, %v7199
    %v7201 = vrot.slane %v7100, %v7200
    %vm7202 = vcmask 786112
    %v7203 = vsel %vm7202, %v7201, %v7196
    %v7204 = vadd.s32 %v7122, 4294967200
    %v7205 = vlaneseq
    %v7206 = vshrl.u32 %v7205, 7
    %v7207 = vsub.s32 %v7204, %v7206
    %v7208 = vrot.slane %v7101, %v7207
    %vm7209 = vcmask 851712
    %v7210 = vsel %vm7209, %v7208, %v7203
    %v7211 = vadd.s32 %v7122, 4294967192
    %v7212 = vlaneseq
    %v7213 = vshrl.u32 %v7212, 7
    %v7214 = vsub.s32 %v7211, %v7213
    %v7215 = vrot.slane %v7102, %v7214
    %vm7216 = vcmask 917312
    %v7217 = vsel %vm7216, %v7215, %v7210
    %v7218 = vadd.s32 %v7122, 4294967184
    %v7219 = vlaneseq
    %v7220 = vshrl.u32 %v7219, 7
    %v7221 = vsub.s32 %v7218, %v7220
    %v7222 = vrot.slane %v7103, %v7221
    %vm7223 = vcmask 982912
    %v7224 = vsel %vm7223, %v7222, %v7217
    %v7225 = vadd.s32 %v7122, 4294967176
    %v7226 = vlaneseq
    %v7227 = vshrl.u32 %v7226, 7
    %v7228 = vsub.s32 %v7225, %v7227
    %v7229 = vrot.slane %v7104, %v7228
    %vm7230 = vcmask 1048512
    %v7231 = vsel %vm7230, %v7229, %v7224
    %7233 = vst [vmem:[#allocation3] sm:$0x1] %v7231
    // Predicated region
    $region38: #{tpu_custom_call.1} parent=1 // pred_check
      _
    $region39: #{tpu_custom_call.1} parent=1 // pred_check_branch
      %7235 = sbr.rel (0) target = $region41
    $region40: #{tpu_custom_call.1} parent=1 // pred_region
      %s7237 = ssub.s32 16, 16
      %7238 = vsyncadd [#allocation4], %s7237
      %s7240 = sshll.u32 [#allocation3], 4
      %s7241 = int_to_ptr.vmem [resolvable:$true] %s7240
      %7243 = dma.vmem_to_hbm [thread:$0]  %s7241, 16, %s9, [#allocation4]
    $region41: #{tpu_custom_call.1} parent=1 // pred_fallthru
      _
    // Predicated region
    $region42: #{tpu_custom_call.1} parent=1 // pred_check
      _
    $region43: #{tpu_custom_call.1} parent=1 // pred_check_branch
      %7245 = sbr.rel (0) target = $region45
    $region44: #{tpu_custom_call.1} parent=1 // pred_region
      %7246 = dma.done [#allocation4], 16
    $region45: #{tpu_custom_call.1} parent=1 // pred_fallthru
      _
    %7247 = vsyncpa [#allocation4], 1

</llo_original>
